<compile_context>
chip_gen: v5e
topology: v5e:2x2
jax: 0.10.0
libtpu: 0.0.40
codegen_flags: <defaults>
</compile_context>

<pallas_src>
import functools

import jax
import jax.numpy as jnp
from jax.experimental import pallas as pl
from jax.experimental.pallas import tpu as pltpu


def _cdiv(a, b):
    return -(-a // b)


def _round_up(a, b):
    return _cdiv(a, b) * b


def deepsdf_kernel(x_ref, w1_ref, b1_ref, w2_ref, b2_ref,
                   w3_ref, b3_ref, w4_ref, o_ref, *, bf16_pipeline):
    """Transposed DeepSDF MLP: activations are (H, tile_n), lane-dense rows.

    x_ref : (8, tile_n) f32    coords^T, zero-padded from 3 to 8 rows
    w1_ref: (H, 8)             layer-1 weight (coords part only), transposed
    b1_ref: (H, 1)             layer-1 bias + folded latent contribution
    w2/w3 : (H, H)  bf16       transposed hidden weights
    b2/b3 : (H, 1)
    w4_ref: (H, 1)             output weight as a column
    o_ref : (1, tile_n) f32    lane-dense output row (b4 added by wrapper)
    """
    if bf16_pipeline:
        # v6e / v7x: bf16 elementwise epilogue (half the vregs per bias/ReLU
        # pass); MXU accumulates in f32 internally regardless.
        x = x_ref[...].astype(jnp.bfloat16)
        h = jnp.dot(w1_ref[...], x, preferred_element_type=jnp.bfloat16)
        h = jnp.maximum(h + b1_ref[...], 0)
        h = jnp.dot(w2_ref[...], h, preferred_element_type=jnp.bfloat16)
        h = jnp.maximum(h + b2_ref[...], 0)
        h = jnp.dot(w3_ref[...], h, preferred_element_type=jnp.bfloat16)
        h = jnp.maximum(h + b3_ref[...], 0)
        # Layer 4 (H -> 1): bf16 VPU multiply, f32 accumulation for accuracy,
        # sublane (XLU) reduce -> naturally lane-dense (1, tile_n) row.
        prod = (h * w4_ref[...]).astype(jnp.float32)
        out = jnp.sum(prod, axis=0, keepdims=True)
    else:
        # v5e and older: f32 VPU epilogue (no bf16 VALU); bf16 only as inputs
        # to the two 256x256 MXU matmuls, accumulated in f32.
        x = x_ref[...]
        h = jnp.dot(w1_ref[...], x, preferred_element_type=jnp.float32)
        h = jnp.maximum(h + b1_ref[...], 0.0)
        h = jnp.dot(w2_ref[...], h.astype(jnp.bfloat16),
                    preferred_element_type=jnp.float32)
        h = jnp.maximum(h + b2_ref[...], 0.0)
        h = jnp.dot(w3_ref[...], h.astype(jnp.bfloat16),
                    preferred_element_type=jnp.float32)
        h = jnp.maximum(h + b3_ref[...], 0.0)
        out = jnp.sum(h * w4_ref[...], axis=0, keepdims=True)
    o_ref[...] = out.astype(o_ref.dtype)


def _tpu_device_kind():
    try:
        return jax.devices()[0].device_kind.lower()
    except Exception:
        return ""


def deepsdf_forward(coords, latent_code, params, *, tile_n=4096):
    """coords: (N, 3) f32, latent_code: (L,) f32 -> (N, 1) f32."""
    w1, b1, w2, b2, w3, b3, w4, b4 = params
    n = coords.shape[0]
    hid = w1.shape[1]

    kind = _tpu_device_kind()
    is_v7 = ("v7" in kind) or ("7x" in kind)
    bf16_pipeline = is_v7 or ("v6" in kind)

    # ---- Weight preprocessing (tiny one-off XLA ops) ------------------------
    # Fold the row-constant latent contribution into the layer-1 bias (exact).
    b1_eff = b1 + latent_code[None, :] @ w1[3:, :]             # (1, H)
    # Transposed layout; pad layer-1 K from 3 to 8 for (8,128) alignment.
    w1_t = jnp.pad(w1[:3, :].T, ((0, 0), (0, 5)))              # (H, 8)
    w2_t = w2.T.astype(jnp.bfloat16)                           # (H, H)
    w3_t = w3.T.astype(jnp.bfloat16)                           # (H, H)
    b1_c = b1_eff.reshape(hid, 1)
    b2_c = b2.reshape(hid, 1)
    b3_c = b3.reshape(hid, 1)
    w4_c = w4.reshape(hid, 1)
    if bf16_pipeline:
        w1_t = w1_t.astype(jnp.bfloat16)
        b1_c = b1_c.astype(jnp.bfloat16)
        b2_c = b2_c.astype(jnp.bfloat16)
        b3_c = b3_c.astype(jnp.bfloat16)
        w4_c = w4_c.astype(jnp.bfloat16)

    # ---- Tile / grid selection ----------------------------------------------
    # Big tiles amortize the ~0.35 us per-step pipeline overhead; the only
    # real VMEM consumers are the (H, tile_n) activation slabs.
    tile_cap = 4096 if is_v7 else 8192          # v7x: 64 MiB VMEM per core
    tile_n = max(128, (min(int(tile_n), tile_cap) // 128) * 128)
    tile_n = min(tile_n, _round_up(n, 128))
    if is_v7 and n > 256:
        # Two TensorCores: keep the grid length even so "parallel" splits the
        # rows ~50/50 across the cores.
        steps = _cdiv(n, tile_n)
        if steps % 2:
            steps += 1
        tile_n = _round_up(_cdiv(n, steps), 128)
        n_pad = steps * tile_n
    else:
        n_pad = _round_up(n, tile_n)
    grid = (n_pad // tile_n,)

    # coords^T, zero-padded to 8 rows and n_pad columns.
    coords_t = jnp.pad(coords.T, ((0, 5), (0, n_pad - n)))     # (8, n_pad)

    def full_spec(shape):
        return pl.BlockSpec(shape, lambda i, _s=shape: (0,) * len(_s))

    operands = (coords_t, w1_t, b1_c, w2_t, b2_c, w3_t, b3_c, w4_c)
    weight_bytes = sum(int(a.size) * a.dtype.itemsize for a in operands[1:])
    cost = pl.CostEstimate(
        flops=2 * n_pad * (3 * hid + 2 * hid * hid + hid),
        transcendentals=0,
        bytes_accessed=int(coords_t.size) * 4 + n_pad * 4 + weight_bytes,
    )

    if is_v7:
        vmem_limit = 48 * 1024 * 1024          # 64 MiB physical per TC
    elif "v6" in kind:
        vmem_limit = 96 * 1024 * 1024          # 128 MiB physical
    else:
        vmem_limit = 64 * 1024 * 1024          # conservative default

    out_row = pl.pallas_call(
        functools.partial(deepsdf_kernel, bf16_pipeline=bf16_pipeline),
        out_shape=jax.ShapeDtypeStruct((1, n_pad), jnp.float32),
        grid_spec=pltpu.PrefetchScalarGridSpec(
            num_scalar_prefetch=0,
            grid=grid,
            in_specs=[
                pl.BlockSpec((8, tile_n), lambda i: (0, i)),  # coords^T tile
                full_spec((hid, 8)),     # w1^T (coords part, K padded to 8)
                full_spec((hid, 1)),     # b1 (+ folded latent)
                full_spec((hid, hid)),   # w2^T (bf16)
                full_spec((hid, 1)),     # b2
                full_spec((hid, hid)),   # w3^T (bf16)
                full_spec((hid, 1)),     # b3
                full_spec((hid, 1)),     # w4 column
            ],
            out_specs=pl.BlockSpec((1, tile_n), lambda i: (0, i)),
        ),
        compiler_params=pltpu.CompilerParams(
            dimension_semantics=("parallel",),
            vmem_limit_bytes=vmem_limit,
        ),
        cost_estimate=cost,
    )(*operands)

    # b4 is a true scalar: add it outside the kernel (avoids a useless (1,1)
    # VMEM block and a per-step broadcast add), then drop padded rows.
    sdf = out_row.reshape(n_pad, 1)[:n] + b4.reshape(1, 1)
    return sdf


def init_params(key, latent_size=128, hidden_dim=256):
    """Deterministic PyTorch-style uniform(-1/sqrt(fan_in), 1/sqrt(fan_in))."""
    d_in = 3 + latent_size
    dims = [(d_in, hidden_dim), (hidden_dim, hidden_dim),
            (hidden_dim, hidden_dim), (hidden_dim, 1)]
    params = []
    for (fi, fo) in dims:
        key, kw, kb = jax.random.split(key, 3)
        bound = 1.0 / jnp.sqrt(jnp.float32(fi))
        w = jax.random.uniform(kw, (fi, fo), jnp.float32, -bound, bound)
        b = jax.random.uniform(kb, (1, fo), jnp.float32, -bound, bound)
        params += [w, b]
    return tuple(params)


def deepsdf_reference(coords, latent_code, params):
    """Pure-JAX f32 reference of the PyTorch forward, for validation."""
    w1, b1, w2, b2, w3, b3, w4, b4 = params
    n = coords.shape[0]
    latent_expanded = jnp.broadcast_to(latent_code[None, :],
                                       (n, latent_code.shape[0]))
    x = jnp.concatenate([coords, latent_expanded], axis=1)
    h = jnp.maximum(x @ w1 + b1, 0.0)
    h = jnp.maximum(h @ w2 + b2, 0.0)
    h = jnp.maximum(h @ w3 + b3, 0.0)
    return h @ w4 + b4


if __name__ == "__main__":
    latent_size = 128
    hidden_dim = 256
    n_points = 1000  # deliberately NOT a tile multiple: exercises the pad path

    key = jax.random.PRNGKey(0)
    kc, kl, kp = jax.random.split(key, 3)

    coords = jax.random.normal(kc, (n_points, 3), jnp.float32)
    latent_code = jax.random.normal(kl, (latent_size,), jnp.float32)
    params = init_params(kp, latent_size=latent_size, hidden_dim=hidden_dim)

    sdf = deepsdf_forward(coords, latent_code, params)
    sdf = jax.block_until_ready(sdf)

    ref = deepsdf_reference(coords, latent_code, params)
    assert sdf.shape == (n_points, 1)
    # bf16 matmul inputs (and bf16 epilogue on v6e/v7x) -> loosen tolerance
    # vs the f32 reference.
    max_err = float(jnp.max(jnp.abs(sdf - ref)))
    assert jnp.allclose(sdf, ref, atol=5e-2, rtol=5e-2), \
        f"mismatch vs reference (max abs err {max_err})"

    print("KERNEL_OK")
</pallas_src>

<mosaic_0001>
module attributes {stable_mosaic.version = 11 : i64} {
  func.func @deepsdf_kernel(%arg0: i32, %arg1: memref<8x1024xf32, #tpu.memory_space<vmem>>, %arg2: memref<256x8xf32, #tpu.memory_space<vmem>>, %arg3: memref<256x1xf32, #tpu.memory_space<vmem>>, %arg4: memref<256x256xbf16, #tpu.memory_space<vmem>>, %arg5: memref<256x1xf32, #tpu.memory_space<vmem>>, %arg6: memref<256x256xbf16, #tpu.memory_space<vmem>>, %arg7: memref<256x1xf32, #tpu.memory_space<vmem>>, %arg8: memref<256x1xf32, #tpu.memory_space<vmem>>, %arg9: memref<1x1024xf32, #tpu.memory_space<vmem>>) attributes {dimension_semantics = [#tpu.dimension_semantics<parallel>], iteration_bounds = array<i64: 1>, scalar_prefetch = 0 : i64, scratch_operands = 0 : i64, tpu.core_type = #tpu.core_type<tc>, window_params = [{transform_indices = @transform_0, window_bounds = array<i64: 8, 1024>}, {pipeline_mode = #tpu.pipeline_mode<synchronous>, transform_indices = @transform_1, window_bounds = array<i64: 256, 8>}, {pipeline_mode = #tpu.pipeline_mode<synchronous>, transform_indices = @transform_2, window_bounds = array<i64: 256, 1>}, {pipeline_mode = #tpu.pipeline_mode<synchronous>, transform_indices = @transform_3, window_bounds = array<i64: 256, 256>}, {pipeline_mode = #tpu.pipeline_mode<synchronous>, transform_indices = @transform_4, window_bounds = array<i64: 256, 1>}, {pipeline_mode = #tpu.pipeline_mode<synchronous>, transform_indices = @transform_5, window_bounds = array<i64: 256, 256>}, {pipeline_mode = #tpu.pipeline_mode<synchronous>, transform_indices = @transform_6, window_bounds = array<i64: 256, 1>}, {pipeline_mode = #tpu.pipeline_mode<synchronous>, transform_indices = @transform_7, window_bounds = array<i64: 256, 1>}, {transform_indices = @transform_8, window_bounds = array<i64: 1, 1024>}]} {
    %c0 = arith.constant 0 : index
    %c0_0 = arith.constant 0 : index
    %0 = vector.load %arg1[%c0, %c0_0] : memref<8x1024xf32, #tpu.memory_space<vmem>>, vector<8x1024xf32>
    %c0_1 = arith.constant 0 : index
    %c0_2 = arith.constant 0 : index
    %1 = vector.load %arg2[%c0_1, %c0_2] : memref<256x8xf32, #tpu.memory_space<vmem>>, vector<256x8xf32>
    %cst = arith.constant dense<0.000000e+00> : vector<256x1024xf32>
    %2 = tpu.matmul %1, %0, %cst {dimension_numbers = #tpu.dot_dimension_numbers<[1], [0], [0], [1], [0, 0, 1, 1], [], []>} : vector<256x8xf32>, vector<8x1024xf32>, vector<256x1024xf32> -> vector<256x1024xf32>
    %c0_3 = arith.constant 0 : index
    %c0_4 = arith.constant 0 : index
    %3 = vector.load %arg3[%c0_3, %c0_4] : memref<256x1xf32, #tpu.memory_space<vmem>>, vector<256x1xf32>
    %4 = vector.broadcast %3 : vector<256x1xf32> to vector<256x1024xf32>
    %5 = arith.addf %2, %4 : vector<256x1024xf32>
    %cst_5 = arith.constant 0.000000e+00 : f32
    %6 = vector.broadcast %cst_5 : f32 to vector<256x1024xf32>
    %7 = arith.maximumf %5, %6 : vector<256x1024xf32>
    %c0_6 = arith.constant 0 : index
    %c0_7 = arith.constant 0 : index
    %8 = vector.load %arg4[%c0_6, %c0_7] : memref<256x256xbf16, #tpu.memory_space<vmem>>, vector<256x256xbf16>
    %9 = arith.truncf %7 : vector<256x1024xf32> to vector<256x1024xbf16>
    %cst_8 = arith.constant dense<0.000000e+00> : vector<256x1024xf32>
    %10 = tpu.matmul %8, %9, %cst_8 {dimension_numbers = #tpu.dot_dimension_numbers<[1], [0], [0], [1], [0, 0, 1, 1], [], []>} : vector<256x256xbf16>, vector<256x1024xbf16>, vector<256x1024xf32> -> vector<256x1024xf32>
    %c0_9 = arith.constant 0 : index
    %c0_10 = arith.constant 0 : index
    %11 = vector.load %arg5[%c0_9, %c0_10] : memref<256x1xf32, #tpu.memory_space<vmem>>, vector<256x1xf32>
    %12 = vector.broadcast %11 : vector<256x1xf32> to vector<256x1024xf32>
    %13 = arith.addf %10, %12 : vector<256x1024xf32>
    %cst_11 = arith.constant 0.000000e+00 : f32
    %14 = vector.broadcast %cst_11 : f32 to vector<256x1024xf32>
    %15 = arith.maximumf %13, %14 : vector<256x1024xf32>
    %c0_12 = arith.constant 0 : index
    %c0_13 = arith.constant 0 : index
    %16 = vector.load %arg6[%c0_12, %c0_13] : memref<256x256xbf16, #tpu.memory_space<vmem>>, vector<256x256xbf16>
    %17 = arith.truncf %15 : vector<256x1024xf32> to vector<256x1024xbf16>
    %cst_14 = arith.constant dense<0.000000e+00> : vector<256x1024xf32>
    %18 = tpu.matmul %16, %17, %cst_14 {dimension_numbers = #tpu.dot_dimension_numbers<[1], [0], [0], [1], [0, 0, 1, 1], [], []>} : vector<256x256xbf16>, vector<256x1024xbf16>, vector<256x1024xf32> -> vector<256x1024xf32>
    %c0_15 = arith.constant 0 : index
    %c0_16 = arith.constant 0 : index
    %19 = vector.load %arg7[%c0_15, %c0_16] : memref<256x1xf32, #tpu.memory_space<vmem>>, vector<256x1xf32>
    %20 = vector.broadcast %19 : vector<256x1xf32> to vector<256x1024xf32>
    %21 = arith.addf %18, %20 : vector<256x1024xf32>
    %cst_17 = arith.constant 0.000000e+00 : f32
    %22 = vector.broadcast %cst_17 : f32 to vector<256x1024xf32>
    %23 = arith.maximumf %21, %22 : vector<256x1024xf32>
    %c0_18 = arith.constant 0 : index
    %c0_19 = arith.constant 0 : index
    %24 = vector.load %arg8[%c0_18, %c0_19] : memref<256x1xf32, #tpu.memory_space<vmem>>, vector<256x1xf32>
    %25 = vector.broadcast %24 : vector<256x1xf32> to vector<256x1024xf32>
    %26 = arith.mulf %23, %25 : vector<256x1024xf32>
    %cst_20 = arith.constant dense<0.000000e+00> : vector<1024xf32>
    %27 = vector.multi_reduction <add>, %26, %cst_20 [0] : vector<256x1024xf32> to vector<1024xf32>
    %28 = vector.shape_cast %27 : vector<1024xf32> to vector<1x1024xf32>
    %c0_21 = arith.constant 0 : index
    %c0_22 = arith.constant 0 : index
    %29 = vector.load %arg9[%c0_21, %c0_22] : memref<1x1024xf32, #tpu.memory_space<vmem>>, vector<1x1024xf32>
    tpu.vector_store %arg9[%c0_21, %c0_22], %28 {strides = array<i32>} : memref<1x1024xf32, #tpu.memory_space<vmem>>, vector<1x1024xf32>,
    return
  }
  func.func @transform_0(%arg0: i32) -> (i32, i32) {
    %c0_i32 = arith.constant 0 : i32
    %c0_i32_0 = arith.constant 0 : i32
    return %c0_i32, %arg0 : i32, i32
  }
  func.func @transform_1(%arg0: i32) -> (i32, i32) {
    %c0_i32 = arith.constant 0 : i32
    %c0_i32_0 = arith.constant 0 : i32
    %c0_i32_1 = arith.constant 0 : i32
    return %c0_i32, %c0_i32_0 : i32, i32
  }
  func.func @transform_2(%arg0: i32) -> (i32, i32) {
    %c0_i32 = arith.constant 0 : i32
    %c0_i32_0 = arith.constant 0 : i32
    %c0_i32_1 = arith.constant 0 : i32
    return %c0_i32, %c0_i32_0 : i32, i32
  }
  func.func @transform_3(%arg0: i32) -> (i32, i32) {
    %c0_i32 = arith.constant 0 : i32
    %c0_i32_0 = arith.constant 0 : i32
    %c0_i32_1 = arith.constant 0 : i32
    return %c0_i32, %c0_i32_0 : i32, i32
  }
  func.func @transform_4(%arg0: i32) -> (i32, i32) {
    %c0_i32 = arith.constant 0 : i32
    %c0_i32_0 = arith.constant 0 : i32
    %c0_i32_1 = arith.constant 0 : i32
    return %c0_i32, %c0_i32_0 : i32, i32
  }
  func.func @transform_5(%arg0: i32) -> (i32, i32) {
    %c0_i32 = arith.constant 0 : i32
    %c0_i32_0 = arith.constant 0 : i32
    %c0_i32_1 = arith.constant 0 : i32
    return %c0_i32, %c0_i32_0 : i32, i32
  }
  func.func @transform_6(%arg0: i32) -> (i32, i32) {
    %c0_i32 = arith.constant 0 : i32
    %c0_i32_0 = arith.constant 0 : i32
    %c0_i32_1 = arith.constant 0 : i32
    return %c0_i32, %c0_i32_0 : i32, i32
  }
  func.func @transform_7(%arg0: i32) -> (i32, i32) {
    %c0_i32 = arith.constant 0 : i32
    %c0_i32_0 = arith.constant 0 : i32
    %c0_i32_1 = arith.constant 0 : i32
    return %c0_i32, %c0_i32_0 : i32, i32
  }
  func.func @transform_8(%arg0: i32) -> (i32, i32) {
    %c0_i32 = arith.constant 0 : i32
    %c0_i32_0 = arith.constant 0 : i32
    return %c0_i32, %arg0 : i32, i32
  }
}

</mosaic_0001>

<llo_original>
// kernel: tpu_custom_call.1
$region0: #{tpu_custom_call.1}
  #allocation0 [shape = 'u32[]', space=smem, size = 0x4, offset = 0x4, fixed_abs, tag = 'smem constant byte address 0x4 - core index']
  #allocation1 [shape = 'u32[72,128]{1,0:T(1,128)}', space=vmem, size = 0x9000, scoped, tag = 'internal scratch']
  %s0 = inlined_call_operand.vmem [shape: f32[8,1024], index: 0, kind: input, shape index: {}]
  %s1 = inlined_call_operand.vmem [shape: f32[256,8], index: 1, kind: input, shape index: {}]
  %s2 = inlined_call_operand.vmem [shape: f32[256,1], index: 2, kind: input, shape index: {}]
  %s3 = inlined_call_operand.vmem [shape: bf16[256,256], index: 3, kind: input, shape index: {}]
  %s4 = inlined_call_operand.vmem [shape: f32[256,1], index: 4, kind: input, shape index: {}]
  %s5 = inlined_call_operand.vmem [shape: bf16[256,256], index: 5, kind: input, shape index: {}]
  %s6 = inlined_call_operand.vmem [shape: f32[256,1], index: 6, kind: input, shape index: {}]
  %s7 = inlined_call_operand.vmem [shape: f32[256,1], index: 7, kind: input, shape index: {}]
  %s8 = inlined_call_operand.hbm [shape: f32[1,1024], index: 8, kind: output, shape index: {}]
  %s9 = sld [smem:[#allocation0]]
  $region42: #{tpu_custom_call.1} parent=0
    _
  %s11 = ssub.s32 1, %s9
  %s12 = scalar_select 0, %s11, %s9
  $region1: #{tpu_custom_call.1} parent=0
    #allocation2 [shape = 'u8[4096]{0}', space=vmem, size = 0x1000, scoped, tag = 'output window, operand 0, single buffered']
    #allocation3 [shape = 's32[1]{0}', space=sflag, size = 0x4, scoped, tag = 'scoped memory for tpu_custom_call.1']
    %13 = vsyncpa [#allocation3], 0
    // Predicated region
    $region2: #{tpu_custom_call.1} parent=1 // pred_check
      _
    $region3: #{tpu_custom_call.1} parent=1 // pred_check_branch
      %15 = sbr.rel (0) target = $region5
    $region4: #{tpu_custom_call.1} parent=1 // pred_region
      _
    $region5: #{tpu_custom_call.1} parent=1 // pred_fallthru
      _
    // Predicated region
    $region6: #{tpu_custom_call.1} parent=1 // pred_check
      _
    $region7: #{tpu_custom_call.1} parent=1 // pred_check_branch
      %17 = sbr.rel (0) target = $region9
    $region8: #{tpu_custom_call.1} parent=1 // pred_region
      _
    $region9: #{tpu_custom_call.1} parent=1 // pred_fallthru
      _
    // Predicated region
    $region10: #{tpu_custom_call.1} parent=1 // pred_check
      _
    $region11: #{tpu_custom_call.1} parent=1 // pred_check_branch
      %19 = sbr.rel (0) target = $region13
    $region12: #{tpu_custom_call.1} parent=1 // pred_region
      _
    $region13: #{tpu_custom_call.1} parent=1 // pred_fallthru
      _
    // Predicated region
    $region14: #{tpu_custom_call.1} parent=1 // pred_check
      _
    $region15: #{tpu_custom_call.1} parent=1 // pred_check_branch
      %21 = sbr.rel (0) target = $region17
    $region16: #{tpu_custom_call.1} parent=1 // pred_region
      _
    $region17: #{tpu_custom_call.1} parent=1 // pred_fallthru
      _
    // Predicated region
    $region18: #{tpu_custom_call.1} parent=1 // pred_check
      _
    $region19: #{tpu_custom_call.1} parent=1 // pred_check_branch
      %23 = sbr.rel (0) target = $region21
    $region20: #{tpu_custom_call.1} parent=1 // pred_region
      _
    $region21: #{tpu_custom_call.1} parent=1 // pred_fallthru
      _
    // Predicated region
    $region22: #{tpu_custom_call.1} parent=1 // pred_check
      _
    $region23: #{tpu_custom_call.1} parent=1 // pred_check_branch
      %25 = sbr.rel (0) target = $region25
    $region24: #{tpu_custom_call.1} parent=1 // pred_region
      _
    $region25: #{tpu_custom_call.1} parent=1 // pred_fallthru
      _
    // Predicated region
    $region26: #{tpu_custom_call.1} parent=1 // pred_check
      _
    $region27: #{tpu_custom_call.1} parent=1 // pred_check_branch
      %27 = sbr.rel (0) target = $region29
    $region28: #{tpu_custom_call.1} parent=1 // pred_region
      _
    $region29: #{tpu_custom_call.1} parent=1 // pred_fallthru
      _
    // Predicated region
    $region30: #{tpu_custom_call.1} parent=1 // pred_check
      _
    $region31: #{tpu_custom_call.1} parent=1 // pred_check_branch
      %29 = sbr.rel (0) target = $region33
    $region32: #{tpu_custom_call.1} parent=1 // pred_region
      _
    $region33: #{tpu_custom_call.1} parent=1 // pred_fallthru
      _
    %v30 = vld [vmem:[%s0] sm:$0xff]
    %v31 = vld [vmem:[%s0 + $0x8] sm:$0xff]
    %v32 = vld [vmem:[%s0 + $0x10] sm:$0xff]
    %v33 = vld [vmem:[%s0 + $0x18] sm:$0xff]
    %v34 = vld [vmem:[%s0 + $0x20] sm:$0xff]
    %v35 = vld [vmem:[%s0 + $0x28] sm:$0xff]
    %v36 = vld [vmem:[%s0 + $0x30] sm:$0xff]
    %v37 = vld [vmem:[%s0 + $0x38] sm:$0xff]
    %v38 = vld [vmem:[%s1] sm:$0xff]
    %v39 = vld [vmem:[%s1 + $0x8] sm:$0xff]
    %v40 = vld [vmem:[%s1 + $0x10] sm:$0xff]
    %v41 = vld [vmem:[%s1 + $0x18] sm:$0xff]
    %v42 = vld [vmem:[%s1 + $0x20] sm:$0xff]
    %v43 = vld [vmem:[%s1 + $0x28] sm:$0xff]
    %v44 = vld [vmem:[%s1 + $0x30] sm:$0xff]
    %v45 = vld [vmem:[%s1 + $0x38] sm:$0xff]
    %v46 = vld [vmem:[%s1 + $0x40] sm:$0xff]
    %v47 = vld [vmem:[%s1 + $0x48] sm:$0xff]
    %v48 = vld [vmem:[%s1 + $0x50] sm:$0xff]
    %v49 = vld [vmem:[%s1 + $0x58] sm:$0xff]
    %v50 = vld [vmem:[%s1 + $0x60] sm:$0xff]
    %v51 = vld [vmem:[%s1 + $0x68] sm:$0xff]
    %v52 = vld [vmem:[%s1 + $0x70] sm:$0xff]
    %v53 = vld [vmem:[%s1 + $0x78] sm:$0xff]
    %v54 = vld [vmem:[%s1 + $0x80] sm:$0xff]
    %v55 = vld [vmem:[%s1 + $0x88] sm:$0xff]
    %v56 = vld [vmem:[%s1 + $0x90] sm:$0xff]
    %v57 = vld [vmem:[%s1 + $0x98] sm:$0xff]
    %v58 = vld [vmem:[%s1 + $0xa0] sm:$0xff]
    %v59 = vld [vmem:[%s1 + $0xa8] sm:$0xff]
    %v60 = vld [vmem:[%s1 + $0xb0] sm:$0xff]
    %v61 = vld [vmem:[%s1 + $0xb8] sm:$0xff]
    %v62 = vld [vmem:[%s1 + $0xc0] sm:$0xff]
    %v63 = vld [vmem:[%s1 + $0xc8] sm:$0xff]
    %v64 = vld [vmem:[%s1 + $0xd0] sm:$0xff]
    %v65 = vld [vmem:[%s1 + $0xd8] sm:$0xff]
    %v66 = vld [vmem:[%s1 + $0xe0] sm:$0xff]
    %v67 = vld [vmem:[%s1 + $0xe8] sm:$0xff]
    %v68 = vld [vmem:[%s1 + $0xf0] sm:$0xff]
    %v69 = vld [vmem:[%s1 + $0xf8] sm:$0xff]
    %v70 = vld [vmem:[%s2] sm:$0xff]
    %v71 = vld [vmem:[%s2 + $0x8] sm:$0xff]
    %v72 = vld [vmem:[%s2 + $0x10] sm:$0xff]
    %v73 = vld [vmem:[%s2 + $0x18] sm:$0xff]
    %v74 = vld [vmem:[%s2 + $0x20] sm:$0xff]
    %v75 = vld [vmem:[%s2 + $0x28] sm:$0xff]
    %v76 = vld [vmem:[%s2 + $0x30] sm:$0xff]
    %v77 = vld [vmem:[%s2 + $0x38] sm:$0xff]
    %v78 = vld [vmem:[%s2 + $0x40] sm:$0xff]
    %v79 = vld [vmem:[%s2 + $0x48] sm:$0xff]
    %v80 = vld [vmem:[%s2 + $0x50] sm:$0xff]
    %v81 = vld [vmem:[%s2 + $0x58] sm:$0xff]
    %v82 = vld [vmem:[%s2 + $0x60] sm:$0xff]
    %v83 = vld [vmem:[%s2 + $0x68] sm:$0xff]
    %v84 = vld [vmem:[%s2 + $0x70] sm:$0xff]
    %v85 = vld [vmem:[%s2 + $0x78] sm:$0xff]
    %v86 = vld [vmem:[%s2 + $0x80] sm:$0xff]
    %v87 = vld [vmem:[%s2 + $0x88] sm:$0xff]
    %v88 = vld [vmem:[%s2 + $0x90] sm:$0xff]
    %v89 = vld [vmem:[%s2 + $0x98] sm:$0xff]
    %v90 = vld [vmem:[%s2 + $0xa0] sm:$0xff]
    %v91 = vld [vmem:[%s2 + $0xa8] sm:$0xff]
    %v92 = vld [vmem:[%s2 + $0xb0] sm:$0xff]
    %v93 = vld [vmem:[%s2 + $0xb8] sm:$0xff]
    %v94 = vld [vmem:[%s2 + $0xc0] sm:$0xff]
    %v95 = vld [vmem:[%s2 + $0xc8] sm:$0xff]
    %v96 = vld [vmem:[%s2 + $0xd0] sm:$0xff]
    %v97 = vld [vmem:[%s2 + $0xd8] sm:$0xff]
    %v98 = vld [vmem:[%s2 + $0xe0] sm:$0xff]
    %v99 = vld [vmem:[%s2 + $0xe8] sm:$0xff]
    %v100 = vld [vmem:[%s2 + $0xf0] sm:$0xff]
    %v101 = vld [vmem:[%s2 + $0xf8] sm:$0xff]
    %103 = vset.pattern.permute.xlu0 0
    %104 = vperm.xlu0 %103, %v70
    %v105 = vpop.permute.xlu0 %104
    %108 = vset.pattern.permute.xlu0 0
    %109 = vperm.xlu0 %108, %v71
    %v110 = vpop.permute.xlu0 %109
    %113 = vset.pattern.permute.xlu0 0
    %114 = vperm.xlu0 %113, %v72
    %v115 = vpop.permute.xlu0 %114
    %118 = vset.pattern.permute.xlu0 0
    %119 = vperm.xlu0 %118, %v73
    %v120 = vpop.permute.xlu0 %119
    %123 = vset.pattern.permute.xlu0 0
    %124 = vperm.xlu0 %123, %v74
    %v125 = vpop.permute.xlu0 %124
    %128 = vset.pattern.permute.xlu0 0
    %129 = vperm.xlu0 %128, %v75
    %v130 = vpop.permute.xlu0 %129
    %133 = vset.pattern.permute.xlu0 0
    %134 = vperm.xlu0 %133, %v76
    %v135 = vpop.permute.xlu0 %134
    %138 = vset.pattern.permute.xlu0 0
    %139 = vperm.xlu0 %138, %v77
    %v140 = vpop.permute.xlu0 %139
    %143 = vset.pattern.permute.xlu0 0
    %144 = vperm.xlu0 %143, %v78
    %v145 = vpop.permute.xlu0 %144
    %148 = vset.pattern.permute.xlu0 0
    %149 = vperm.xlu0 %148, %v79
    %v150 = vpop.permute.xlu0 %149
    %153 = vset.pattern.permute.xlu0 0
    %154 = vperm.xlu0 %153, %v80
    %v155 = vpop.permute.xlu0 %154
    %158 = vset.pattern.permute.xlu0 0
    %159 = vperm.xlu0 %158, %v81
    %v160 = vpop.permute.xlu0 %159
    %163 = vset.pattern.permute.xlu0 0
    %164 = vperm.xlu0 %163, %v82
    %v165 = vpop.permute.xlu0 %164
    %168 = vset.pattern.permute.xlu0 0
    %169 = vperm.xlu0 %168, %v83
    %v170 = vpop.permute.xlu0 %169
    %173 = vset.pattern.permute.xlu0 0
    %174 = vperm.xlu0 %173, %v84
    %v175 = vpop.permute.xlu0 %174
    %178 = vset.pattern.permute.xlu0 0
    %179 = vperm.xlu0 %178, %v85
    %v180 = vpop.permute.xlu0 %179
    %183 = vset.pattern.permute.xlu0 0
    %184 = vperm.xlu0 %183, %v86
    %v185 = vpop.permute.xlu0 %184
    %188 = vset.pattern.permute.xlu0 0
    %189 = vperm.xlu0 %188, %v87
    %v190 = vpop.permute.xlu0 %189
    %193 = vset.pattern.permute.xlu0 0
    %194 = vperm.xlu0 %193, %v88
    %v195 = vpop.permute.xlu0 %194
    %198 = vset.pattern.permute.xlu0 0
    %199 = vperm.xlu0 %198, %v89
    %v200 = vpop.permute.xlu0 %199
    %203 = vset.pattern.permute.xlu0 0
    %204 = vperm.xlu0 %203, %v90
    %v205 = vpop.permute.xlu0 %204
    %208 = vset.pattern.permute.xlu0 0
    %209 = vperm.xlu0 %208, %v91
    %v210 = vpop.permute.xlu0 %209
    %213 = vset.pattern.permute.xlu0 0
    %214 = vperm.xlu0 %213, %v92
    %v215 = vpop.permute.xlu0 %214
    %218 = vset.pattern.permute.xlu0 0
    %219 = vperm.xlu0 %218, %v93
    %v220 = vpop.permute.xlu0 %219
    %223 = vset.pattern.permute.xlu0 0
    %224 = vperm.xlu0 %223, %v94
    %v225 = vpop.permute.xlu0 %224
    %228 = vset.pattern.permute.xlu0 0
    %229 = vperm.xlu0 %228, %v95
    %v230 = vpop.permute.xlu0 %229
    %233 = vset.pattern.permute.xlu0 0
    %234 = vperm.xlu0 %233, %v96
    %v235 = vpop.permute.xlu0 %234
    %238 = vset.pattern.permute.xlu0 0
    %239 = vperm.xlu0 %238, %v97
    %v240 = vpop.permute.xlu0 %239
    %243 = vset.pattern.permute.xlu0 0
    %244 = vperm.xlu0 %243, %v98
    %v245 = vpop.permute.xlu0 %244
    %248 = vset.pattern.permute.xlu0 0
    %249 = vperm.xlu0 %248, %v99
    %v250 = vpop.permute.xlu0 %249
    %253 = vset.pattern.permute.xlu0 0
    %254 = vperm.xlu0 %253, %v100
    %v255 = vpop.permute.xlu0 %254
    %258 = vset.pattern.permute.xlu0 0
    %259 = vperm.xlu0 %258, %v101
    %v260 = vpop.permute.xlu0 %259
    %vm262 = vcmask 64512
    %v264 = vsel %vm262, %v38, 0
    %v267 = vsel %vm262, %v39, 0
    %v270 = vsel %vm262, %v40, 0
    %v273 = vsel %vm262, %v41, 0
    %v276 = vsel %vm262, %v42, 0
    %v279 = vsel %vm262, %v43, 0
    %v282 = vsel %vm262, %v44, 0
    %v285 = vsel %vm262, %v45, 0
    %v288 = vsel %vm262, %v46, 0
    %v291 = vsel %vm262, %v47, 0
    %v294 = vsel %vm262, %v48, 0
    %v297 = vsel %vm262, %v49, 0
    %v300 = vsel %vm262, %v50, 0
    %v303 = vsel %vm262, %v51, 0
    %v306 = vsel %vm262, %v52, 0
    %v309 = vsel %vm262, %v53, 0
    %v312 = vsel %vm262, %v54, 0
    %v315 = vsel %vm262, %v55, 0
    %v318 = vsel %vm262, %v56, 0
    %v321 = vsel %vm262, %v57, 0
    %v324 = vsel %vm262, %v58, 0
    %v327 = vsel %vm262, %v59, 0
    %v330 = vsel %vm262, %v60, 0
    %v333 = vsel %vm262, %v61, 0
    %v336 = vsel %vm262, %v62, 0
    %v339 = vsel %vm262, %v63, 0
    %v342 = vsel %vm262, %v64, 0
    %v345 = vsel %vm262, %v65, 0
    %v348 = vsel %vm262, %v66, 0
    %v351 = vsel %vm262, %v67, 0
    %v354 = vsel %vm262, %v68, 0
    %v357 = vsel %vm262, %v69, 0
    %359 = vmatpush.msra.mxu0 0.0
    %360 = vmatpush.msra.mxu0 0.0
    %361 = vmatpush.msra.mxu0 0.0
    %362 = vmatpush.msra.mxu0 0.0
    %363 = vmatpush.msra.mxu0 0.0
    %364 = vmatpush.msra.mxu0 0.0
    %365 = vmatpush.msra.mxu0 0.0
    %366 = vmatpush.msra.mxu0 0.0
    %367 = vmatpush.msra.mxu0 0.0
    %368 = vmatpush.msra.mxu0 0.0
    %369 = vmatpush.msra.mxu0 0.0
    %370 = vmatpush.msra.mxu0 0.0
    %371 = vmatpush.msra.mxu0 0.0
    %372 = vmatpush.msra.mxu0 0.0
    %373 = vmatpush.msra.mxu0 0.0
    %374 = vmatpush.msra.mxu0 %v30
    %375 = vmatmul.f32.gmra.mxu0 %v264
    %v376 = vpop.f32.mrf.mxu0
    %v377 = vadd.f32 %v105, %v376
    %378 = vmatmul.f32.gmra.mxu0 %v267
    %v379 = vpop.f32.mrf.mxu0
    %v380 = vadd.f32 %v110, %v379
    %381 = vmatmul.f32.gmra.mxu0 %v270
    %v382 = vpop.f32.mrf.mxu0
    %v383 = vadd.f32 %v115, %v382
    %384 = vmatmul.f32.gmra.mxu0 %v273
    %v385 = vpop.f32.mrf.mxu0
    %v386 = vadd.f32 %v120, %v385
    %387 = vmatmul.f32.gmra.mxu0 %v276
    %v388 = vpop.f32.mrf.mxu0
    %v389 = vadd.f32 %v125, %v388
    %390 = vmatmul.f32.gmra.mxu0 %v279
    %v391 = vpop.f32.mrf.mxu0
    %v392 = vadd.f32 %v130, %v391
    %393 = vmatmul.f32.gmra.mxu0 %v282
    %v394 = vpop.f32.mrf.mxu0
    %v395 = vadd.f32 %v135, %v394
    %396 = vmatmul.f32.gmra.mxu0 %v285
    %v397 = vpop.f32.mrf.mxu0
    %v398 = vadd.f32 %v140, %v397
    %399 = vmatmul.f32.gmra.mxu0 %v288
    %v400 = vpop.f32.mrf.mxu0
    %v401 = vadd.f32 %v145, %v400
    %402 = vmatmul.f32.gmra.mxu0 %v291
    %v403 = vpop.f32.mrf.mxu0
    %v404 = vadd.f32 %v150, %v403
    %405 = vmatmul.f32.gmra.mxu0 %v294
    %v406 = vpop.f32.mrf.mxu0
    %v407 = vadd.f32 %v155, %v406
    %408 = vmatmul.f32.gmra.mxu0 %v297
    %v409 = vpop.f32.mrf.mxu0
    %v410 = vadd.f32 %v160, %v409
    %411 = vmatmul.f32.gmra.mxu0 %v300
    %v412 = vpop.f32.mrf.mxu0
    %v413 = vadd.f32 %v165, %v412
    %414 = vmatmul.f32.gmra.mxu0 %v303
    %v415 = vpop.f32.mrf.mxu0
    %v416 = vadd.f32 %v170, %v415
    %417 = vmatmul.f32.gmra.mxu0 %v306
    %v418 = vpop.f32.mrf.mxu0
    %v419 = vadd.f32 %v175, %v418
    %420 = vmatmul.f32.gmra.mxu0 %v309
    %v421 = vpop.f32.mrf.mxu0
    %v422 = vadd.f32 %v180, %v421
    %423 = vmatmul.f32.gmra.mxu0 %v312
    %v424 = vpop.f32.mrf.mxu0
    %v425 = vadd.f32 %v185, %v424
    %426 = vmatmul.f32.gmra.mxu0 %v315
    %v427 = vpop.f32.mrf.mxu0
    %v428 = vadd.f32 %v190, %v427
    %429 = vmatmul.f32.gmra.mxu0 %v318
    %v430 = vpop.f32.mrf.mxu0
    %v431 = vadd.f32 %v195, %v430
    %432 = vmatmul.f32.gmra.mxu0 %v321
    %v433 = vpop.f32.mrf.mxu0
    %v434 = vadd.f32 %v200, %v433
    %435 = vmatmul.f32.gmra.mxu0 %v324
    %v436 = vpop.f32.mrf.mxu0
    %v437 = vadd.f32 %v205, %v436
    %438 = vmatmul.f32.gmra.mxu0 %v327
    %v439 = vpop.f32.mrf.mxu0
    %v440 = vadd.f32 %v210, %v439
    %441 = vmatmul.f32.gmra.mxu0 %v330
    %v442 = vpop.f32.mrf.mxu0
    %v443 = vadd.f32 %v215, %v442
    %444 = vmatmul.f32.gmra.mxu0 %v333
    %v445 = vpop.f32.mrf.mxu0
    %v446 = vadd.f32 %v220, %v445
    %447 = vmatmul.f32.gmra.mxu0 %v336
    %v448 = vpop.f32.mrf.mxu0
    %v449 = vadd.f32 %v225, %v448
    %450 = vmatmul.f32.gmra.mxu0 %v339
    %v451 = vpop.f32.mrf.mxu0
    %v452 = vadd.f32 %v230, %v451
    %453 = vmatmul.f32.gmra.mxu0 %v342
    %v454 = vpop.f32.mrf.mxu0
    %v455 = vadd.f32 %v235, %v454
    %456 = vmatmul.f32.gmra.mxu0 %v345
    %v457 = vpop.f32.mrf.mxu0
    %v458 = vadd.f32 %v240, %v457
    %459 = vmatmul.f32.gmra.mxu0 %v348
    %v460 = vpop.f32.mrf.mxu0
    %v461 = vadd.f32 %v245, %v460
    %462 = vmatmul.f32.gmra.mxu0 %v351
    %v463 = vpop.f32.mrf.mxu0
    %v464 = vadd.f32 %v250, %v463
    %465 = vmatmul.f32.gmra.mxu0 %v354
    %v466 = vpop.f32.mrf.mxu0
    %v467 = vadd.f32 %v255, %v466
    %468 = vmatmul.f32.gmra.mxu0 %v357
    %v469 = vpop.f32.mrf.mxu0
    %v470 = vadd.f32 %v260, %v469
    %471 = vdwg.mxu0
    %472 = vmatpush.msra.mxu0 0.0
    %473 = vmatpush.msra.mxu0 0.0
    %474 = vmatpush.msra.mxu0 0.0
    %475 = vmatpush.msra.mxu0 0.0
    %476 = vmatpush.msra.mxu0 0.0
    %477 = vmatpush.msra.mxu0 0.0
    %478 = vmatpush.msra.mxu0 0.0
    %479 = vmatpush.msra.mxu0 0.0
    %480 = vmatpush.msra.mxu0 0.0
    %481 = vmatpush.msra.mxu0 0.0
    %482 = vmatpush.msra.mxu0 0.0
    %483 = vmatpush.msra.mxu0 0.0
    %484 = vmatpush.msra.mxu0 0.0
    %485 = vmatpush.msra.mxu0 0.0
    %486 = vmatpush.msra.mxu0 0.0
    %487 = vmatpush.msra.mxu0 %v31
    %488 = vmatmul.f32.gmra.mxu0 %v264
    %v489 = vpop.f32.mrf.mxu0
    %v490 = vadd.f32 %v105, %v489
    %491 = vmatmul.f32.gmra.mxu0 %v267
    %v492 = vpop.f32.mrf.mxu0
    %v493 = vadd.f32 %v110, %v492
    %494 = vmatmul.f32.gmra.mxu0 %v270
    %v495 = vpop.f32.mrf.mxu0
    %v496 = vadd.f32 %v115, %v495
    %497 = vmatmul.f32.gmra.mxu0 %v273
    %v498 = vpop.f32.mrf.mxu0
    %v499 = vadd.f32 %v120, %v498
    %500 = vmatmul.f32.gmra.mxu0 %v276
    %v501 = vpop.f32.mrf.mxu0
    %v502 = vadd.f32 %v125, %v501
    %503 = vmatmul.f32.gmra.mxu0 %v279
    %v504 = vpop.f32.mrf.mxu0
    %v505 = vadd.f32 %v130, %v504
    %506 = vmatmul.f32.gmra.mxu0 %v282
    %v507 = vpop.f32.mrf.mxu0
    %v508 = vadd.f32 %v135, %v507
    %509 = vmatmul.f32.gmra.mxu0 %v285
    %v510 = vpop.f32.mrf.mxu0
    %v511 = vadd.f32 %v140, %v510
    %512 = vmatmul.f32.gmra.mxu0 %v288
    %v513 = vpop.f32.mrf.mxu0
    %v514 = vadd.f32 %v145, %v513
    %515 = vmatmul.f32.gmra.mxu0 %v291
    %v516 = vpop.f32.mrf.mxu0
    %v517 = vadd.f32 %v150, %v516
    %518 = vmatmul.f32.gmra.mxu0 %v294
    %v519 = vpop.f32.mrf.mxu0
    %v520 = vadd.f32 %v155, %v519
    %521 = vmatmul.f32.gmra.mxu0 %v297
    %v522 = vpop.f32.mrf.mxu0
    %v523 = vadd.f32 %v160, %v522
    %524 = vmatmul.f32.gmra.mxu0 %v300
    %v525 = vpop.f32.mrf.mxu0
    %v526 = vadd.f32 %v165, %v525
    %527 = vmatmul.f32.gmra.mxu0 %v303
    %v528 = vpop.f32.mrf.mxu0
    %v529 = vadd.f32 %v170, %v528
    %530 = vmatmul.f32.gmra.mxu0 %v306
    %v531 = vpop.f32.mrf.mxu0
    %v532 = vadd.f32 %v175, %v531
    %533 = vmatmul.f32.gmra.mxu0 %v309
    %v534 = vpop.f32.mrf.mxu0
    %v535 = vadd.f32 %v180, %v534
    %536 = vmatmul.f32.gmra.mxu0 %v312
    %v537 = vpop.f32.mrf.mxu0
    %v538 = vadd.f32 %v185, %v537
    %539 = vmatmul.f32.gmra.mxu0 %v315
    %v540 = vpop.f32.mrf.mxu0
    %v541 = vadd.f32 %v190, %v540
    %542 = vmatmul.f32.gmra.mxu0 %v318
    %v543 = vpop.f32.mrf.mxu0
    %v544 = vadd.f32 %v195, %v543
    %545 = vmatmul.f32.gmra.mxu0 %v321
    %v546 = vpop.f32.mrf.mxu0
    %v547 = vadd.f32 %v200, %v546
    %548 = vmatmul.f32.gmra.mxu0 %v324
    %v549 = vpop.f32.mrf.mxu0
    %v550 = vadd.f32 %v205, %v549
    %551 = vmatmul.f32.gmra.mxu0 %v327
    %v552 = vpop.f32.mrf.mxu0
    %v553 = vadd.f32 %v210, %v552
    %554 = vmatmul.f32.gmra.mxu0 %v330
    %v555 = vpop.f32.mrf.mxu0
    %v556 = vadd.f32 %v215, %v555
    %557 = vmatmul.f32.gmra.mxu0 %v333
    %v558 = vpop.f32.mrf.mxu0
    %v559 = vadd.f32 %v220, %v558
    %560 = vmatmul.f32.gmra.mxu0 %v336
    %v561 = vpop.f32.mrf.mxu0
    %v562 = vadd.f32 %v225, %v561
    %563 = vmatmul.f32.gmra.mxu0 %v339
    %v564 = vpop.f32.mrf.mxu0
    %v565 = vadd.f32 %v230, %v564
    %566 = vmatmul.f32.gmra.mxu0 %v342
    %v567 = vpop.f32.mrf.mxu0
    %v568 = vadd.f32 %v235, %v567
    %569 = vmatmul.f32.gmra.mxu0 %v345
    %v570 = vpop.f32.mrf.mxu0
    %v571 = vadd.f32 %v240, %v570
    %572 = vmatmul.f32.gmra.mxu0 %v348
    %v573 = vpop.f32.mrf.mxu0
    %v574 = vadd.f32 %v245, %v573
    %575 = vmatmul.f32.gmra.mxu0 %v351
    %v576 = vpop.f32.mrf.mxu0
    %v577 = vadd.f32 %v250, %v576
    %578 = vmatmul.f32.gmra.mxu0 %v354
    %v579 = vpop.f32.mrf.mxu0
    %v580 = vadd.f32 %v255, %v579
    %581 = vmatmul.f32.gmra.mxu0 %v357
    %v582 = vpop.f32.mrf.mxu0
    %v583 = vadd.f32 %v260, %v582
    %584 = vdwg.mxu0
    %585 = vmatpush.msra.mxu0 0.0
    %586 = vmatpush.msra.mxu0 0.0
    %587 = vmatpush.msra.mxu0 0.0
    %588 = vmatpush.msra.mxu0 0.0
    %589 = vmatpush.msra.mxu0 0.0
    %590 = vmatpush.msra.mxu0 0.0
    %591 = vmatpush.msra.mxu0 0.0
    %592 = vmatpush.msra.mxu0 0.0
    %593 = vmatpush.msra.mxu0 0.0
    %594 = vmatpush.msra.mxu0 0.0
    %595 = vmatpush.msra.mxu0 0.0
    %596 = vmatpush.msra.mxu0 0.0
    %597 = vmatpush.msra.mxu0 0.0
    %598 = vmatpush.msra.mxu0 0.0
    %599 = vmatpush.msra.mxu0 0.0
    %600 = vmatpush.msra.mxu0 %v32
    %601 = vmatmul.f32.gmra.mxu0 %v264
    %v602 = vpop.f32.mrf.mxu0
    %v603 = vadd.f32 %v105, %v602
    %604 = vmatmul.f32.gmra.mxu0 %v267
    %v605 = vpop.f32.mrf.mxu0
    %v606 = vadd.f32 %v110, %v605
    %607 = vmatmul.f32.gmra.mxu0 %v270
    %v608 = vpop.f32.mrf.mxu0
    %v609 = vadd.f32 %v115, %v608
    %610 = vmatmul.f32.gmra.mxu0 %v273
    %v611 = vpop.f32.mrf.mxu0
    %v612 = vadd.f32 %v120, %v611
    %613 = vmatmul.f32.gmra.mxu0 %v276
    %v614 = vpop.f32.mrf.mxu0
    %v615 = vadd.f32 %v125, %v614
    %616 = vmatmul.f32.gmra.mxu0 %v279
    %v617 = vpop.f32.mrf.mxu0
    %v618 = vadd.f32 %v130, %v617
    %619 = vmatmul.f32.gmra.mxu0 %v282
    %v620 = vpop.f32.mrf.mxu0
    %v621 = vadd.f32 %v135, %v620
    %622 = vmatmul.f32.gmra.mxu0 %v285
    %v623 = vpop.f32.mrf.mxu0
    %v624 = vadd.f32 %v140, %v623
    %625 = vmatmul.f32.gmra.mxu0 %v288
    %v626 = vpop.f32.mrf.mxu0
    %v627 = vadd.f32 %v145, %v626
    %628 = vmatmul.f32.gmra.mxu0 %v291
    %v629 = vpop.f32.mrf.mxu0
    %v630 = vadd.f32 %v150, %v629
    %631 = vmatmul.f32.gmra.mxu0 %v294
    %v632 = vpop.f32.mrf.mxu0
    %v633 = vadd.f32 %v155, %v632
    %634 = vmatmul.f32.gmra.mxu0 %v297
    %v635 = vpop.f32.mrf.mxu0
    %v636 = vadd.f32 %v160, %v635
    %637 = vmatmul.f32.gmra.mxu0 %v300
    %v638 = vpop.f32.mrf.mxu0
    %v639 = vadd.f32 %v165, %v638
    %640 = vmatmul.f32.gmra.mxu0 %v303
    %v641 = vpop.f32.mrf.mxu0
    %v642 = vadd.f32 %v170, %v641
    %643 = vmatmul.f32.gmra.mxu0 %v306
    %v644 = vpop.f32.mrf.mxu0
    %v645 = vadd.f32 %v175, %v644
    %646 = vmatmul.f32.gmra.mxu0 %v309
    %v647 = vpop.f32.mrf.mxu0
    %v648 = vadd.f32 %v180, %v647
    %649 = vmatmul.f32.gmra.mxu0 %v312
    %v650 = vpop.f32.mrf.mxu0
    %v651 = vadd.f32 %v185, %v650
    %652 = vmatmul.f32.gmra.mxu0 %v315
    %v653 = vpop.f32.mrf.mxu0
    %v654 = vadd.f32 %v190, %v653
    %655 = vmatmul.f32.gmra.mxu0 %v318
    %v656 = vpop.f32.mrf.mxu0
    %v657 = vadd.f32 %v195, %v656
    %658 = vmatmul.f32.gmra.mxu0 %v321
    %v659 = vpop.f32.mrf.mxu0
    %v660 = vadd.f32 %v200, %v659
    %661 = vmatmul.f32.gmra.mxu0 %v324
    %v662 = vpop.f32.mrf.mxu0
    %v663 = vadd.f32 %v205, %v662
    %664 = vmatmul.f32.gmra.mxu0 %v327
    %v665 = vpop.f32.mrf.mxu0
    %v666 = vadd.f32 %v210, %v665
    %667 = vmatmul.f32.gmra.mxu0 %v330
    %v668 = vpop.f32.mrf.mxu0
    %v669 = vadd.f32 %v215, %v668
    %670 = vmatmul.f32.gmra.mxu0 %v333
    %v671 = vpop.f32.mrf.mxu0
    %v672 = vadd.f32 %v220, %v671
    %673 = vmatmul.f32.gmra.mxu0 %v336
    %v674 = vpop.f32.mrf.mxu0
    %v675 = vadd.f32 %v225, %v674
    %676 = vmatmul.f32.gmra.mxu0 %v339
    %v677 = vpop.f32.mrf.mxu0
    %v678 = vadd.f32 %v230, %v677
    %679 = vmatmul.f32.gmra.mxu0 %v342
    %v680 = vpop.f32.mrf.mxu0
    %v681 = vadd.f32 %v235, %v680
    %682 = vmatmul.f32.gmra.mxu0 %v345
    %v683 = vpop.f32.mrf.mxu0
    %v684 = vadd.f32 %v240, %v683
    %685 = vmatmul.f32.gmra.mxu0 %v348
    %v686 = vpop.f32.mrf.mxu0
    %v687 = vadd.f32 %v245, %v686
    %688 = vmatmul.f32.gmra.mxu0 %v351
    %v689 = vpop.f32.mrf.mxu0
    %v690 = vadd.f32 %v250, %v689
    %691 = vmatmul.f32.gmra.mxu0 %v354
    %v692 = vpop.f32.mrf.mxu0
    %v693 = vadd.f32 %v255, %v692
    %694 = vmatmul.f32.gmra.mxu0 %v357
    %v695 = vpop.f32.mrf.mxu0
    %v696 = vadd.f32 %v260, %v695
    %697 = vdwg.mxu0
    %698 = vmatpush.msra.mxu0 0.0
    %699 = vmatpush.msra.mxu0 0.0
    %700 = vmatpush.msra.mxu0 0.0
    %701 = vmatpush.msra.mxu0 0.0
    %702 = vmatpush.msra.mxu0 0.0
    %703 = vmatpush.msra.mxu0 0.0
    %704 = vmatpush.msra.mxu0 0.0
    %705 = vmatpush.msra.mxu0 0.0
    %706 = vmatpush.msra.mxu0 0.0
    %707 = vmatpush.msra.mxu0 0.0
    %708 = vmatpush.msra.mxu0 0.0
    %709 = vmatpush.msra.mxu0 0.0
    %710 = vmatpush.msra.mxu0 0.0
    %711 = vmatpush.msra.mxu0 0.0
    %712 = vmatpush.msra.mxu0 0.0
    %713 = vmatpush.msra.mxu0 %v33
    %714 = vmatmul.f32.gmra.mxu0 %v264
    %v715 = vpop.f32.mrf.mxu0
    %v716 = vadd.f32 %v105, %v715
    %717 = vmatmul.f32.gmra.mxu0 %v267
    %v718 = vpop.f32.mrf.mxu0
    %v719 = vadd.f32 %v110, %v718
    %720 = vmatmul.f32.gmra.mxu0 %v270
    %v721 = vpop.f32.mrf.mxu0
    %v722 = vadd.f32 %v115, %v721
    %723 = vmatmul.f32.gmra.mxu0 %v273
    %v724 = vpop.f32.mrf.mxu0
    %v725 = vadd.f32 %v120, %v724
    %726 = vmatmul.f32.gmra.mxu0 %v276
    %v727 = vpop.f32.mrf.mxu0
    %v728 = vadd.f32 %v125, %v727
    %729 = vmatmul.f32.gmra.mxu0 %v279
    %v730 = vpop.f32.mrf.mxu0
    %v731 = vadd.f32 %v130, %v730
    %732 = vmatmul.f32.gmra.mxu0 %v282
    %v733 = vpop.f32.mrf.mxu0
    %v734 = vadd.f32 %v135, %v733
    %735 = vmatmul.f32.gmra.mxu0 %v285
    %v736 = vpop.f32.mrf.mxu0
    %v737 = vadd.f32 %v140, %v736
    %738 = vmatmul.f32.gmra.mxu0 %v288
    %v739 = vpop.f32.mrf.mxu0
    %v740 = vadd.f32 %v145, %v739
    %741 = vmatmul.f32.gmra.mxu0 %v291
    %v742 = vpop.f32.mrf.mxu0
    %v743 = vadd.f32 %v150, %v742
    %744 = vmatmul.f32.gmra.mxu0 %v294
    %v745 = vpop.f32.mrf.mxu0
    %v746 = vadd.f32 %v155, %v745
    %747 = vmatmul.f32.gmra.mxu0 %v297
    %v748 = vpop.f32.mrf.mxu0
    %v749 = vadd.f32 %v160, %v748
    %750 = vmatmul.f32.gmra.mxu0 %v300
    %v751 = vpop.f32.mrf.mxu0
    %v752 = vadd.f32 %v165, %v751
    %753 = vmatmul.f32.gmra.mxu0 %v303
    %v754 = vpop.f32.mrf.mxu0
    %v755 = vadd.f32 %v170, %v754
    %756 = vmatmul.f32.gmra.mxu0 %v306
    %v757 = vpop.f32.mrf.mxu0
    %v758 = vadd.f32 %v175, %v757
    %759 = vmatmul.f32.gmra.mxu0 %v309
    %v760 = vpop.f32.mrf.mxu0
    %v761 = vadd.f32 %v180, %v760
    %762 = vmatmul.f32.gmra.mxu0 %v312
    %v763 = vpop.f32.mrf.mxu0
    %v764 = vadd.f32 %v185, %v763
    %765 = vmatmul.f32.gmra.mxu0 %v315
    %v766 = vpop.f32.mrf.mxu0
    %v767 = vadd.f32 %v190, %v766
    %768 = vmatmul.f32.gmra.mxu0 %v318
    %v769 = vpop.f32.mrf.mxu0
    %v770 = vadd.f32 %v195, %v769
    %771 = vmatmul.f32.gmra.mxu0 %v321
    %v772 = vpop.f32.mrf.mxu0
    %v773 = vadd.f32 %v200, %v772
    %774 = vmatmul.f32.gmra.mxu0 %v324
    %v775 = vpop.f32.mrf.mxu0
    %v776 = vadd.f32 %v205, %v775
    %777 = vmatmul.f32.gmra.mxu0 %v327
    %v778 = vpop.f32.mrf.mxu0
    %v779 = vadd.f32 %v210, %v778
    %780 = vmatmul.f32.gmra.mxu0 %v330
    %v781 = vpop.f32.mrf.mxu0
    %v782 = vadd.f32 %v215, %v781
    %783 = vmatmul.f32.gmra.mxu0 %v333
    %v784 = vpop.f32.mrf.mxu0
    %v785 = vadd.f32 %v220, %v784
    %786 = vmatmul.f32.gmra.mxu0 %v336
    %v787 = vpop.f32.mrf.mxu0
    %v788 = vadd.f32 %v225, %v787
    %789 = vmatmul.f32.gmra.mxu0 %v339
    %v790 = vpop.f32.mrf.mxu0
    %v791 = vadd.f32 %v230, %v790
    %792 = vmatmul.f32.gmra.mxu0 %v342
    %v793 = vpop.f32.mrf.mxu0
    %v794 = vadd.f32 %v235, %v793
    %795 = vmatmul.f32.gmra.mxu0 %v345
    %v796 = vpop.f32.mrf.mxu0
    %v797 = vadd.f32 %v240, %v796
    %798 = vmatmul.f32.gmra.mxu0 %v348
    %v799 = vpop.f32.mrf.mxu0
    %v800 = vadd.f32 %v245, %v799
    %801 = vmatmul.f32.gmra.mxu0 %v351
    %v802 = vpop.f32.mrf.mxu0
    %v803 = vadd.f32 %v250, %v802
    %804 = vmatmul.f32.gmra.mxu0 %v354
    %v805 = vpop.f32.mrf.mxu0
    %v806 = vadd.f32 %v255, %v805
    %807 = vmatmul.f32.gmra.mxu0 %v357
    %v808 = vpop.f32.mrf.mxu0
    %v809 = vadd.f32 %v260, %v808
    %810 = vdwg.mxu0
    %811 = vmatpush.msra.mxu0 0.0
    %812 = vmatpush.msra.mxu0 0.0
    %813 = vmatpush.msra.mxu0 0.0
    %814 = vmatpush.msra.mxu0 0.0
    %815 = vmatpush.msra.mxu0 0.0
    %816 = vmatpush.msra.mxu0 0.0
    %817 = vmatpush.msra.mxu0 0.0
    %818 = vmatpush.msra.mxu0 0.0
    %819 = vmatpush.msra.mxu0 0.0
    %820 = vmatpush.msra.mxu0 0.0
    %821 = vmatpush.msra.mxu0 0.0
    %822 = vmatpush.msra.mxu0 0.0
    %823 = vmatpush.msra.mxu0 0.0
    %824 = vmatpush.msra.mxu0 0.0
    %825 = vmatpush.msra.mxu0 0.0
    %826 = vmatpush.msra.mxu0 %v34
    %827 = vmatmul.f32.gmra.mxu0 %v264
    %v828 = vpop.f32.mrf.mxu0
    %v829 = vadd.f32 %v105, %v828
    %830 = vmatmul.f32.gmra.mxu0 %v267
    %v831 = vpop.f32.mrf.mxu0
    %v832 = vadd.f32 %v110, %v831
    %833 = vmatmul.f32.gmra.mxu0 %v270
    %v834 = vpop.f32.mrf.mxu0
    %v835 = vadd.f32 %v115, %v834
    %836 = vmatmul.f32.gmra.mxu0 %v273
    %v837 = vpop.f32.mrf.mxu0
    %v838 = vadd.f32 %v120, %v837
    %839 = vmatmul.f32.gmra.mxu0 %v276
    %v840 = vpop.f32.mrf.mxu0
    %v841 = vadd.f32 %v125, %v840
    %842 = vmatmul.f32.gmra.mxu0 %v279
    %v843 = vpop.f32.mrf.mxu0
    %v844 = vadd.f32 %v130, %v843
    %845 = vmatmul.f32.gmra.mxu0 %v282
    %v846 = vpop.f32.mrf.mxu0
    %v847 = vadd.f32 %v135, %v846
    %848 = vmatmul.f32.gmra.mxu0 %v285
    %v849 = vpop.f32.mrf.mxu0
    %v850 = vadd.f32 %v140, %v849
    %851 = vmatmul.f32.gmra.mxu0 %v288
    %v852 = vpop.f32.mrf.mxu0
    %v853 = vadd.f32 %v145, %v852
    %854 = vmatmul.f32.gmra.mxu0 %v291
    %v855 = vpop.f32.mrf.mxu0
    %v856 = vadd.f32 %v150, %v855
    %857 = vmatmul.f32.gmra.mxu0 %v294
    %v858 = vpop.f32.mrf.mxu0
    %v859 = vadd.f32 %v155, %v858
    %860 = vmatmul.f32.gmra.mxu0 %v297
    %v861 = vpop.f32.mrf.mxu0
    %v862 = vadd.f32 %v160, %v861
    %863 = vmatmul.f32.gmra.mxu0 %v300
    %v864 = vpop.f32.mrf.mxu0
    %v865 = vadd.f32 %v165, %v864
    %866 = vmatmul.f32.gmra.mxu0 %v303
    %v867 = vpop.f32.mrf.mxu0
    %v868 = vadd.f32 %v170, %v867
    %869 = vmatmul.f32.gmra.mxu0 %v306
    %v870 = vpop.f32.mrf.mxu0
    %v871 = vadd.f32 %v175, %v870
    %872 = vmatmul.f32.gmra.mxu0 %v309
    %v873 = vpop.f32.mrf.mxu0
    %v874 = vadd.f32 %v180, %v873
    %875 = vmatmul.f32.gmra.mxu0 %v312
    %v876 = vpop.f32.mrf.mxu0
    %v877 = vadd.f32 %v185, %v876
    %878 = vmatmul.f32.gmra.mxu0 %v315
    %v879 = vpop.f32.mrf.mxu0
    %v880 = vadd.f32 %v190, %v879
    %881 = vmatmul.f32.gmra.mxu0 %v318
    %v882 = vpop.f32.mrf.mxu0
    %v883 = vadd.f32 %v195, %v882
    %884 = vmatmul.f32.gmra.mxu0 %v321
    %v885 = vpop.f32.mrf.mxu0
    %v886 = vadd.f32 %v200, %v885
    %887 = vmatmul.f32.gmra.mxu0 %v324
    %v888 = vpop.f32.mrf.mxu0
    %v889 = vadd.f32 %v205, %v888
    %890 = vmatmul.f32.gmra.mxu0 %v327
    %v891 = vpop.f32.mrf.mxu0
    %v892 = vadd.f32 %v210, %v891
    %893 = vmatmul.f32.gmra.mxu0 %v330
    %v894 = vpop.f32.mrf.mxu0
    %v895 = vadd.f32 %v215, %v894
    %896 = vmatmul.f32.gmra.mxu0 %v333
    %v897 = vpop.f32.mrf.mxu0
    %v898 = vadd.f32 %v220, %v897
    %899 = vmatmul.f32.gmra.mxu0 %v336
    %v900 = vpop.f32.mrf.mxu0
    %v901 = vadd.f32 %v225, %v900
    %902 = vmatmul.f32.gmra.mxu0 %v339
    %v903 = vpop.f32.mrf.mxu0
    %v904 = vadd.f32 %v230, %v903
    %905 = vmatmul.f32.gmra.mxu0 %v342
    %v906 = vpop.f32.mrf.mxu0
    %v907 = vadd.f32 %v235, %v906
    %908 = vmatmul.f32.gmra.mxu0 %v345
    %v909 = vpop.f32.mrf.mxu0
    %v910 = vadd.f32 %v240, %v909
    %911 = vmatmul.f32.gmra.mxu0 %v348
    %v912 = vpop.f32.mrf.mxu0
    %v913 = vadd.f32 %v245, %v912
    %914 = vmatmul.f32.gmra.mxu0 %v351
    %v915 = vpop.f32.mrf.mxu0
    %v916 = vadd.f32 %v250, %v915
    %917 = vmatmul.f32.gmra.mxu0 %v354
    %v918 = vpop.f32.mrf.mxu0
    %v919 = vadd.f32 %v255, %v918
    %920 = vmatmul.f32.gmra.mxu0 %v357
    %v921 = vpop.f32.mrf.mxu0
    %v922 = vadd.f32 %v260, %v921
    %923 = vdwg.mxu0
    %924 = vmatpush.msra.mxu0 0.0
    %925 = vmatpush.msra.mxu0 0.0
    %926 = vmatpush.msra.mxu0 0.0
    %927 = vmatpush.msra.mxu0 0.0
    %928 = vmatpush.msra.mxu0 0.0
    %929 = vmatpush.msra.mxu0 0.0
    %930 = vmatpush.msra.mxu0 0.0
    %931 = vmatpush.msra.mxu0 0.0
    %932 = vmatpush.msra.mxu0 0.0
    %933 = vmatpush.msra.mxu0 0.0
    %934 = vmatpush.msra.mxu0 0.0
    %935 = vmatpush.msra.mxu0 0.0
    %936 = vmatpush.msra.mxu0 0.0
    %937 = vmatpush.msra.mxu0 0.0
    %938 = vmatpush.msra.mxu0 0.0
    %939 = vmatpush.msra.mxu0 %v35
    %940 = vmatmul.f32.gmra.mxu0 %v264
    %v941 = vpop.f32.mrf.mxu0
    %v942 = vadd.f32 %v105, %v941
    %943 = vmatmul.f32.gmra.mxu0 %v267
    %v944 = vpop.f32.mrf.mxu0
    %v945 = vadd.f32 %v110, %v944
    %946 = vmatmul.f32.gmra.mxu0 %v270
    %v947 = vpop.f32.mrf.mxu0
    %v948 = vadd.f32 %v115, %v947
    %949 = vmatmul.f32.gmra.mxu0 %v273
    %v950 = vpop.f32.mrf.mxu0
    %v951 = vadd.f32 %v120, %v950
    %952 = vmatmul.f32.gmra.mxu0 %v276
    %v953 = vpop.f32.mrf.mxu0
    %v954 = vadd.f32 %v125, %v953
    %955 = vmatmul.f32.gmra.mxu0 %v279
    %v956 = vpop.f32.mrf.mxu0
    %v957 = vadd.f32 %v130, %v956
    %958 = vmatmul.f32.gmra.mxu0 %v282
    %v959 = vpop.f32.mrf.mxu0
    %v960 = vadd.f32 %v135, %v959
    %961 = vmatmul.f32.gmra.mxu0 %v285
    %v962 = vpop.f32.mrf.mxu0
    %v963 = vadd.f32 %v140, %v962
    %964 = vmatmul.f32.gmra.mxu0 %v288
    %v965 = vpop.f32.mrf.mxu0
    %v966 = vadd.f32 %v145, %v965
    %967 = vmatmul.f32.gmra.mxu0 %v291
    %v968 = vpop.f32.mrf.mxu0
    %v969 = vadd.f32 %v150, %v968
    %970 = vmatmul.f32.gmra.mxu0 %v294
    %v971 = vpop.f32.mrf.mxu0
    %v972 = vadd.f32 %v155, %v971
    %973 = vmatmul.f32.gmra.mxu0 %v297
    %v974 = vpop.f32.mrf.mxu0
    %v975 = vadd.f32 %v160, %v974
    %976 = vmatmul.f32.gmra.mxu0 %v300
    %v977 = vpop.f32.mrf.mxu0
    %v978 = vadd.f32 %v165, %v977
    %979 = vmatmul.f32.gmra.mxu0 %v303
    %v980 = vpop.f32.mrf.mxu0
    %v981 = vadd.f32 %v170, %v980
    %982 = vmatmul.f32.gmra.mxu0 %v306
    %v983 = vpop.f32.mrf.mxu0
    %v984 = vadd.f32 %v175, %v983
    %985 = vmatmul.f32.gmra.mxu0 %v309
    %v986 = vpop.f32.mrf.mxu0
    %v987 = vadd.f32 %v180, %v986
    %988 = vmatmul.f32.gmra.mxu0 %v312
    %v989 = vpop.f32.mrf.mxu0
    %v990 = vadd.f32 %v185, %v989
    %991 = vmatmul.f32.gmra.mxu0 %v315
    %v992 = vpop.f32.mrf.mxu0
    %v993 = vadd.f32 %v190, %v992
    %994 = vmatmul.f32.gmra.mxu0 %v318
    %v995 = vpop.f32.mrf.mxu0
    %v996 = vadd.f32 %v195, %v995
    %997 = vmatmul.f32.gmra.mxu0 %v321
    %v998 = vpop.f32.mrf.mxu0
    %v999 = vadd.f32 %v200, %v998
    %1000 = vmatmul.f32.gmra.mxu0 %v324
    %v1001 = vpop.f32.mrf.mxu0
    %v1002 = vadd.f32 %v205, %v1001
    %1003 = vmatmul.f32.gmra.mxu0 %v327
    %v1004 = vpop.f32.mrf.mxu0
    %v1005 = vadd.f32 %v210, %v1004
    %1006 = vmatmul.f32.gmra.mxu0 %v330
    %v1007 = vpop.f32.mrf.mxu0
    %v1008 = vadd.f32 %v215, %v1007
    %1009 = vmatmul.f32.gmra.mxu0 %v333
    %v1010 = vpop.f32.mrf.mxu0
    %v1011 = vadd.f32 %v220, %v1010
    %1012 = vmatmul.f32.gmra.mxu0 %v336
    %v1013 = vpop.f32.mrf.mxu0
    %v1014 = vadd.f32 %v225, %v1013
    %1015 = vmatmul.f32.gmra.mxu0 %v339
    %v1016 = vpop.f32.mrf.mxu0
    %v1017 = vadd.f32 %v230, %v1016
    %1018 = vmatmul.f32.gmra.mxu0 %v342
    %v1019 = vpop.f32.mrf.mxu0
    %v1020 = vadd.f32 %v235, %v1019
    %1021 = vmatmul.f32.gmra.mxu0 %v345
    %v1022 = vpop.f32.mrf.mxu0
    %v1023 = vadd.f32 %v240, %v1022
    %1024 = vmatmul.f32.gmra.mxu0 %v348
    %v1025 = vpop.f32.mrf.mxu0
    %v1026 = vadd.f32 %v245, %v1025
    %1027 = vmatmul.f32.gmra.mxu0 %v351
    %v1028 = vpop.f32.mrf.mxu0
    %v1029 = vadd.f32 %v250, %v1028
    %1030 = vmatmul.f32.gmra.mxu0 %v354
    %v1031 = vpop.f32.mrf.mxu0
    %v1032 = vadd.f32 %v255, %v1031
    %1033 = vmatmul.f32.gmra.mxu0 %v357
    %v1034 = vpop.f32.mrf.mxu0
    %v1035 = vadd.f32 %v260, %v1034
    %1036 = vdwg.mxu0
    %1037 = vmatpush.msra.mxu0 0.0
    %1038 = vmatpush.msra.mxu0 0.0
    %1039 = vmatpush.msra.mxu0 0.0
    %1040 = vmatpush.msra.mxu0 0.0
    %1041 = vmatpush.msra.mxu0 0.0
    %1042 = vmatpush.msra.mxu0 0.0
    %1043 = vmatpush.msra.mxu0 0.0
    %1044 = vmatpush.msra.mxu0 0.0
    %1045 = vmatpush.msra.mxu0 0.0
    %1046 = vmatpush.msra.mxu0 0.0
    %1047 = vmatpush.msra.mxu0 0.0
    %1048 = vmatpush.msra.mxu0 0.0
    %1049 = vmatpush.msra.mxu0 0.0
    %1050 = vmatpush.msra.mxu0 0.0
    %1051 = vmatpush.msra.mxu0 0.0
    %1052 = vmatpush.msra.mxu0 %v36
    %1053 = vmatmul.f32.gmra.mxu0 %v264
    %v1054 = vpop.f32.mrf.mxu0
    %v1055 = vadd.f32 %v105, %v1054
    %1056 = vmatmul.f32.gmra.mxu0 %v267
    %v1057 = vpop.f32.mrf.mxu0
    %v1058 = vadd.f32 %v110, %v1057
    %1059 = vmatmul.f32.gmra.mxu0 %v270
    %v1060 = vpop.f32.mrf.mxu0
    %v1061 = vadd.f32 %v115, %v1060
    %1062 = vmatmul.f32.gmra.mxu0 %v273
    %v1063 = vpop.f32.mrf.mxu0
    %v1064 = vadd.f32 %v120, %v1063
    %1065 = vmatmul.f32.gmra.mxu0 %v276
    %v1066 = vpop.f32.mrf.mxu0
    %v1067 = vadd.f32 %v125, %v1066
    %1068 = vmatmul.f32.gmra.mxu0 %v279
    %v1069 = vpop.f32.mrf.mxu0
    %v1070 = vadd.f32 %v130, %v1069
    %1071 = vmatmul.f32.gmra.mxu0 %v282
    %v1072 = vpop.f32.mrf.mxu0
    %v1073 = vadd.f32 %v135, %v1072
    %1074 = vmatmul.f32.gmra.mxu0 %v285
    %v1075 = vpop.f32.mrf.mxu0
    %v1076 = vadd.f32 %v140, %v1075
    %1077 = vmatmul.f32.gmra.mxu0 %v288
    %v1078 = vpop.f32.mrf.mxu0
    %v1079 = vadd.f32 %v145, %v1078
    %1080 = vmatmul.f32.gmra.mxu0 %v291
    %v1081 = vpop.f32.mrf.mxu0
    %v1082 = vadd.f32 %v150, %v1081
    %1083 = vmatmul.f32.gmra.mxu0 %v294
    %v1084 = vpop.f32.mrf.mxu0
    %v1085 = vadd.f32 %v155, %v1084
    %1086 = vmatmul.f32.gmra.mxu0 %v297
    %v1087 = vpop.f32.mrf.mxu0
    %v1088 = vadd.f32 %v160, %v1087
    %1089 = vmatmul.f32.gmra.mxu0 %v300
    %v1090 = vpop.f32.mrf.mxu0
    %v1091 = vadd.f32 %v165, %v1090
    %1092 = vmatmul.f32.gmra.mxu0 %v303
    %v1093 = vpop.f32.mrf.mxu0
    %v1094 = vadd.f32 %v170, %v1093
    %1095 = vmatmul.f32.gmra.mxu0 %v306
    %v1096 = vpop.f32.mrf.mxu0
    %v1097 = vadd.f32 %v175, %v1096
    %1098 = vmatmul.f32.gmra.mxu0 %v309
    %v1099 = vpop.f32.mrf.mxu0
    %v1100 = vadd.f32 %v180, %v1099
    %1101 = vmatmul.f32.gmra.mxu0 %v312
    %v1102 = vpop.f32.mrf.mxu0
    %v1103 = vadd.f32 %v185, %v1102
    %1104 = vmatmul.f32.gmra.mxu0 %v315
    %v1105 = vpop.f32.mrf.mxu0
    %v1106 = vadd.f32 %v190, %v1105
    %1107 = vmatmul.f32.gmra.mxu0 %v318
    %v1108 = vpop.f32.mrf.mxu0
    %v1109 = vadd.f32 %v195, %v1108
    %1110 = vmatmul.f32.gmra.mxu0 %v321
    %v1111 = vpop.f32.mrf.mxu0
    %v1112 = vadd.f32 %v200, %v1111
    %1113 = vmatmul.f32.gmra.mxu0 %v324
    %v1114 = vpop.f32.mrf.mxu0
    %v1115 = vadd.f32 %v205, %v1114
    %1116 = vmatmul.f32.gmra.mxu0 %v327
    %v1117 = vpop.f32.mrf.mxu0
    %v1118 = vadd.f32 %v210, %v1117
    %1119 = vmatmul.f32.gmra.mxu0 %v330
    %v1120 = vpop.f32.mrf.mxu0
    %v1121 = vadd.f32 %v215, %v1120
    %1122 = vmatmul.f32.gmra.mxu0 %v333
    %v1123 = vpop.f32.mrf.mxu0
    %v1124 = vadd.f32 %v220, %v1123
    %1125 = vmatmul.f32.gmra.mxu0 %v336
    %v1126 = vpop.f32.mrf.mxu0
    %v1127 = vadd.f32 %v225, %v1126
    %1128 = vmatmul.f32.gmra.mxu0 %v339
    %v1129 = vpop.f32.mrf.mxu0
    %v1130 = vadd.f32 %v230, %v1129
    %1131 = vmatmul.f32.gmra.mxu0 %v342
    %v1132 = vpop.f32.mrf.mxu0
    %v1133 = vadd.f32 %v235, %v1132
    %1134 = vmatmul.f32.gmra.mxu0 %v345
    %v1135 = vpop.f32.mrf.mxu0
    %v1136 = vadd.f32 %v240, %v1135
    %1137 = vmatmul.f32.gmra.mxu0 %v348
    %v1138 = vpop.f32.mrf.mxu0
    %v1139 = vadd.f32 %v245, %v1138
    %1140 = vmatmul.f32.gmra.mxu0 %v351
    %v1141 = vpop.f32.mrf.mxu0
    %v1142 = vadd.f32 %v250, %v1141
    %1143 = vmatmul.f32.gmra.mxu0 %v354
    %v1144 = vpop.f32.mrf.mxu0
    %v1145 = vadd.f32 %v255, %v1144
    %1146 = vmatmul.f32.gmra.mxu0 %v357
    %v1147 = vpop.f32.mrf.mxu0
    %v1148 = vadd.f32 %v260, %v1147
    %1149 = vdwg.mxu0
    %1150 = vmatpush.msra.mxu0 0.0
    %1151 = vmatpush.msra.mxu0 0.0
    %1152 = vmatpush.msra.mxu0 0.0
    %1153 = vmatpush.msra.mxu0 0.0
    %1154 = vmatpush.msra.mxu0 0.0
    %1155 = vmatpush.msra.mxu0 0.0
    %1156 = vmatpush.msra.mxu0 0.0
    %1157 = vmatpush.msra.mxu0 0.0
    %1158 = vmatpush.msra.mxu0 0.0
    %1159 = vmatpush.msra.mxu0 0.0
    %1160 = vmatpush.msra.mxu0 0.0
    %1161 = vmatpush.msra.mxu0 0.0
    %1162 = vmatpush.msra.mxu0 0.0
    %1163 = vmatpush.msra.mxu0 0.0
    %1164 = vmatpush.msra.mxu0 0.0
    %1165 = vmatpush.msra.mxu0 %v37
    %1166 = vmatmul.f32.gmra.mxu0 %v264
    %v1167 = vpop.f32.mrf.mxu0
    %v1168 = vadd.f32 %v105, %v1167
    %1169 = vmatmul.f32.gmra.mxu0 %v267
    %v1170 = vpop.f32.mrf.mxu0
    %v1171 = vadd.f32 %v110, %v1170
    %1172 = vmatmul.f32.gmra.mxu0 %v270
    %v1173 = vpop.f32.mrf.mxu0
    %v1174 = vadd.f32 %v115, %v1173
    %1175 = vmatmul.f32.gmra.mxu0 %v273
    %v1176 = vpop.f32.mrf.mxu0
    %v1177 = vadd.f32 %v120, %v1176
    %1178 = vmatmul.f32.gmra.mxu0 %v276
    %v1179 = vpop.f32.mrf.mxu0
    %v1180 = vadd.f32 %v125, %v1179
    %1181 = vmatmul.f32.gmra.mxu0 %v279
    %v1182 = vpop.f32.mrf.mxu0
    %v1183 = vadd.f32 %v130, %v1182
    %1184 = vmatmul.f32.gmra.mxu0 %v282
    %v1185 = vpop.f32.mrf.mxu0
    %v1186 = vadd.f32 %v135, %v1185
    %1187 = vmatmul.f32.gmra.mxu0 %v285
    %v1188 = vpop.f32.mrf.mxu0
    %v1189 = vadd.f32 %v140, %v1188
    %1190 = vmatmul.f32.gmra.mxu0 %v288
    %v1191 = vpop.f32.mrf.mxu0
    %v1192 = vadd.f32 %v145, %v1191
    %1193 = vmatmul.f32.gmra.mxu0 %v291
    %v1194 = vpop.f32.mrf.mxu0
    %v1195 = vadd.f32 %v150, %v1194
    %1196 = vmatmul.f32.gmra.mxu0 %v294
    %v1197 = vpop.f32.mrf.mxu0
    %v1198 = vadd.f32 %v155, %v1197
    %1199 = vmatmul.f32.gmra.mxu0 %v297
    %v1200 = vpop.f32.mrf.mxu0
    %v1201 = vadd.f32 %v160, %v1200
    %1202 = vmatmul.f32.gmra.mxu0 %v300
    %v1203 = vpop.f32.mrf.mxu0
    %v1204 = vadd.f32 %v165, %v1203
    %1205 = vmatmul.f32.gmra.mxu0 %v303
    %v1206 = vpop.f32.mrf.mxu0
    %v1207 = vadd.f32 %v170, %v1206
    %1208 = vmatmul.f32.gmra.mxu0 %v306
    %v1209 = vpop.f32.mrf.mxu0
    %v1210 = vadd.f32 %v175, %v1209
    %1211 = vmatmul.f32.gmra.mxu0 %v309
    %v1212 = vpop.f32.mrf.mxu0
    %v1213 = vadd.f32 %v180, %v1212
    %1214 = vmatmul.f32.gmra.mxu0 %v312
    %v1215 = vpop.f32.mrf.mxu0
    %v1216 = vadd.f32 %v185, %v1215
    %1217 = vmatmul.f32.gmra.mxu0 %v315
    %v1218 = vpop.f32.mrf.mxu0
    %v1219 = vadd.f32 %v190, %v1218
    %1220 = vmatmul.f32.gmra.mxu0 %v318
    %v1221 = vpop.f32.mrf.mxu0
    %v1222 = vadd.f32 %v195, %v1221
    %1223 = vmatmul.f32.gmra.mxu0 %v321
    %v1224 = vpop.f32.mrf.mxu0
    %v1225 = vadd.f32 %v200, %v1224
    %1226 = vmatmul.f32.gmra.mxu0 %v324
    %v1227 = vpop.f32.mrf.mxu0
    %v1228 = vadd.f32 %v205, %v1227
    %1229 = vmatmul.f32.gmra.mxu0 %v327
    %v1230 = vpop.f32.mrf.mxu0
    %v1231 = vadd.f32 %v210, %v1230
    %1232 = vmatmul.f32.gmra.mxu0 %v330
    %v1233 = vpop.f32.mrf.mxu0
    %v1234 = vadd.f32 %v215, %v1233
    %1235 = vmatmul.f32.gmra.mxu0 %v333
    %v1236 = vpop.f32.mrf.mxu0
    %v1237 = vadd.f32 %v220, %v1236
    %1238 = vmatmul.f32.gmra.mxu0 %v336
    %v1239 = vpop.f32.mrf.mxu0
    %v1240 = vadd.f32 %v225, %v1239
    %1241 = vmatmul.f32.gmra.mxu0 %v339
    %v1242 = vpop.f32.mrf.mxu0
    %v1243 = vadd.f32 %v230, %v1242
    %1244 = vmatmul.f32.gmra.mxu0 %v342
    %v1245 = vpop.f32.mrf.mxu0
    %v1246 = vadd.f32 %v235, %v1245
    %1247 = vmatmul.f32.gmra.mxu0 %v345
    %v1248 = vpop.f32.mrf.mxu0
    %v1249 = vadd.f32 %v240, %v1248
    %1250 = vmatmul.f32.gmra.mxu0 %v348
    %v1251 = vpop.f32.mrf.mxu0
    %v1252 = vadd.f32 %v245, %v1251
    %1253 = vmatmul.f32.gmra.mxu0 %v351
    %v1254 = vpop.f32.mrf.mxu0
    %v1255 = vadd.f32 %v250, %v1254
    %1256 = vmatmul.f32.gmra.mxu0 %v354
    %v1257 = vpop.f32.mrf.mxu0
    %v1258 = vadd.f32 %v255, %v1257
    %1259 = vmatmul.f32.gmra.mxu0 %v357
    %v1260 = vpop.f32.mrf.mxu0
    %v1261 = vadd.f32 %v260, %v1260
    %1262 = vdwg.mxu0
    %v1263 = vmax.f32 %v377, 0.0
    %v1264 = vmax.f32 %v490, 0.0
    %v1265 = vmax.f32 %v603, 0.0
    %v1266 = vmax.f32 %v716, 0.0
    %v1267 = vmax.f32 %v829, 0.0
    %v1268 = vmax.f32 %v942, 0.0
    %v1269 = vmax.f32 %v1055, 0.0
    %v1270 = vmax.f32 %v1168, 0.0
    %v1271 = vmax.f32 %v380, 0.0
    %v1272 = vmax.f32 %v493, 0.0
    %v1273 = vmax.f32 %v606, 0.0
    %v1274 = vmax.f32 %v719, 0.0
    %v1275 = vmax.f32 %v832, 0.0
    %v1276 = vmax.f32 %v945, 0.0
    %v1277 = vmax.f32 %v1058, 0.0
    %v1278 = vmax.f32 %v1171, 0.0
    %v1279 = vmax.f32 %v383, 0.0
    %v1280 = vmax.f32 %v496, 0.0
    %v1281 = vmax.f32 %v609, 0.0
    %v1282 = vmax.f32 %v722, 0.0
    %v1283 = vmax.f32 %v835, 0.0
    %v1284 = vmax.f32 %v948, 0.0
    %v1285 = vmax.f32 %v1061, 0.0
    %v1286 = vmax.f32 %v1174, 0.0
    %v1287 = vmax.f32 %v386, 0.0
    %v1288 = vmax.f32 %v499, 0.0
    %v1289 = vmax.f32 %v612, 0.0
    %v1290 = vmax.f32 %v725, 0.0
    %v1291 = vmax.f32 %v838, 0.0
    %v1292 = vmax.f32 %v951, 0.0
    %v1293 = vmax.f32 %v1064, 0.0
    %v1294 = vmax.f32 %v1177, 0.0
    %v1295 = vmax.f32 %v389, 0.0
    %v1296 = vmax.f32 %v502, 0.0
    %v1297 = vmax.f32 %v615, 0.0
    %v1298 = vmax.f32 %v728, 0.0
    %v1299 = vmax.f32 %v841, 0.0
    %v1300 = vmax.f32 %v954, 0.0
    %v1301 = vmax.f32 %v1067, 0.0
    %v1302 = vmax.f32 %v1180, 0.0
    %v1303 = vmax.f32 %v392, 0.0
    %v1304 = vmax.f32 %v505, 0.0
    %v1305 = vmax.f32 %v618, 0.0
    %v1306 = vmax.f32 %v731, 0.0
    %v1307 = vmax.f32 %v844, 0.0
    %v1308 = vmax.f32 %v957, 0.0
    %v1309 = vmax.f32 %v1070, 0.0
    %v1310 = vmax.f32 %v1183, 0.0
    %v1311 = vmax.f32 %v395, 0.0
    %v1312 = vmax.f32 %v508, 0.0
    %v1313 = vmax.f32 %v621, 0.0
    %v1314 = vmax.f32 %v734, 0.0
    %v1315 = vmax.f32 %v847, 0.0
    %v1316 = vmax.f32 %v960, 0.0
    %v1317 = vmax.f32 %v1073, 0.0
    %v1318 = vmax.f32 %v1186, 0.0
    %v1319 = vmax.f32 %v398, 0.0
    %v1320 = vmax.f32 %v511, 0.0
    %v1321 = vmax.f32 %v624, 0.0
    %v1322 = vmax.f32 %v737, 0.0
    %v1323 = vmax.f32 %v850, 0.0
    %v1324 = vmax.f32 %v963, 0.0
    %v1325 = vmax.f32 %v1076, 0.0
    %v1326 = vmax.f32 %v1189, 0.0
    %v1327 = vmax.f32 %v401, 0.0
    %v1328 = vmax.f32 %v514, 0.0
    %v1329 = vmax.f32 %v627, 0.0
    %v1330 = vmax.f32 %v740, 0.0
    %v1331 = vmax.f32 %v853, 0.0
    %v1332 = vmax.f32 %v966, 0.0
    %v1333 = vmax.f32 %v1079, 0.0
    %v1334 = vmax.f32 %v1192, 0.0
    %v1335 = vmax.f32 %v404, 0.0
    %v1336 = vmax.f32 %v517, 0.0
    %v1337 = vmax.f32 %v630, 0.0
    %v1338 = vmax.f32 %v743, 0.0
    %v1339 = vmax.f32 %v856, 0.0
    %v1340 = vmax.f32 %v969, 0.0
    %v1341 = vmax.f32 %v1082, 0.0
    %v1342 = vmax.f32 %v1195, 0.0
    %v1343 = vmax.f32 %v407, 0.0
    %v1344 = vmax.f32 %v520, 0.0
    %v1345 = vmax.f32 %v633, 0.0
    %v1346 = vmax.f32 %v746, 0.0
    %v1347 = vmax.f32 %v859, 0.0
    %v1348 = vmax.f32 %v972, 0.0
    %v1349 = vmax.f32 %v1085, 0.0
    %v1350 = vmax.f32 %v1198, 0.0
    %v1351 = vmax.f32 %v410, 0.0
    %v1352 = vmax.f32 %v523, 0.0
    %v1353 = vmax.f32 %v636, 0.0
    %v1354 = vmax.f32 %v749, 0.0
    %v1355 = vmax.f32 %v862, 0.0
    %v1356 = vmax.f32 %v975, 0.0
    %v1357 = vmax.f32 %v1088, 0.0
    %v1358 = vmax.f32 %v1201, 0.0
    %v1359 = vmax.f32 %v413, 0.0
    %v1360 = vmax.f32 %v526, 0.0
    %v1361 = vmax.f32 %v639, 0.0
    %v1362 = vmax.f32 %v752, 0.0
    %v1363 = vmax.f32 %v865, 0.0
    %v1364 = vmax.f32 %v978, 0.0
    %v1365 = vmax.f32 %v1091, 0.0
    %v1366 = vmax.f32 %v1204, 0.0
    %v1367 = vmax.f32 %v416, 0.0
    %v1368 = vmax.f32 %v529, 0.0
    %v1369 = vmax.f32 %v642, 0.0
    %v1370 = vmax.f32 %v755, 0.0
    %v1371 = vmax.f32 %v868, 0.0
    %v1372 = vmax.f32 %v981, 0.0
    %v1373 = vmax.f32 %v1094, 0.0
    %v1374 = vmax.f32 %v1207, 0.0
    %v1375 = vmax.f32 %v419, 0.0
    %v1376 = vmax.f32 %v532, 0.0
    %v1377 = vmax.f32 %v645, 0.0
    %v1378 = vmax.f32 %v758, 0.0
    %v1379 = vmax.f32 %v871, 0.0
    %v1380 = vmax.f32 %v984, 0.0
    %v1381 = vmax.f32 %v1097, 0.0
    %v1382 = vmax.f32 %v1210, 0.0
    %v1383 = vmax.f32 %v422, 0.0
    %v1384 = vmax.f32 %v535, 0.0
    %v1385 = vmax.f32 %v648, 0.0
    %v1386 = vmax.f32 %v761, 0.0
    %v1387 = vmax.f32 %v874, 0.0
    %v1388 = vmax.f32 %v987, 0.0
    %v1389 = vmax.f32 %v1100, 0.0
    %v1390 = vmax.f32 %v1213, 0.0
    %v1391 = vmax.f32 %v425, 0.0
    %v1392 = vmax.f32 %v538, 0.0
    %v1393 = vmax.f32 %v651, 0.0
    %v1394 = vmax.f32 %v764, 0.0
    %v1395 = vmax.f32 %v877, 0.0
    %v1396 = vmax.f32 %v990, 0.0
    %v1397 = vmax.f32 %v1103, 0.0
    %v1398 = vmax.f32 %v1216, 0.0
    %v1399 = vmax.f32 %v428, 0.0
    %v1400 = vmax.f32 %v541, 0.0
    %v1401 = vmax.f32 %v654, 0.0
    %v1402 = vmax.f32 %v767, 0.0
    %v1403 = vmax.f32 %v880, 0.0
    %v1404 = vmax.f32 %v993, 0.0
    %v1405 = vmax.f32 %v1106, 0.0
    %v1406 = vmax.f32 %v1219, 0.0
    %v1407 = vmax.f32 %v431, 0.0
    %v1408 = vmax.f32 %v544, 0.0
    %v1409 = vmax.f32 %v657, 0.0
    %v1410 = vmax.f32 %v770, 0.0
    %v1411 = vmax.f32 %v883, 0.0
    %v1412 = vmax.f32 %v996, 0.0
    %v1413 = vmax.f32 %v1109, 0.0
    %v1414 = vmax.f32 %v1222, 0.0
    %v1415 = vmax.f32 %v434, 0.0
    %v1416 = vmax.f32 %v547, 0.0
    %v1417 = vmax.f32 %v660, 0.0
    %v1418 = vmax.f32 %v773, 0.0
    %v1419 = vmax.f32 %v886, 0.0
    %v1420 = vmax.f32 %v999, 0.0
    %v1421 = vmax.f32 %v1112, 0.0
    %v1422 = vmax.f32 %v1225, 0.0
    %v1423 = vmax.f32 %v437, 0.0
    %v1424 = vmax.f32 %v550, 0.0
    %v1425 = vmax.f32 %v663, 0.0
    %v1426 = vmax.f32 %v776, 0.0
    %v1427 = vmax.f32 %v889, 0.0
    %v1428 = vmax.f32 %v1002, 0.0
    %v1429 = vmax.f32 %v1115, 0.0
    %v1430 = vmax.f32 %v1228, 0.0
    %v1431 = vmax.f32 %v440, 0.0
    %v1432 = vmax.f32 %v553, 0.0
    %v1433 = vmax.f32 %v666, 0.0
    %v1434 = vmax.f32 %v779, 0.0
    %v1435 = vmax.f32 %v892, 0.0
    %v1436 = vmax.f32 %v1005, 0.0
    %v1437 = vmax.f32 %v1118, 0.0
    %v1438 = vmax.f32 %v1231, 0.0
    %v1439 = vmax.f32 %v443, 0.0
    %v1440 = vmax.f32 %v556, 0.0
    %v1441 = vmax.f32 %v669, 0.0
    %v1442 = vmax.f32 %v782, 0.0
    %v1443 = vmax.f32 %v895, 0.0
    %v1444 = vmax.f32 %v1008, 0.0
    %v1445 = vmax.f32 %v1121, 0.0
    %v1446 = vmax.f32 %v1234, 0.0
    %v1447 = vmax.f32 %v446, 0.0
    %v1448 = vmax.f32 %v559, 0.0
    %v1449 = vmax.f32 %v672, 0.0
    %v1450 = vmax.f32 %v785, 0.0
    %v1451 = vmax.f32 %v898, 0.0
    %v1452 = vmax.f32 %v1011, 0.0
    %v1453 = vmax.f32 %v1124, 0.0
    %v1454 = vmax.f32 %v1237, 0.0
    %v1455 = vmax.f32 %v449, 0.0
    %v1456 = vmax.f32 %v562, 0.0
    %v1457 = vmax.f32 %v675, 0.0
    %v1458 = vmax.f32 %v788, 0.0
    %v1459 = vmax.f32 %v901, 0.0
    %v1460 = vmax.f32 %v1014, 0.0
    %v1461 = vmax.f32 %v1127, 0.0
    %v1462 = vmax.f32 %v1240, 0.0
    %v1463 = vmax.f32 %v452, 0.0
    %v1464 = vmax.f32 %v565, 0.0
    %v1465 = vmax.f32 %v678, 0.0
    %v1466 = vmax.f32 %v791, 0.0
    %v1467 = vmax.f32 %v904, 0.0
    %v1468 = vmax.f32 %v1017, 0.0
    %v1469 = vmax.f32 %v1130, 0.0
    %v1470 = vmax.f32 %v1243, 0.0
    %v1471 = vmax.f32 %v455, 0.0
    %v1472 = vmax.f32 %v568, 0.0
    %v1473 = vmax.f32 %v681, 0.0
    %v1474 = vmax.f32 %v794, 0.0
    %v1475 = vmax.f32 %v907, 0.0
    %v1476 = vmax.f32 %v1020, 0.0
    %v1477 = vmax.f32 %v1133, 0.0
    %v1478 = vmax.f32 %v1246, 0.0
    %v1479 = vmax.f32 %v458, 0.0
    %v1480 = vmax.f32 %v571, 0.0
    %v1481 = vmax.f32 %v684, 0.0
    %v1482 = vmax.f32 %v797, 0.0
    %v1483 = vmax.f32 %v910, 0.0
    %v1484 = vmax.f32 %v1023, 0.0
    %v1485 = vmax.f32 %v1136, 0.0
    %v1486 = vmax.f32 %v1249, 0.0
    %v1487 = vmax.f32 %v461, 0.0
    %v1488 = vmax.f32 %v574, 0.0
    %v1489 = vmax.f32 %v687, 0.0
    %v1490 = vmax.f32 %v800, 0.0
    %v1491 = vmax.f32 %v913, 0.0
    %v1492 = vmax.f32 %v1026, 0.0
    %v1493 = vmax.f32 %v1139, 0.0
    %v1494 = vmax.f32 %v1252, 0.0
    %v1495 = vmax.f32 %v464, 0.0
    %v1496 = vmax.f32 %v577, 0.0
    %v1497 = vmax.f32 %v690, 0.0
    %v1498 = vmax.f32 %v803, 0.0
    %v1499 = vmax.f32 %v916, 0.0
    %v1500 = vmax.f32 %v1029, 0.0
    %v1501 = vmax.f32 %v1142, 0.0
    %v1502 = vmax.f32 %v1255, 0.0
    %v1503 = vmax.f32 %v467, 0.0
    %v1504 = vmax.f32 %v580, 0.0
    %v1505 = vmax.f32 %v693, 0.0
    %v1506 = vmax.f32 %v806, 0.0
    %v1507 = vmax.f32 %v919, 0.0
    %v1508 = vmax.f32 %v1032, 0.0
    %v1509 = vmax.f32 %v1145, 0.0
    %v1510 = vmax.f32 %v1258, 0.0
    %v1511 = vmax.f32 %v470, 0.0
    %v1512 = vmax.f32 %v583, 0.0
    %v1513 = vmax.f32 %v696, 0.0
    %v1514 = vmax.f32 %v809, 0.0
    %v1515 = vmax.f32 %v922, 0.0
    %v1516 = vmax.f32 %v1035, 0.0
    %v1517 = vmax.f32 %v1148, 0.0
    %v1518 = vmax.f32 %v1261, 0.0
    %v1519 = vld [vmem:[%s3] sm:$0xff]
    %v1520 = vld [vmem:[%s3 + $0x8] sm:$0xff]
    %v1521 = vld [vmem:[%s3 + $0x10] sm:$0xff]
    %v1522 = vld [vmem:[%s3 + $0x18] sm:$0xff]
    %v1523 = vld [vmem:[%s3 + $0x20] sm:$0xff]
    %v1524 = vld [vmem:[%s3 + $0x28] sm:$0xff]
    %v1525 = vld [vmem:[%s3 + $0x30] sm:$0xff]
    %v1526 = vld [vmem:[%s3 + $0x38] sm:$0xff]
    %v1527 = vld [vmem:[%s3 + $0x40] sm:$0xff]
    %v1528 = vld [vmem:[%s3 + $0x48] sm:$0xff]
    %v1529 = vld [vmem:[%s3 + $0x50] sm:$0xff]
    %v1530 = vld [vmem:[%s3 + $0x58] sm:$0xff]
    %v1531 = vld [vmem:[%s3 + $0x60] sm:$0xff]
    %v1532 = vld [vmem:[%s3 + $0x68] sm:$0xff]
    %v1533 = vld [vmem:[%s3 + $0x70] sm:$0xff]
    %v1534 = vld [vmem:[%s3 + $0x78] sm:$0xff]
    %v1535 = vld [vmem:[%s3 + $0x80] sm:$0xff]
    %v1536 = vld [vmem:[%s3 + $0x88] sm:$0xff]
    %v1537 = vld [vmem:[%s3 + $0x90] sm:$0xff]
    %v1538 = vld [vmem:[%s3 + $0x98] sm:$0xff]
    %v1539 = vld [vmem:[%s3 + $0xa0] sm:$0xff]
    %v1540 = vld [vmem:[%s3 + $0xa8] sm:$0xff]
    %v1541 = vld [vmem:[%s3 + $0xb0] sm:$0xff]
    %v1542 = vld [vmem:[%s3 + $0xb8] sm:$0xff]
    %v1543 = vld [vmem:[%s3 + $0xc0] sm:$0xff]
    %v1544 = vld [vmem:[%s3 + $0xc8] sm:$0xff]
    %v1545 = vld [vmem:[%s3 + $0xd0] sm:$0xff]
    %v1546 = vld [vmem:[%s3 + $0xd8] sm:$0xff]
    %v1547 = vld [vmem:[%s3 + $0xe0] sm:$0xff]
    %v1548 = vld [vmem:[%s3 + $0xe8] sm:$0xff]
    %v1549 = vld [vmem:[%s3 + $0xf0] sm:$0xff]
    %v1550 = vld [vmem:[%s3 + $0xf8] sm:$0xff]
    %v1551 = vpack.c.bf16 %v1271, %v1263
    %v1552 = vpack.c.bf16 %v1272, %v1264
    %v1553 = vpack.c.bf16 %v1273, %v1265
    %v1554 = vpack.c.bf16 %v1274, %v1266
    %v1555 = vpack.c.bf16 %v1275, %v1267
    %v1556 = vpack.c.bf16 %v1276, %v1268
    %v1557 = vpack.c.bf16 %v1277, %v1269
    %v1558 = vpack.c.bf16 %v1278, %v1270
    %v1559 = vpack.c.bf16 %v1287, %v1279
    %v1560 = vpack.c.bf16 %v1288, %v1280
    %v1561 = vpack.c.bf16 %v1289, %v1281
    %v1562 = vpack.c.bf16 %v1290, %v1282
    %v1563 = vpack.c.bf16 %v1291, %v1283
    %v1564 = vpack.c.bf16 %v1292, %v1284
    %v1565 = vpack.c.bf16 %v1293, %v1285
    %v1566 = vpack.c.bf16 %v1294, %v1286
    %v1567 = vpack.c.bf16 %v1303, %v1295
    %v1568 = vpack.c.bf16 %v1304, %v1296
    %v1569 = vpack.c.bf16 %v1305, %v1297
    %v1570 = vpack.c.bf16 %v1306, %v1298
    %v1571 = vpack.c.bf16 %v1307, %v1299
    %v1572 = vpack.c.bf16 %v1308, %v1300
    %v1573 = vpack.c.bf16 %v1309, %v1301
    %v1574 = vpack.c.bf16 %v1310, %v1302
    %v1575 = vpack.c.bf16 %v1319, %v1311
    %v1576 = vpack.c.bf16 %v1320, %v1312
    %v1577 = vpack.c.bf16 %v1321, %v1313
    %v1578 = vpack.c.bf16 %v1322, %v1314
    %v1579 = vpack.c.bf16 %v1323, %v1315
    %v1580 = vpack.c.bf16 %v1324, %v1316
    %v1581 = vpack.c.bf16 %v1325, %v1317
    %v1582 = vpack.c.bf16 %v1326, %v1318
    %v1583 = vpack.c.bf16 %v1335, %v1327
    %v1584 = vpack.c.bf16 %v1336, %v1328
    %v1585 = vpack.c.bf16 %v1337, %v1329
    %v1586 = vpack.c.bf16 %v1338, %v1330
    %v1587 = vpack.c.bf16 %v1339, %v1331
    %v1588 = vpack.c.bf16 %v1340, %v1332
    %v1589 = vpack.c.bf16 %v1341, %v1333
    %v1590 = vpack.c.bf16 %v1342, %v1334
    %v1591 = vpack.c.bf16 %v1351, %v1343
    %v1592 = vpack.c.bf16 %v1352, %v1344
    %v1593 = vpack.c.bf16 %v1353, %v1345
    %v1594 = vpack.c.bf16 %v1354, %v1346
    %v1595 = vpack.c.bf16 %v1355, %v1347
    %v1596 = vpack.c.bf16 %v1356, %v1348
    %v1597 = vpack.c.bf16 %v1357, %v1349
    %v1598 = vpack.c.bf16 %v1358, %v1350
    %v1599 = vpack.c.bf16 %v1367, %v1359
    %v1600 = vpack.c.bf16 %v1368, %v1360
    %v1601 = vpack.c.bf16 %v1369, %v1361
    %v1602 = vpack.c.bf16 %v1370, %v1362
    %v1603 = vpack.c.bf16 %v1371, %v1363
    %v1604 = vpack.c.bf16 %v1372, %v1364
    %v1605 = vpack.c.bf16 %v1373, %v1365
    %v1606 = vpack.c.bf16 %v1374, %v1366
    %v1607 = vpack.c.bf16 %v1383, %v1375
    %v1608 = vpack.c.bf16 %v1384, %v1376
    %v1609 = vpack.c.bf16 %v1385, %v1377
    %v1610 = vpack.c.bf16 %v1386, %v1378
    %v1611 = vpack.c.bf16 %v1387, %v1379
    %v1612 = vpack.c.bf16 %v1388, %v1380
    %v1613 = vpack.c.bf16 %v1389, %v1381
    %v1614 = vpack.c.bf16 %v1390, %v1382
    %v1615 = vpack.c.bf16 %v1399, %v1391
    %v1616 = vpack.c.bf16 %v1400, %v1392
    %v1617 = vpack.c.bf16 %v1401, %v1393
    %v1618 = vpack.c.bf16 %v1402, %v1394
    %v1619 = vpack.c.bf16 %v1403, %v1395
    %v1620 = vpack.c.bf16 %v1404, %v1396
    %v1621 = vpack.c.bf16 %v1405, %v1397
    %v1622 = vpack.c.bf16 %v1406, %v1398
    %v1623 = vpack.c.bf16 %v1415, %v1407
    %v1624 = vpack.c.bf16 %v1416, %v1408
    %v1625 = vpack.c.bf16 %v1417, %v1409
    %v1626 = vpack.c.bf16 %v1418, %v1410
    %v1627 = vpack.c.bf16 %v1419, %v1411
    %v1628 = vpack.c.bf16 %v1420, %v1412
    %v1629 = vpack.c.bf16 %v1421, %v1413
    %v1630 = vpack.c.bf16 %v1422, %v1414
    %v1631 = vpack.c.bf16 %v1431, %v1423
    %v1632 = vpack.c.bf16 %v1432, %v1424
    %v1633 = vpack.c.bf16 %v1433, %v1425
    %v1634 = vpack.c.bf16 %v1434, %v1426
    %v1635 = vpack.c.bf16 %v1435, %v1427
    %v1636 = vpack.c.bf16 %v1436, %v1428
    %v1637 = vpack.c.bf16 %v1437, %v1429
    %v1638 = vpack.c.bf16 %v1438, %v1430
    %v1639 = vpack.c.bf16 %v1447, %v1439
    %v1640 = vpack.c.bf16 %v1448, %v1440
    %v1641 = vpack.c.bf16 %v1449, %v1441
    %v1642 = vpack.c.bf16 %v1450, %v1442
    %v1643 = vpack.c.bf16 %v1451, %v1443
    %v1644 = vpack.c.bf16 %v1452, %v1444
    %v1645 = vpack.c.bf16 %v1453, %v1445
    %v1646 = vpack.c.bf16 %v1454, %v1446
    %v1647 = vpack.c.bf16 %v1463, %v1455
    %v1648 = vpack.c.bf16 %v1464, %v1456
    %v1649 = vpack.c.bf16 %v1465, %v1457
    %v1650 = vpack.c.bf16 %v1466, %v1458
    %v1651 = vpack.c.bf16 %v1467, %v1459
    %v1652 = vpack.c.bf16 %v1468, %v1460
    %v1653 = vpack.c.bf16 %v1469, %v1461
    %v1654 = vpack.c.bf16 %v1470, %v1462
    %v1655 = vpack.c.bf16 %v1479, %v1471
    %v1656 = vpack.c.bf16 %v1480, %v1472
    %v1657 = vpack.c.bf16 %v1481, %v1473
    %v1658 = vpack.c.bf16 %v1482, %v1474
    %v1659 = vpack.c.bf16 %v1483, %v1475
    %v1660 = vpack.c.bf16 %v1484, %v1476
    %v1661 = vpack.c.bf16 %v1485, %v1477
    %v1662 = vpack.c.bf16 %v1486, %v1478
    %v1663 = vpack.c.bf16 %v1495, %v1487
    %v1664 = vpack.c.bf16 %v1496, %v1488
    %v1665 = vpack.c.bf16 %v1497, %v1489
    %v1666 = vpack.c.bf16 %v1498, %v1490
    %v1667 = vpack.c.bf16 %v1499, %v1491
    %v1668 = vpack.c.bf16 %v1500, %v1492
    %v1669 = vpack.c.bf16 %v1501, %v1493
    %v1670 = vpack.c.bf16 %v1502, %v1494
    %v1671 = vpack.c.bf16 %v1511, %v1503
    %v1672 = vpack.c.bf16 %v1512, %v1504
    %v1673 = vpack.c.bf16 %v1513, %v1505
    %v1674 = vpack.c.bf16 %v1514, %v1506
    %v1675 = vpack.c.bf16 %v1515, %v1507
    %v1676 = vpack.c.bf16 %v1516, %v1508
    %v1677 = vpack.c.bf16 %v1517, %v1509
    %v1678 = vpack.c.bf16 %v1518, %v1510
    %v1679 = vld [vmem:[%s4] sm:$0xff]
    %v1680 = vld [vmem:[%s4 + $0x8] sm:$0xff]
    %v1681 = vld [vmem:[%s4 + $0x10] sm:$0xff]
    %v1682 = vld [vmem:[%s4 + $0x18] sm:$0xff]
    %v1683 = vld [vmem:[%s4 + $0x20] sm:$0xff]
    %v1684 = vld [vmem:[%s4 + $0x28] sm:$0xff]
    %v1685 = vld [vmem:[%s4 + $0x30] sm:$0xff]
    %v1686 = vld [vmem:[%s4 + $0x38] sm:$0xff]
    %v1687 = vld [vmem:[%s4 + $0x40] sm:$0xff]
    %v1688 = vld [vmem:[%s4 + $0x48] sm:$0xff]
    %v1689 = vld [vmem:[%s4 + $0x50] sm:$0xff]
    %v1690 = vld [vmem:[%s4 + $0x58] sm:$0xff]
    %v1691 = vld [vmem:[%s4 + $0x60] sm:$0xff]
    %v1692 = vld [vmem:[%s4 + $0x68] sm:$0xff]
    %v1693 = vld [vmem:[%s4 + $0x70] sm:$0xff]
    %v1694 = vld [vmem:[%s4 + $0x78] sm:$0xff]
    %v1695 = vld [vmem:[%s4 + $0x80] sm:$0xff]
    %v1696 = vld [vmem:[%s4 + $0x88] sm:$0xff]
    %v1697 = vld [vmem:[%s4 + $0x90] sm:$0xff]
    %v1698 = vld [vmem:[%s4 + $0x98] sm:$0xff]
    %v1699 = vld [vmem:[%s4 + $0xa0] sm:$0xff]
    %v1700 = vld [vmem:[%s4 + $0xa8] sm:$0xff]
    %v1701 = vld [vmem:[%s4 + $0xb0] sm:$0xff]
    %v1702 = vld [vmem:[%s4 + $0xb8] sm:$0xff]
    %v1703 = vld [vmem:[%s4 + $0xc0] sm:$0xff]
    %v1704 = vld [vmem:[%s4 + $0xc8] sm:$0xff]
    %v1705 = vld [vmem:[%s4 + $0xd0] sm:$0xff]
    %v1706 = vld [vmem:[%s4 + $0xd8] sm:$0xff]
    %v1707 = vld [vmem:[%s4 + $0xe0] sm:$0xff]
    %v1708 = vld [vmem:[%s4 + $0xe8] sm:$0xff]
    %v1709 = vld [vmem:[%s4 + $0xf0] sm:$0xff]
    %v1710 = vld [vmem:[%s4 + $0xf8] sm:$0xff]
    %1712 = vset.pattern.permute.xlu0 0
    %1713 = vperm.xlu0 %1712, %v1679
    %v1714 = vpop.permute.xlu0 %1713
    %1717 = vset.pattern.permute.xlu0 0
    %1718 = vperm.xlu0 %1717, %v1680
    %v1719 = vpop.permute.xlu0 %1718
    %1722 = vset.pattern.permute.xlu0 0
    %1723 = vperm.xlu0 %1722, %v1681
    %v1724 = vpop.permute.xlu0 %1723
    %1727 = vset.pattern.permute.xlu0 0
    %1728 = vperm.xlu0 %1727, %v1682
    %v1729 = vpop.permute.xlu0 %1728
    %1732 = vset.pattern.permute.xlu0 0
    %1733 = vperm.xlu0 %1732, %v1683
    %v1734 = vpop.permute.xlu0 %1733
    %1737 = vset.pattern.permute.xlu0 0
    %1738 = vperm.xlu0 %1737, %v1684
    %v1739 = vpop.permute.xlu0 %1738
    %1742 = vset.pattern.permute.xlu0 0
    %1743 = vperm.xlu0 %1742, %v1685
    %v1744 = vpop.permute.xlu0 %1743
    %1747 = vset.pattern.permute.xlu0 0
    %1748 = vperm.xlu0 %1747, %v1686
    %v1749 = vpop.permute.xlu0 %1748
    %1752 = vset.pattern.permute.xlu0 0
    %1753 = vperm.xlu0 %1752, %v1687
    %v1754 = vpop.permute.xlu0 %1753
    %1757 = vset.pattern.permute.xlu0 0
    %1758 = vperm.xlu0 %1757, %v1688
    %v1759 = vpop.permute.xlu0 %1758
    %1762 = vset.pattern.permute.xlu0 0
    %1763 = vperm.xlu0 %1762, %v1689
    %v1764 = vpop.permute.xlu0 %1763
    %1767 = vset.pattern.permute.xlu0 0
    %1768 = vperm.xlu0 %1767, %v1690
    %v1769 = vpop.permute.xlu0 %1768
    %1772 = vset.pattern.permute.xlu0 0
    %1773 = vperm.xlu0 %1772, %v1691
    %v1774 = vpop.permute.xlu0 %1773
    %1777 = vset.pattern.permute.xlu0 0
    %1778 = vperm.xlu0 %1777, %v1692
    %v1779 = vpop.permute.xlu0 %1778
    %1782 = vset.pattern.permute.xlu0 0
    %1783 = vperm.xlu0 %1782, %v1693
    %v1784 = vpop.permute.xlu0 %1783
    %1787 = vset.pattern.permute.xlu0 0
    %1788 = vperm.xlu0 %1787, %v1694
    %v1789 = vpop.permute.xlu0 %1788
    %1792 = vset.pattern.permute.xlu0 0
    %1793 = vperm.xlu0 %1792, %v1695
    %v1794 = vpop.permute.xlu0 %1793
    %1797 = vset.pattern.permute.xlu0 0
    %1798 = vperm.xlu0 %1797, %v1696
    %v1799 = vpop.permute.xlu0 %1798
    %1802 = vset.pattern.permute.xlu0 0
    %1803 = vperm.xlu0 %1802, %v1697
    %v1804 = vpop.permute.xlu0 %1803
    %1807 = vset.pattern.permute.xlu0 0
    %1808 = vperm.xlu0 %1807, %v1698
    %v1809 = vpop.permute.xlu0 %1808
    %1812 = vset.pattern.permute.xlu0 0
    %1813 = vperm.xlu0 %1812, %v1699
    %v1814 = vpop.permute.xlu0 %1813
    %1817 = vset.pattern.permute.xlu0 0
    %1818 = vperm.xlu0 %1817, %v1700
    %v1819 = vpop.permute.xlu0 %1818
    %1822 = vset.pattern.permute.xlu0 0
    %1823 = vperm.xlu0 %1822, %v1701
    %v1824 = vpop.permute.xlu0 %1823
    %1827 = vset.pattern.permute.xlu0 0
    %1828 = vperm.xlu0 %1827, %v1702
    %v1829 = vpop.permute.xlu0 %1828
    %1832 = vset.pattern.permute.xlu0 0
    %1833 = vperm.xlu0 %1832, %v1703
    %v1834 = vpop.permute.xlu0 %1833
    %1837 = vset.pattern.permute.xlu0 0
    %1838 = vperm.xlu0 %1837, %v1704
    %v1839 = vpop.permute.xlu0 %1838
    %1842 = vset.pattern.permute.xlu0 0
    %1843 = vperm.xlu0 %1842, %v1705
    %v1844 = vpop.permute.xlu0 %1843
    %1847 = vset.pattern.permute.xlu0 0
    %1848 = vperm.xlu0 %1847, %v1706
    %v1849 = vpop.permute.xlu0 %1848
    %1852 = vset.pattern.permute.xlu0 0
    %1853 = vperm.xlu0 %1852, %v1707
    %v1854 = vpop.permute.xlu0 %1853
    %1857 = vset.pattern.permute.xlu0 0
    %1858 = vperm.xlu0 %1857, %v1708
    %v1859 = vpop.permute.xlu0 %1858
    %1862 = vset.pattern.permute.xlu0 0
    %1863 = vperm.xlu0 %1862, %v1709
    %v1864 = vpop.permute.xlu0 %1863
    %1867 = vset.pattern.permute.xlu0 0
    %1868 = vperm.xlu0 %1867, %v1710
    %v1869 = vpop.permute.xlu0 %1868
    %v1903 = vunpack.c.l.b16 %v1519
    %v1904 = vunpack.c.h.b16 %v1519
    %v1905 = vunpack.c.l.b16 %v1520
    %v1906 = vunpack.c.h.b16 %v1520
    %v1907 = vunpack.c.l.b16 %v1521
    %v1908 = vunpack.c.h.b16 %v1521
    %v1909 = vunpack.c.l.b16 %v1522
    %v1910 = vunpack.c.h.b16 %v1522
    %v1911 = vunpack.c.l.b16 %v1523
    %v1912 = vunpack.c.h.b16 %v1523
    %v1913 = vunpack.c.l.b16 %v1524
    %v1914 = vunpack.c.h.b16 %v1524
    %v1915 = vunpack.c.l.b16 %v1525
    %v1916 = vunpack.c.h.b16 %v1525
    %v1917 = vunpack.c.l.b16 %v1526
    %v1918 = vunpack.c.h.b16 %v1526
    %v1919 = vunpack.c.l.b16 %v1527
    %v1920 = vunpack.c.h.b16 %v1527
    %v1921 = vunpack.c.l.b16 %v1528
    %v1922 = vunpack.c.h.b16 %v1528
    %v1923 = vunpack.c.l.b16 %v1529
    %v1924 = vunpack.c.h.b16 %v1529
    %v1925 = vunpack.c.l.b16 %v1530
    %v1926 = vunpack.c.h.b16 %v1530
    %v1927 = vunpack.c.l.b16 %v1531
    %v1928 = vunpack.c.h.b16 %v1531
    %v1929 = vunpack.c.l.b16 %v1532
    %v1930 = vunpack.c.h.b16 %v1532
    %v1931 = vunpack.c.l.b16 %v1533
    %v1932 = vunpack.c.h.b16 %v1533
    %v1933 = vunpack.c.l.b16 %v1534
    %v1934 = vunpack.c.h.b16 %v1534
    %v1935 = vunpack.c.l.b16 %v1535
    %v1936 = vunpack.c.h.b16 %v1535
    %v1937 = vunpack.c.l.b16 %v1536
    %v1938 = vunpack.c.h.b16 %v1536
    %v1939 = vunpack.c.l.b16 %v1537
    %v1940 = vunpack.c.h.b16 %v1537
    %v1941 = vunpack.c.l.b16 %v1538
    %v1942 = vunpack.c.h.b16 %v1538
    %v1943 = vunpack.c.l.b16 %v1539
    %v1944 = vunpack.c.h.b16 %v1539
    %v1945 = vunpack.c.l.b16 %v1540
    %v1946 = vunpack.c.h.b16 %v1540
    %v1947 = vunpack.c.l.b16 %v1541
    %v1948 = vunpack.c.h.b16 %v1541
    %v1949 = vunpack.c.l.b16 %v1542
    %v1950 = vunpack.c.h.b16 %v1542
    %v1951 = vunpack.c.l.b16 %v1543
    %v1952 = vunpack.c.h.b16 %v1543
    %v1953 = vunpack.c.l.b16 %v1544
    %v1954 = vunpack.c.h.b16 %v1544
    %v1955 = vunpack.c.l.b16 %v1545
    %v1956 = vunpack.c.h.b16 %v1545
    %v1957 = vunpack.c.l.b16 %v1546
    %v1958 = vunpack.c.h.b16 %v1546
    %v1959 = vunpack.c.l.b16 %v1547
    %v1960 = vunpack.c.h.b16 %v1547
    %v1961 = vunpack.c.l.b16 %v1548
    %v1962 = vunpack.c.h.b16 %v1548
    %v1963 = vunpack.c.l.b16 %v1549
    %v1964 = vunpack.c.h.b16 %v1549
    %v1965 = vunpack.c.l.b16 %v1550
    %v1966 = vunpack.c.h.b16 %v1550
    %v1967 = vpack.c.b16 %v1905, %v1903
    %v1968 = vpack.c.b16 %v1906, %v1904
    %v1969 = vpack.c.b16 %v1909, %v1907
    %v1970 = vpack.c.b16 %v1910, %v1908
    %v1971 = vpack.c.b16 %v1913, %v1911
    %v1972 = vpack.c.b16 %v1914, %v1912
    %v1973 = vpack.c.b16 %v1917, %v1915
    %v1974 = vpack.c.b16 %v1918, %v1916
    %v1975 = vpack.c.b16 %v1921, %v1919
    %v1976 = vpack.c.b16 %v1922, %v1920
    %v1977 = vpack.c.b16 %v1925, %v1923
    %v1978 = vpack.c.b16 %v1926, %v1924
    %v1979 = vpack.c.b16 %v1929, %v1927
    %v1980 = vpack.c.b16 %v1930, %v1928
    %v1981 = vpack.c.b16 %v1933, %v1931
    %v1982 = vpack.c.b16 %v1934, %v1932
    %v1983 = vpack.c.b16 %v1937, %v1935
    %v1984 = vpack.c.b16 %v1938, %v1936
    %v1985 = vpack.c.b16 %v1941, %v1939
    %v1986 = vpack.c.b16 %v1942, %v1940
    %v1987 = vpack.c.b16 %v1945, %v1943
    %v1988 = vpack.c.b16 %v1946, %v1944
    %v1989 = vpack.c.b16 %v1949, %v1947
    %v1990 = vpack.c.b16 %v1950, %v1948
    %v1991 = vpack.c.b16 %v1953, %v1951
    %v1992 = vpack.c.b16 %v1954, %v1952
    %v1993 = vpack.c.b16 %v1957, %v1955
    %v1994 = vpack.c.b16 %v1958, %v1956
    %v1995 = vpack.c.b16 %v1961, %v1959
    %v1996 = vpack.c.b16 %v1962, %v1960
    %v1997 = vpack.c.b16 %v1965, %v1963
    %v1998 = vpack.c.b16 %v1966, %v1964
    %2031 = vmatpush.bf16.msra.mxu0 %v1607
    %2032 = vmatpush.bf16.msra.mxu0 %v1599
    %2033 = vmatpush.bf16.msra.mxu0 %v1591
    %2034 = vmatpush.bf16.msra.mxu0 %v1583
    %2035 = vmatpush.bf16.msra.mxu0 %v1575
    %2036 = vmatpush.bf16.msra.mxu0 %v1567
    %2037 = vmatpush.bf16.msra.mxu0 %v1559
    %2038 = vmatpush.bf16.msra.mxu0 %v1551
    %2039 = vmatmul.bf16.gmra.mxu0 %v1967
    %v2040 = vpop.f32.mrf.mxu0
    %v2041 = vadd.f32 %v1714, %v2040
    %v2042 = vpop.f32.mrf.mxu0
    %v2043 = vadd.f32 %v1719, %v2042
    %2044 = vmatmul.bf16.gmra.mxu0 %v1969
    %v2045 = vpop.f32.mrf.mxu0
    %v2046 = vadd.f32 %v1724, %v2045
    %v2047 = vpop.f32.mrf.mxu0
    %v2048 = vadd.f32 %v1729, %v2047
    %2049 = vmatmul.bf16.gmra.mxu0 %v1971
    %v2050 = vpop.f32.mrf.mxu0
    %v2051 = vadd.f32 %v1734, %v2050
    %v2052 = vpop.f32.mrf.mxu0
    %v2053 = vadd.f32 %v1739, %v2052
    %2054 = vmatmul.bf16.gmra.mxu0 %v1973
    %v2055 = vpop.f32.mrf.mxu0
    %v2056 = vadd.f32 %v1744, %v2055
    %v2057 = vpop.f32.mrf.mxu0
    %v2058 = vadd.f32 %v1749, %v2057
    %2059 = vmatmul.bf16.gmra.mxu0 %v1975
    %v2060 = vpop.f32.mrf.mxu0
    %v2061 = vadd.f32 %v1754, %v2060
    %v2062 = vpop.f32.mrf.mxu0
    %v2063 = vadd.f32 %v1759, %v2062
    %2064 = vmatmul.bf16.gmra.mxu0 %v1977
    %v2065 = vpop.f32.mrf.mxu0
    %v2066 = vadd.f32 %v1764, %v2065
    %v2067 = vpop.f32.mrf.mxu0
    %v2068 = vadd.f32 %v1769, %v2067
    %2069 = vmatmul.bf16.gmra.mxu0 %v1979
    %v2070 = vpop.f32.mrf.mxu0
    %v2071 = vadd.f32 %v1774, %v2070
    %v2072 = vpop.f32.mrf.mxu0
    %v2073 = vadd.f32 %v1779, %v2072
    %2074 = vmatmul.bf16.gmra.mxu0 %v1981
    %v2075 = vpop.f32.mrf.mxu0
    %v2076 = vadd.f32 %v1784, %v2075
    %v2077 = vpop.f32.mrf.mxu0
    %v2078 = vadd.f32 %v1789, %v2077
    %2079 = vmatmul.bf16.gmra.mxu0 %v1983
    %v2080 = vpop.f32.mrf.mxu0
    %v2081 = vadd.f32 %v1794, %v2080
    %v2082 = vpop.f32.mrf.mxu0
    %v2083 = vadd.f32 %v1799, %v2082
    %2084 = vmatmul.bf16.gmra.mxu0 %v1985
    %v2085 = vpop.f32.mrf.mxu0
    %v2086 = vadd.f32 %v1804, %v2085
    %v2087 = vpop.f32.mrf.mxu0
    %v2088 = vadd.f32 %v1809, %v2087
    %2089 = vmatmul.bf16.gmra.mxu0 %v1987
    %v2090 = vpop.f32.mrf.mxu0
    %v2091 = vadd.f32 %v1814, %v2090
    %v2092 = vpop.f32.mrf.mxu0
    %v2093 = vadd.f32 %v1819, %v2092
    %2094 = vmatmul.bf16.gmra.mxu0 %v1989
    %v2095 = vpop.f32.mrf.mxu0
    %v2096 = vadd.f32 %v1824, %v2095
    %v2097 = vpop.f32.mrf.mxu0
    %v2098 = vadd.f32 %v1829, %v2097
    %2099 = vmatmul.bf16.gmra.mxu0 %v1991
    %v2100 = vpop.f32.mrf.mxu0
    %v2101 = vadd.f32 %v1834, %v2100
    %v2102 = vpop.f32.mrf.mxu0
    %v2103 = vadd.f32 %v1839, %v2102
    %2104 = vmatmul.bf16.gmra.mxu0 %v1993
    %v2105 = vpop.f32.mrf.mxu0
    %v2106 = vadd.f32 %v1844, %v2105
    %v2107 = vpop.f32.mrf.mxu0
    %v2108 = vadd.f32 %v1849, %v2107
    %2109 = vmatmul.bf16.gmra.mxu0 %v1995
    %v2110 = vpop.f32.mrf.mxu0
    %v2111 = vadd.f32 %v1854, %v2110
    %v2112 = vpop.f32.mrf.mxu0
    %v2113 = vadd.f32 %v1859, %v2112
    %2114 = vmatmul.bf16.gmra.mxu0 %v1997
    %v2115 = vpop.f32.mrf.mxu0
    %v2116 = vadd.f32 %v1864, %v2115
    %v2117 = vpop.f32.mrf.mxu0
    %v2118 = vadd.f32 %v1869, %v2117
    %2119 = vdwg.mxu0
    %2120 = vmatpush.bf16.msra.mxu0 %v1671
    %2121 = vmatpush.bf16.msra.mxu0 %v1663
    %2122 = vmatpush.bf16.msra.mxu0 %v1655
    %2123 = vmatpush.bf16.msra.mxu0 %v1647
    %2124 = vmatpush.bf16.msra.mxu0 %v1639
    %2125 = vmatpush.bf16.msra.mxu0 %v1631
    %2126 = vmatpush.bf16.msra.mxu0 %v1623
    %2127 = vmatpush.bf16.msra.mxu0 %v1615
    %2128 = vmatmul.bf16.gmra.mxu0 %v1968
    %v2129 = vpop.f32.mrf.mxu0
    %v2130 = vadd.f32 %v2041, %v2129
    %v2131 = vpop.f32.mrf.mxu0
    %v2132 = vadd.f32 %v2043, %v2131
    %2133 = vmatmul.bf16.gmra.mxu0 %v1970
    %v2134 = vpop.f32.mrf.mxu0
    %v2135 = vadd.f32 %v2046, %v2134
    %v2136 = vpop.f32.mrf.mxu0
    %v2137 = vadd.f32 %v2048, %v2136
    %2138 = vmatmul.bf16.gmra.mxu0 %v1972
    %v2139 = vpop.f32.mrf.mxu0
    %v2140 = vadd.f32 %v2051, %v2139
    %v2141 = vpop.f32.mrf.mxu0
    %v2142 = vadd.f32 %v2053, %v2141
    %2143 = vmatmul.bf16.gmra.mxu0 %v1974
    %v2144 = vpop.f32.mrf.mxu0
    %v2145 = vadd.f32 %v2056, %v2144
    %v2146 = vpop.f32.mrf.mxu0
    %v2147 = vadd.f32 %v2058, %v2146
    %2148 = vmatmul.bf16.gmra.mxu0 %v1976
    %v2149 = vpop.f32.mrf.mxu0
    %v2150 = vadd.f32 %v2061, %v2149
    %v2151 = vpop.f32.mrf.mxu0
    %v2152 = vadd.f32 %v2063, %v2151
    %2153 = vmatmul.bf16.gmra.mxu0 %v1978
    %v2154 = vpop.f32.mrf.mxu0
    %v2155 = vadd.f32 %v2066, %v2154
    %v2156 = vpop.f32.mrf.mxu0
    %v2157 = vadd.f32 %v2068, %v2156
    %2158 = vmatmul.bf16.gmra.mxu0 %v1980
    %v2159 = vpop.f32.mrf.mxu0
    %v2160 = vadd.f32 %v2071, %v2159
    %v2161 = vpop.f32.mrf.mxu0
    %v2162 = vadd.f32 %v2073, %v2161
    %2163 = vmatmul.bf16.gmra.mxu0 %v1982
    %v2164 = vpop.f32.mrf.mxu0
    %v2165 = vadd.f32 %v2076, %v2164
    %v2166 = vpop.f32.mrf.mxu0
    %v2167 = vadd.f32 %v2078, %v2166
    %2168 = vmatmul.bf16.gmra.mxu0 %v1984
    %v2169 = vpop.f32.mrf.mxu0
    %v2170 = vadd.f32 %v2081, %v2169
    %v2171 = vpop.f32.mrf.mxu0
    %v2172 = vadd.f32 %v2083, %v2171
    %2173 = vmatmul.bf16.gmra.mxu0 %v1986
    %v2174 = vpop.f32.mrf.mxu0
    %v2175 = vadd.f32 %v2086, %v2174
    %v2176 = vpop.f32.mrf.mxu0
    %v2177 = vadd.f32 %v2088, %v2176
    %2178 = vmatmul.bf16.gmra.mxu0 %v1988
    %v2179 = vpop.f32.mrf.mxu0
    %v2180 = vadd.f32 %v2091, %v2179
    %v2181 = vpop.f32.mrf.mxu0
    %v2182 = vadd.f32 %v2093, %v2181
    %2183 = vmatmul.bf16.gmra.mxu0 %v1990
    %v2184 = vpop.f32.mrf.mxu0
    %v2185 = vadd.f32 %v2096, %v2184
    %v2186 = vpop.f32.mrf.mxu0
    %v2187 = vadd.f32 %v2098, %v2186
    %2188 = vmatmul.bf16.gmra.mxu0 %v1992
    %v2189 = vpop.f32.mrf.mxu0
    %v2190 = vadd.f32 %v2101, %v2189
    %v2191 = vpop.f32.mrf.mxu0
    %v2192 = vadd.f32 %v2103, %v2191
    %2193 = vmatmul.bf16.gmra.mxu0 %v1994
    %v2194 = vpop.f32.mrf.mxu0
    %v2195 = vadd.f32 %v2106, %v2194
    %v2196 = vpop.f32.mrf.mxu0
    %v2197 = vadd.f32 %v2108, %v2196
    %2198 = vmatmul.bf16.gmra.mxu0 %v1996
    %v2199 = vpop.f32.mrf.mxu0
    %v2200 = vadd.f32 %v2111, %v2199
    %v2201 = vpop.f32.mrf.mxu0
    %v2202 = vadd.f32 %v2113, %v2201
    %2203 = vmatmul.bf16.gmra.mxu0 %v1998
    %v2204 = vpop.f32.mrf.mxu0
    %v2205 = vadd.f32 %v2116, %v2204
    %v2206 = vpop.f32.mrf.mxu0
    %v2207 = vadd.f32 %v2118, %v2206
    %2208 = vdwg.mxu0
    %2209 = vmatpush.bf16.msra.mxu0 %v1608
    %2210 = vmatpush.bf16.msra.mxu0 %v1600
    %2211 = vmatpush.bf16.msra.mxu0 %v1592
    %2212 = vmatpush.bf16.msra.mxu0 %v1584
    %2213 = vmatpush.bf16.msra.mxu0 %v1576
    %2214 = vmatpush.bf16.msra.mxu0 %v1568
    %2215 = vmatpush.bf16.msra.mxu0 %v1560
    %2216 = vmatpush.bf16.msra.mxu0 %v1552
    %2217 = vmatmul.bf16.gmra.mxu0 %v1967
    %v2218 = vpop.f32.mrf.mxu0
    %v2219 = vadd.f32 %v1714, %v2218
    %v2220 = vpop.f32.mrf.mxu0
    %v2221 = vadd.f32 %v1719, %v2220
    %2222 = vmatmul.bf16.gmra.mxu0 %v1969
    %v2223 = vpop.f32.mrf.mxu0
    %v2224 = vadd.f32 %v1724, %v2223
    %v2225 = vpop.f32.mrf.mxu0
    %v2226 = vadd.f32 %v1729, %v2225
    %2227 = vmatmul.bf16.gmra.mxu0 %v1971
    %v2228 = vpop.f32.mrf.mxu0
    %v2229 = vadd.f32 %v1734, %v2228
    %v2230 = vpop.f32.mrf.mxu0
    %v2231 = vadd.f32 %v1739, %v2230
    %2232 = vmatmul.bf16.gmra.mxu0 %v1973
    %v2233 = vpop.f32.mrf.mxu0
    %v2234 = vadd.f32 %v1744, %v2233
    %v2235 = vpop.f32.mrf.mxu0
    %v2236 = vadd.f32 %v1749, %v2235
    %2237 = vmatmul.bf16.gmra.mxu0 %v1975
    %v2238 = vpop.f32.mrf.mxu0
    %v2239 = vadd.f32 %v1754, %v2238
    %v2240 = vpop.f32.mrf.mxu0
    %v2241 = vadd.f32 %v1759, %v2240
    %2242 = vmatmul.bf16.gmra.mxu0 %v1977
    %v2243 = vpop.f32.mrf.mxu0
    %v2244 = vadd.f32 %v1764, %v2243
    %v2245 = vpop.f32.mrf.mxu0
    %v2246 = vadd.f32 %v1769, %v2245
    %2247 = vmatmul.bf16.gmra.mxu0 %v1979
    %v2248 = vpop.f32.mrf.mxu0
    %v2249 = vadd.f32 %v1774, %v2248
    %v2250 = vpop.f32.mrf.mxu0
    %v2251 = vadd.f32 %v1779, %v2250
    %2252 = vmatmul.bf16.gmra.mxu0 %v1981
    %v2253 = vpop.f32.mrf.mxu0
    %v2254 = vadd.f32 %v1784, %v2253
    %v2255 = vpop.f32.mrf.mxu0
    %v2256 = vadd.f32 %v1789, %v2255
    %2257 = vmatmul.bf16.gmra.mxu0 %v1983
    %v2258 = vpop.f32.mrf.mxu0
    %v2259 = vadd.f32 %v1794, %v2258
    %v2260 = vpop.f32.mrf.mxu0
    %v2261 = vadd.f32 %v1799, %v2260
    %2262 = vmatmul.bf16.gmra.mxu0 %v1985
    %v2263 = vpop.f32.mrf.mxu0
    %v2264 = vadd.f32 %v1804, %v2263
    %v2265 = vpop.f32.mrf.mxu0
    %v2266 = vadd.f32 %v1809, %v2265
    %2267 = vmatmul.bf16.gmra.mxu0 %v1987
    %v2268 = vpop.f32.mrf.mxu0
    %v2269 = vadd.f32 %v1814, %v2268
    %v2270 = vpop.f32.mrf.mxu0
    %v2271 = vadd.f32 %v1819, %v2270
    %2272 = vmatmul.bf16.gmra.mxu0 %v1989
    %v2273 = vpop.f32.mrf.mxu0
    %v2274 = vadd.f32 %v1824, %v2273
    %v2275 = vpop.f32.mrf.mxu0
    %v2276 = vadd.f32 %v1829, %v2275
    %2277 = vmatmul.bf16.gmra.mxu0 %v1991
    %v2278 = vpop.f32.mrf.mxu0
    %v2279 = vadd.f32 %v1834, %v2278
    %v2280 = vpop.f32.mrf.mxu0
    %v2281 = vadd.f32 %v1839, %v2280
    %2282 = vmatmul.bf16.gmra.mxu0 %v1993
    %v2283 = vpop.f32.mrf.mxu0
    %v2284 = vadd.f32 %v1844, %v2283
    %v2285 = vpop.f32.mrf.mxu0
    %v2286 = vadd.f32 %v1849, %v2285
    %2287 = vmatmul.bf16.gmra.mxu0 %v1995
    %v2288 = vpop.f32.mrf.mxu0
    %v2289 = vadd.f32 %v1854, %v2288
    %v2290 = vpop.f32.mrf.mxu0
    %v2291 = vadd.f32 %v1859, %v2290
    %2292 = vmatmul.bf16.gmra.mxu0 %v1997
    %v2293 = vpop.f32.mrf.mxu0
    %v2294 = vadd.f32 %v1864, %v2293
    %v2295 = vpop.f32.mrf.mxu0
    %v2296 = vadd.f32 %v1869, %v2295
    %2297 = vdwg.mxu0
    %2298 = vmatpush.bf16.msra.mxu0 %v1672
    %2299 = vmatpush.bf16.msra.mxu0 %v1664
    %2300 = vmatpush.bf16.msra.mxu0 %v1656
    %2301 = vmatpush.bf16.msra.mxu0 %v1648
    %2302 = vmatpush.bf16.msra.mxu0 %v1640
    %2303 = vmatpush.bf16.msra.mxu0 %v1632
    %2304 = vmatpush.bf16.msra.mxu0 %v1624
    %2305 = vmatpush.bf16.msra.mxu0 %v1616
    %2306 = vmatmul.bf16.gmra.mxu0 %v1968
    %v2307 = vpop.f32.mrf.mxu0
    %v2308 = vadd.f32 %v2219, %v2307
    %v2309 = vpop.f32.mrf.mxu0
    %v2310 = vadd.f32 %v2221, %v2309
    %2311 = vmatmul.bf16.gmra.mxu0 %v1970
    %v2312 = vpop.f32.mrf.mxu0
    %v2313 = vadd.f32 %v2224, %v2312
    %v2314 = vpop.f32.mrf.mxu0
    %v2315 = vadd.f32 %v2226, %v2314
    %2316 = vmatmul.bf16.gmra.mxu0 %v1972
    %v2317 = vpop.f32.mrf.mxu0
    %v2318 = vadd.f32 %v2229, %v2317
    %v2319 = vpop.f32.mrf.mxu0
    %v2320 = vadd.f32 %v2231, %v2319
    %2321 = vmatmul.bf16.gmra.mxu0 %v1974
    %v2322 = vpop.f32.mrf.mxu0
    %v2323 = vadd.f32 %v2234, %v2322
    %v2324 = vpop.f32.mrf.mxu0
    %v2325 = vadd.f32 %v2236, %v2324
    %2326 = vmatmul.bf16.gmra.mxu0 %v1976
    %v2327 = vpop.f32.mrf.mxu0
    %v2328 = vadd.f32 %v2239, %v2327
    %v2329 = vpop.f32.mrf.mxu0
    %v2330 = vadd.f32 %v2241, %v2329
    %2331 = vmatmul.bf16.gmra.mxu0 %v1978
    %v2332 = vpop.f32.mrf.mxu0
    %v2333 = vadd.f32 %v2244, %v2332
    %v2334 = vpop.f32.mrf.mxu0
    %v2335 = vadd.f32 %v2246, %v2334
    %2336 = vmatmul.bf16.gmra.mxu0 %v1980
    %v2337 = vpop.f32.mrf.mxu0
    %v2338 = vadd.f32 %v2249, %v2337
    %v2339 = vpop.f32.mrf.mxu0
    %v2340 = vadd.f32 %v2251, %v2339
    %2341 = vmatmul.bf16.gmra.mxu0 %v1982
    %v2342 = vpop.f32.mrf.mxu0
    %v2343 = vadd.f32 %v2254, %v2342
    %v2344 = vpop.f32.mrf.mxu0
    %v2345 = vadd.f32 %v2256, %v2344
    %2346 = vmatmul.bf16.gmra.mxu0 %v1984
    %v2347 = vpop.f32.mrf.mxu0
    %v2348 = vadd.f32 %v2259, %v2347
    %v2349 = vpop.f32.mrf.mxu0
    %v2350 = vadd.f32 %v2261, %v2349
    %2351 = vmatmul.bf16.gmra.mxu0 %v1986
    %v2352 = vpop.f32.mrf.mxu0
    %v2353 = vadd.f32 %v2264, %v2352
    %v2354 = vpop.f32.mrf.mxu0
    %v2355 = vadd.f32 %v2266, %v2354
    %2356 = vmatmul.bf16.gmra.mxu0 %v1988
    %v2357 = vpop.f32.mrf.mxu0
    %v2358 = vadd.f32 %v2269, %v2357
    %v2359 = vpop.f32.mrf.mxu0
    %v2360 = vadd.f32 %v2271, %v2359
    %2361 = vmatmul.bf16.gmra.mxu0 %v1990
    %v2362 = vpop.f32.mrf.mxu0
    %v2363 = vadd.f32 %v2274, %v2362
    %v2364 = vpop.f32.mrf.mxu0
    %v2365 = vadd.f32 %v2276, %v2364
    %2366 = vmatmul.bf16.gmra.mxu0 %v1992
    %v2367 = vpop.f32.mrf.mxu0
    %v2368 = vadd.f32 %v2279, %v2367
    %v2369 = vpop.f32.mrf.mxu0
    %v2370 = vadd.f32 %v2281, %v2369
    %2371 = vmatmul.bf16.gmra.mxu0 %v1994
    %v2372 = vpop.f32.mrf.mxu0
    %v2373 = vadd.f32 %v2284, %v2372
    %v2374 = vpop.f32.mrf.mxu0
    %v2375 = vadd.f32 %v2286, %v2374
    %2376 = vmatmul.bf16.gmra.mxu0 %v1996
    %v2377 = vpop.f32.mrf.mxu0
    %v2378 = vadd.f32 %v2289, %v2377
    %v2379 = vpop.f32.mrf.mxu0
    %v2380 = vadd.f32 %v2291, %v2379
    %2381 = vmatmul.bf16.gmra.mxu0 %v1998
    %v2382 = vpop.f32.mrf.mxu0
    %v2383 = vadd.f32 %v2294, %v2382
    %v2384 = vpop.f32.mrf.mxu0
    %v2385 = vadd.f32 %v2296, %v2384
    %2386 = vdwg.mxu0
    %2387 = vmatpush.bf16.msra.mxu0 %v1609
    %2388 = vmatpush.bf16.msra.mxu0 %v1601
    %2389 = vmatpush.bf16.msra.mxu0 %v1593
    %2390 = vmatpush.bf16.msra.mxu0 %v1585
    %2391 = vmatpush.bf16.msra.mxu0 %v1577
    %2392 = vmatpush.bf16.msra.mxu0 %v1569
    %2393 = vmatpush.bf16.msra.mxu0 %v1561
    %2394 = vmatpush.bf16.msra.mxu0 %v1553
    %2395 = vmatmul.bf16.gmra.mxu0 %v1967
    %v2396 = vpop.f32.mrf.mxu0
    %v2397 = vadd.f32 %v1714, %v2396
    %v2398 = vpop.f32.mrf.mxu0
    %v2399 = vadd.f32 %v1719, %v2398
    %2400 = vmatmul.bf16.gmra.mxu0 %v1969
    %v2401 = vpop.f32.mrf.mxu0
    %v2402 = vadd.f32 %v1724, %v2401
    %v2403 = vpop.f32.mrf.mxu0
    %v2404 = vadd.f32 %v1729, %v2403
    %2405 = vmatmul.bf16.gmra.mxu0 %v1971
    %v2406 = vpop.f32.mrf.mxu0
    %v2407 = vadd.f32 %v1734, %v2406
    %v2408 = vpop.f32.mrf.mxu0
    %v2409 = vadd.f32 %v1739, %v2408
    %2410 = vmatmul.bf16.gmra.mxu0 %v1973
    %v2411 = vpop.f32.mrf.mxu0
    %v2412 = vadd.f32 %v1744, %v2411
    %v2413 = vpop.f32.mrf.mxu0
    %v2414 = vadd.f32 %v1749, %v2413
    %2415 = vmatmul.bf16.gmra.mxu0 %v1975
    %v2416 = vpop.f32.mrf.mxu0
    %v2417 = vadd.f32 %v1754, %v2416
    %v2418 = vpop.f32.mrf.mxu0
    %v2419 = vadd.f32 %v1759, %v2418
    %2420 = vmatmul.bf16.gmra.mxu0 %v1977
    %v2421 = vpop.f32.mrf.mxu0
    %v2422 = vadd.f32 %v1764, %v2421
    %v2423 = vpop.f32.mrf.mxu0
    %v2424 = vadd.f32 %v1769, %v2423
    %2425 = vmatmul.bf16.gmra.mxu0 %v1979
    %v2426 = vpop.f32.mrf.mxu0
    %v2427 = vadd.f32 %v1774, %v2426
    %v2428 = vpop.f32.mrf.mxu0
    %v2429 = vadd.f32 %v1779, %v2428
    %2430 = vmatmul.bf16.gmra.mxu0 %v1981
    %v2431 = vpop.f32.mrf.mxu0
    %v2432 = vadd.f32 %v1784, %v2431
    %v2433 = vpop.f32.mrf.mxu0
    %v2434 = vadd.f32 %v1789, %v2433
    %2435 = vmatmul.bf16.gmra.mxu0 %v1983
    %v2436 = vpop.f32.mrf.mxu0
    %v2437 = vadd.f32 %v1794, %v2436
    %v2438 = vpop.f32.mrf.mxu0
    %v2439 = vadd.f32 %v1799, %v2438
    %2440 = vmatmul.bf16.gmra.mxu0 %v1985
    %v2441 = vpop.f32.mrf.mxu0
    %v2442 = vadd.f32 %v1804, %v2441
    %v2443 = vpop.f32.mrf.mxu0
    %v2444 = vadd.f32 %v1809, %v2443
    %2445 = vmatmul.bf16.gmra.mxu0 %v1987
    %v2446 = vpop.f32.mrf.mxu0
    %v2447 = vadd.f32 %v1814, %v2446
    %v2448 = vpop.f32.mrf.mxu0
    %v2449 = vadd.f32 %v1819, %v2448
    %2450 = vmatmul.bf16.gmra.mxu0 %v1989
    %v2451 = vpop.f32.mrf.mxu0
    %v2452 = vadd.f32 %v1824, %v2451
    %v2453 = vpop.f32.mrf.mxu0
    %v2454 = vadd.f32 %v1829, %v2453
    %2455 = vmatmul.bf16.gmra.mxu0 %v1991
    %v2456 = vpop.f32.mrf.mxu0
    %v2457 = vadd.f32 %v1834, %v2456
    %v2458 = vpop.f32.mrf.mxu0
    %v2459 = vadd.f32 %v1839, %v2458
    %2460 = vmatmul.bf16.gmra.mxu0 %v1993
    %v2461 = vpop.f32.mrf.mxu0
    %v2462 = vadd.f32 %v1844, %v2461
    %v2463 = vpop.f32.mrf.mxu0
    %v2464 = vadd.f32 %v1849, %v2463
    %2465 = vmatmul.bf16.gmra.mxu0 %v1995
    %v2466 = vpop.f32.mrf.mxu0
    %v2467 = vadd.f32 %v1854, %v2466
    %v2468 = vpop.f32.mrf.mxu0
    %v2469 = vadd.f32 %v1859, %v2468
    %2470 = vmatmul.bf16.gmra.mxu0 %v1997
    %v2471 = vpop.f32.mrf.mxu0
    %v2472 = vadd.f32 %v1864, %v2471
    %v2473 = vpop.f32.mrf.mxu0
    %v2474 = vadd.f32 %v1869, %v2473
    %2475 = vdwg.mxu0
    %2476 = vmatpush.bf16.msra.mxu0 %v1673
    %2477 = vmatpush.bf16.msra.mxu0 %v1665
    %2478 = vmatpush.bf16.msra.mxu0 %v1657
    %2479 = vmatpush.bf16.msra.mxu0 %v1649
    %2480 = vmatpush.bf16.msra.mxu0 %v1641
    %2481 = vmatpush.bf16.msra.mxu0 %v1633
    %2482 = vmatpush.bf16.msra.mxu0 %v1625
    %2483 = vmatpush.bf16.msra.mxu0 %v1617
    %2484 = vmatmul.bf16.gmra.mxu0 %v1968
    %v2485 = vpop.f32.mrf.mxu0
    %v2486 = vadd.f32 %v2397, %v2485
    %v2487 = vpop.f32.mrf.mxu0
    %v2488 = vadd.f32 %v2399, %v2487
    %2489 = vmatmul.bf16.gmra.mxu0 %v1970
    %v2490 = vpop.f32.mrf.mxu0
    %v2491 = vadd.f32 %v2402, %v2490
    %v2492 = vpop.f32.mrf.mxu0
    %v2493 = vadd.f32 %v2404, %v2492
    %2494 = vmatmul.bf16.gmra.mxu0 %v1972
    %v2495 = vpop.f32.mrf.mxu0
    %v2496 = vadd.f32 %v2407, %v2495
    %v2497 = vpop.f32.mrf.mxu0
    %v2498 = vadd.f32 %v2409, %v2497
    %2499 = vmatmul.bf16.gmra.mxu0 %v1974
    %v2500 = vpop.f32.mrf.mxu0
    %v2501 = vadd.f32 %v2412, %v2500
    %v2502 = vpop.f32.mrf.mxu0
    %v2503 = vadd.f32 %v2414, %v2502
    %2504 = vmatmul.bf16.gmra.mxu0 %v1976
    %v2505 = vpop.f32.mrf.mxu0
    %v2506 = vadd.f32 %v2417, %v2505
    %v2507 = vpop.f32.mrf.mxu0
    %v2508 = vadd.f32 %v2419, %v2507
    %2509 = vmatmul.bf16.gmra.mxu0 %v1978
    %v2510 = vpop.f32.mrf.mxu0
    %v2511 = vadd.f32 %v2422, %v2510
    %v2512 = vpop.f32.mrf.mxu0
    %v2513 = vadd.f32 %v2424, %v2512
    %2514 = vmatmul.bf16.gmra.mxu0 %v1980
    %v2515 = vpop.f32.mrf.mxu0
    %v2516 = vadd.f32 %v2427, %v2515
    %v2517 = vpop.f32.mrf.mxu0
    %v2518 = vadd.f32 %v2429, %v2517
    %2519 = vmatmul.bf16.gmra.mxu0 %v1982
    %v2520 = vpop.f32.mrf.mxu0
    %v2521 = vadd.f32 %v2432, %v2520
    %v2522 = vpop.f32.mrf.mxu0
    %v2523 = vadd.f32 %v2434, %v2522
    %2524 = vmatmul.bf16.gmra.mxu0 %v1984
    %v2525 = vpop.f32.mrf.mxu0
    %v2526 = vadd.f32 %v2437, %v2525
    %v2527 = vpop.f32.mrf.mxu0
    %v2528 = vadd.f32 %v2439, %v2527
    %2529 = vmatmul.bf16.gmra.mxu0 %v1986
    %v2530 = vpop.f32.mrf.mxu0
    %v2531 = vadd.f32 %v2442, %v2530
    %v2532 = vpop.f32.mrf.mxu0
    %v2533 = vadd.f32 %v2444, %v2532
    %2534 = vmatmul.bf16.gmra.mxu0 %v1988
    %v2535 = vpop.f32.mrf.mxu0
    %v2536 = vadd.f32 %v2447, %v2535
    %v2537 = vpop.f32.mrf.mxu0
    %v2538 = vadd.f32 %v2449, %v2537
    %2539 = vmatmul.bf16.gmra.mxu0 %v1990
    %v2540 = vpop.f32.mrf.mxu0
    %v2541 = vadd.f32 %v2452, %v2540
    %v2542 = vpop.f32.mrf.mxu0
    %v2543 = vadd.f32 %v2454, %v2542
    %2544 = vmatmul.bf16.gmra.mxu0 %v1992
    %v2545 = vpop.f32.mrf.mxu0
    %v2546 = vadd.f32 %v2457, %v2545
    %v2547 = vpop.f32.mrf.mxu0
    %v2548 = vadd.f32 %v2459, %v2547
    %2549 = vmatmul.bf16.gmra.mxu0 %v1994
    %v2550 = vpop.f32.mrf.mxu0
    %v2551 = vadd.f32 %v2462, %v2550
    %v2552 = vpop.f32.mrf.mxu0
    %v2553 = vadd.f32 %v2464, %v2552
    %2554 = vmatmul.bf16.gmra.mxu0 %v1996
    %v2555 = vpop.f32.mrf.mxu0
    %v2556 = vadd.f32 %v2467, %v2555
    %v2557 = vpop.f32.mrf.mxu0
    %v2558 = vadd.f32 %v2469, %v2557
    %2559 = vmatmul.bf16.gmra.mxu0 %v1998
    %v2560 = vpop.f32.mrf.mxu0
    %v2561 = vadd.f32 %v2472, %v2560
    %v2562 = vpop.f32.mrf.mxu0
    %v2563 = vadd.f32 %v2474, %v2562
    %2564 = vdwg.mxu0
    %2565 = vmatpush.bf16.msra.mxu0 %v1610
    %2566 = vmatpush.bf16.msra.mxu0 %v1602
    %2567 = vmatpush.bf16.msra.mxu0 %v1594
    %2568 = vmatpush.bf16.msra.mxu0 %v1586
    %2569 = vmatpush.bf16.msra.mxu0 %v1578
    %2570 = vmatpush.bf16.msra.mxu0 %v1570
    %2571 = vmatpush.bf16.msra.mxu0 %v1562
    %2572 = vmatpush.bf16.msra.mxu0 %v1554
    %2573 = vmatmul.bf16.gmra.mxu0 %v1967
    %v2574 = vpop.f32.mrf.mxu0
    %v2575 = vadd.f32 %v1714, %v2574
    %v2576 = vpop.f32.mrf.mxu0
    %v2577 = vadd.f32 %v1719, %v2576
    %2578 = vmatmul.bf16.gmra.mxu0 %v1969
    %v2579 = vpop.f32.mrf.mxu0
    %v2580 = vadd.f32 %v1724, %v2579
    %v2581 = vpop.f32.mrf.mxu0
    %v2582 = vadd.f32 %v1729, %v2581
    %2583 = vmatmul.bf16.gmra.mxu0 %v1971
    %v2584 = vpop.f32.mrf.mxu0
    %v2585 = vadd.f32 %v1734, %v2584
    %v2586 = vpop.f32.mrf.mxu0
    %v2587 = vadd.f32 %v1739, %v2586
    %2588 = vmatmul.bf16.gmra.mxu0 %v1973
    %v2589 = vpop.f32.mrf.mxu0
    %v2590 = vadd.f32 %v1744, %v2589
    %v2591 = vpop.f32.mrf.mxu0
    %v2592 = vadd.f32 %v1749, %v2591
    %2593 = vmatmul.bf16.gmra.mxu0 %v1975
    %v2594 = vpop.f32.mrf.mxu0
    %v2595 = vadd.f32 %v1754, %v2594
    %v2596 = vpop.f32.mrf.mxu0
    %v2597 = vadd.f32 %v1759, %v2596
    %2598 = vmatmul.bf16.gmra.mxu0 %v1977
    %v2599 = vpop.f32.mrf.mxu0
    %v2600 = vadd.f32 %v1764, %v2599
    %v2601 = vpop.f32.mrf.mxu0
    %v2602 = vadd.f32 %v1769, %v2601
    %2603 = vmatmul.bf16.gmra.mxu0 %v1979
    %v2604 = vpop.f32.mrf.mxu0
    %v2605 = vadd.f32 %v1774, %v2604
    %v2606 = vpop.f32.mrf.mxu0
    %v2607 = vadd.f32 %v1779, %v2606
    %2608 = vmatmul.bf16.gmra.mxu0 %v1981
    %v2609 = vpop.f32.mrf.mxu0
    %v2610 = vadd.f32 %v1784, %v2609
    %v2611 = vpop.f32.mrf.mxu0
    %v2612 = vadd.f32 %v1789, %v2611
    %2613 = vmatmul.bf16.gmra.mxu0 %v1983
    %v2614 = vpop.f32.mrf.mxu0
    %v2615 = vadd.f32 %v1794, %v2614
    %v2616 = vpop.f32.mrf.mxu0
    %v2617 = vadd.f32 %v1799, %v2616
    %2618 = vmatmul.bf16.gmra.mxu0 %v1985
    %v2619 = vpop.f32.mrf.mxu0
    %v2620 = vadd.f32 %v1804, %v2619
    %v2621 = vpop.f32.mrf.mxu0
    %v2622 = vadd.f32 %v1809, %v2621
    %2623 = vmatmul.bf16.gmra.mxu0 %v1987
    %v2624 = vpop.f32.mrf.mxu0
    %v2625 = vadd.f32 %v1814, %v2624
    %v2626 = vpop.f32.mrf.mxu0
    %v2627 = vadd.f32 %v1819, %v2626
    %2628 = vmatmul.bf16.gmra.mxu0 %v1989
    %v2629 = vpop.f32.mrf.mxu0
    %v2630 = vadd.f32 %v1824, %v2629
    %v2631 = vpop.f32.mrf.mxu0
    %v2632 = vadd.f32 %v1829, %v2631
    %2633 = vmatmul.bf16.gmra.mxu0 %v1991
    %v2634 = vpop.f32.mrf.mxu0
    %v2635 = vadd.f32 %v1834, %v2634
    %v2636 = vpop.f32.mrf.mxu0
    %v2637 = vadd.f32 %v1839, %v2636
    %2638 = vmatmul.bf16.gmra.mxu0 %v1993
    %v2639 = vpop.f32.mrf.mxu0
    %v2640 = vadd.f32 %v1844, %v2639
    %v2641 = vpop.f32.mrf.mxu0
    %v2642 = vadd.f32 %v1849, %v2641
    %2643 = vmatmul.bf16.gmra.mxu0 %v1995
    %v2644 = vpop.f32.mrf.mxu0
    %v2645 = vadd.f32 %v1854, %v2644
    %v2646 = vpop.f32.mrf.mxu0
    %v2647 = vadd.f32 %v1859, %v2646
    %2648 = vmatmul.bf16.gmra.mxu0 %v1997
    %v2649 = vpop.f32.mrf.mxu0
    %v2650 = vadd.f32 %v1864, %v2649
    %v2651 = vpop.f32.mrf.mxu0
    %v2652 = vadd.f32 %v1869, %v2651
    %2653 = vdwg.mxu0
    %2654 = vmatpush.bf16.msra.mxu0 %v1674
    %2655 = vmatpush.bf16.msra.mxu0 %v1666
    %2656 = vmatpush.bf16.msra.mxu0 %v1658
    %2657 = vmatpush.bf16.msra.mxu0 %v1650
    %2658 = vmatpush.bf16.msra.mxu0 %v1642
    %2659 = vmatpush.bf16.msra.mxu0 %v1634
    %2660 = vmatpush.bf16.msra.mxu0 %v1626
    %2661 = vmatpush.bf16.msra.mxu0 %v1618
    %2662 = vmatmul.bf16.gmra.mxu0 %v1968
    %v2663 = vpop.f32.mrf.mxu0
    %v2664 = vadd.f32 %v2575, %v2663
    %v2665 = vpop.f32.mrf.mxu0
    %v2666 = vadd.f32 %v2577, %v2665
    %2667 = vmatmul.bf16.gmra.mxu0 %v1970
    %v2668 = vpop.f32.mrf.mxu0
    %v2669 = vadd.f32 %v2580, %v2668
    %v2670 = vpop.f32.mrf.mxu0
    %v2671 = vadd.f32 %v2582, %v2670
    %2672 = vmatmul.bf16.gmra.mxu0 %v1972
    %v2673 = vpop.f32.mrf.mxu0
    %v2674 = vadd.f32 %v2585, %v2673
    %v2675 = vpop.f32.mrf.mxu0
    %v2676 = vadd.f32 %v2587, %v2675
    %2677 = vmatmul.bf16.gmra.mxu0 %v1974
    %v2678 = vpop.f32.mrf.mxu0
    %v2679 = vadd.f32 %v2590, %v2678
    %v2680 = vpop.f32.mrf.mxu0
    %v2681 = vadd.f32 %v2592, %v2680
    %2682 = vmatmul.bf16.gmra.mxu0 %v1976
    %v2683 = vpop.f32.mrf.mxu0
    %v2684 = vadd.f32 %v2595, %v2683
    %v2685 = vpop.f32.mrf.mxu0
    %v2686 = vadd.f32 %v2597, %v2685
    %2687 = vmatmul.bf16.gmra.mxu0 %v1978
    %v2688 = vpop.f32.mrf.mxu0
    %v2689 = vadd.f32 %v2600, %v2688
    %v2690 = vpop.f32.mrf.mxu0
    %v2691 = vadd.f32 %v2602, %v2690
    %2692 = vmatmul.bf16.gmra.mxu0 %v1980
    %v2693 = vpop.f32.mrf.mxu0
    %v2694 = vadd.f32 %v2605, %v2693
    %v2695 = vpop.f32.mrf.mxu0
    %v2696 = vadd.f32 %v2607, %v2695
    %2697 = vmatmul.bf16.gmra.mxu0 %v1982
    %v2698 = vpop.f32.mrf.mxu0
    %v2699 = vadd.f32 %v2610, %v2698
    %v2700 = vpop.f32.mrf.mxu0
    %v2701 = vadd.f32 %v2612, %v2700
    %2702 = vmatmul.bf16.gmra.mxu0 %v1984
    %v2703 = vpop.f32.mrf.mxu0
    %v2704 = vadd.f32 %v2615, %v2703
    %v2705 = vpop.f32.mrf.mxu0
    %v2706 = vadd.f32 %v2617, %v2705
    %2707 = vmatmul.bf16.gmra.mxu0 %v1986
    %v2708 = vpop.f32.mrf.mxu0
    %v2709 = vadd.f32 %v2620, %v2708
    %v2710 = vpop.f32.mrf.mxu0
    %v2711 = vadd.f32 %v2622, %v2710
    %2712 = vmatmul.bf16.gmra.mxu0 %v1988
    %v2713 = vpop.f32.mrf.mxu0
    %v2714 = vadd.f32 %v2625, %v2713
    %v2715 = vpop.f32.mrf.mxu0
    %v2716 = vadd.f32 %v2627, %v2715
    %2717 = vmatmul.bf16.gmra.mxu0 %v1990
    %v2718 = vpop.f32.mrf.mxu0
    %v2719 = vadd.f32 %v2630, %v2718
    %v2720 = vpop.f32.mrf.mxu0
    %v2721 = vadd.f32 %v2632, %v2720
    %2722 = vmatmul.bf16.gmra.mxu0 %v1992
    %v2723 = vpop.f32.mrf.mxu0
    %v2724 = vadd.f32 %v2635, %v2723
    %v2725 = vpop.f32.mrf.mxu0
    %v2726 = vadd.f32 %v2637, %v2725
    %2727 = vmatmul.bf16.gmra.mxu0 %v1994
    %v2728 = vpop.f32.mrf.mxu0
    %v2729 = vadd.f32 %v2640, %v2728
    %v2730 = vpop.f32.mrf.mxu0
    %v2731 = vadd.f32 %v2642, %v2730
    %2732 = vmatmul.bf16.gmra.mxu0 %v1996
    %v2733 = vpop.f32.mrf.mxu0
    %v2734 = vadd.f32 %v2645, %v2733
    %v2735 = vpop.f32.mrf.mxu0
    %v2736 = vadd.f32 %v2647, %v2735
    %2737 = vmatmul.bf16.gmra.mxu0 %v1998
    %v2738 = vpop.f32.mrf.mxu0
    %v2739 = vadd.f32 %v2650, %v2738
    %v2740 = vpop.f32.mrf.mxu0
    %v2741 = vadd.f32 %v2652, %v2740
    %2742 = vdwg.mxu0
    %2743 = vmatpush.bf16.msra.mxu0 %v1611
    %2744 = vmatpush.bf16.msra.mxu0 %v1603
    %2745 = vmatpush.bf16.msra.mxu0 %v1595
    %2746 = vmatpush.bf16.msra.mxu0 %v1587
    %2747 = vmatpush.bf16.msra.mxu0 %v1579
    %2748 = vmatpush.bf16.msra.mxu0 %v1571
    %2749 = vmatpush.bf16.msra.mxu0 %v1563
    %2750 = vmatpush.bf16.msra.mxu0 %v1555
    %2751 = vmatmul.bf16.gmra.mxu0 %v1967
    %v2752 = vpop.f32.mrf.mxu0
    %v2753 = vadd.f32 %v1714, %v2752
    %v2754 = vpop.f32.mrf.mxu0
    %v2755 = vadd.f32 %v1719, %v2754
    %2756 = vmatmul.bf16.gmra.mxu0 %v1969
    %v2757 = vpop.f32.mrf.mxu0
    %v2758 = vadd.f32 %v1724, %v2757
    %v2759 = vpop.f32.mrf.mxu0
    %v2760 = vadd.f32 %v1729, %v2759
    %2761 = vmatmul.bf16.gmra.mxu0 %v1971
    %v2762 = vpop.f32.mrf.mxu0
    %v2763 = vadd.f32 %v1734, %v2762
    %v2764 = vpop.f32.mrf.mxu0
    %v2765 = vadd.f32 %v1739, %v2764
    %2766 = vmatmul.bf16.gmra.mxu0 %v1973
    %v2767 = vpop.f32.mrf.mxu0
    %v2768 = vadd.f32 %v1744, %v2767
    %v2769 = vpop.f32.mrf.mxu0
    %v2770 = vadd.f32 %v1749, %v2769
    %2771 = vmatmul.bf16.gmra.mxu0 %v1975
    %v2772 = vpop.f32.mrf.mxu0
    %v2773 = vadd.f32 %v1754, %v2772
    %v2774 = vpop.f32.mrf.mxu0
    %v2775 = vadd.f32 %v1759, %v2774
    %2776 = vmatmul.bf16.gmra.mxu0 %v1977
    %v2777 = vpop.f32.mrf.mxu0
    %v2778 = vadd.f32 %v1764, %v2777
    %v2779 = vpop.f32.mrf.mxu0
    %v2780 = vadd.f32 %v1769, %v2779
    %2781 = vmatmul.bf16.gmra.mxu0 %v1979
    %v2782 = vpop.f32.mrf.mxu0
    %v2783 = vadd.f32 %v1774, %v2782
    %v2784 = vpop.f32.mrf.mxu0
    %v2785 = vadd.f32 %v1779, %v2784
    %2786 = vmatmul.bf16.gmra.mxu0 %v1981
    %v2787 = vpop.f32.mrf.mxu0
    %v2788 = vadd.f32 %v1784, %v2787
    %v2789 = vpop.f32.mrf.mxu0
    %v2790 = vadd.f32 %v1789, %v2789
    %2791 = vmatmul.bf16.gmra.mxu0 %v1983
    %v2792 = vpop.f32.mrf.mxu0
    %v2793 = vadd.f32 %v1794, %v2792
    %v2794 = vpop.f32.mrf.mxu0
    %v2795 = vadd.f32 %v1799, %v2794
    %2796 = vmatmul.bf16.gmra.mxu0 %v1985
    %v2797 = vpop.f32.mrf.mxu0
    %v2798 = vadd.f32 %v1804, %v2797
    %v2799 = vpop.f32.mrf.mxu0
    %v2800 = vadd.f32 %v1809, %v2799
    %2801 = vmatmul.bf16.gmra.mxu0 %v1987
    %v2802 = vpop.f32.mrf.mxu0
    %v2803 = vadd.f32 %v1814, %v2802
    %v2804 = vpop.f32.mrf.mxu0
    %v2805 = vadd.f32 %v1819, %v2804
    %2806 = vmatmul.bf16.gmra.mxu0 %v1989
    %v2807 = vpop.f32.mrf.mxu0
    %v2808 = vadd.f32 %v1824, %v2807
    %v2809 = vpop.f32.mrf.mxu0
    %v2810 = vadd.f32 %v1829, %v2809
    %2811 = vmatmul.bf16.gmra.mxu0 %v1991
    %v2812 = vpop.f32.mrf.mxu0
    %v2813 = vadd.f32 %v1834, %v2812
    %v2814 = vpop.f32.mrf.mxu0
    %v2815 = vadd.f32 %v1839, %v2814
    %2816 = vmatmul.bf16.gmra.mxu0 %v1993
    %v2817 = vpop.f32.mrf.mxu0
    %v2818 = vadd.f32 %v1844, %v2817
    %v2819 = vpop.f32.mrf.mxu0
    %v2820 = vadd.f32 %v1849, %v2819
    %2821 = vmatmul.bf16.gmra.mxu0 %v1995
    %v2822 = vpop.f32.mrf.mxu0
    %v2823 = vadd.f32 %v1854, %v2822
    %v2824 = vpop.f32.mrf.mxu0
    %v2825 = vadd.f32 %v1859, %v2824
    %2826 = vmatmul.bf16.gmra.mxu0 %v1997
    %v2827 = vpop.f32.mrf.mxu0
    %v2828 = vadd.f32 %v1864, %v2827
    %v2829 = vpop.f32.mrf.mxu0
    %v2830 = vadd.f32 %v1869, %v2829
    %2831 = vdwg.mxu0
    %2832 = vmatpush.bf16.msra.mxu0 %v1675
    %2833 = vmatpush.bf16.msra.mxu0 %v1667
    %2834 = vmatpush.bf16.msra.mxu0 %v1659
    %2835 = vmatpush.bf16.msra.mxu0 %v1651
    %2836 = vmatpush.bf16.msra.mxu0 %v1643
    %2837 = vmatpush.bf16.msra.mxu0 %v1635
    %2838 = vmatpush.bf16.msra.mxu0 %v1627
    %2839 = vmatpush.bf16.msra.mxu0 %v1619
    %2840 = vmatmul.bf16.gmra.mxu0 %v1968
    %v2841 = vpop.f32.mrf.mxu0
    %v2842 = vadd.f32 %v2753, %v2841
    %v2843 = vpop.f32.mrf.mxu0
    %v2844 = vadd.f32 %v2755, %v2843
    %2845 = vmatmul.bf16.gmra.mxu0 %v1970
    %v2846 = vpop.f32.mrf.mxu0
    %v2847 = vadd.f32 %v2758, %v2846
    %v2848 = vpop.f32.mrf.mxu0
    %v2849 = vadd.f32 %v2760, %v2848
    %2850 = vmatmul.bf16.gmra.mxu0 %v1972
    %v2851 = vpop.f32.mrf.mxu0
    %v2852 = vadd.f32 %v2763, %v2851
    %v2853 = vpop.f32.mrf.mxu0
    %v2854 = vadd.f32 %v2765, %v2853
    %2855 = vmatmul.bf16.gmra.mxu0 %v1974
    %v2856 = vpop.f32.mrf.mxu0
    %v2857 = vadd.f32 %v2768, %v2856
    %v2858 = vpop.f32.mrf.mxu0
    %v2859 = vadd.f32 %v2770, %v2858
    %2860 = vmatmul.bf16.gmra.mxu0 %v1976
    %v2861 = vpop.f32.mrf.mxu0
    %v2862 = vadd.f32 %v2773, %v2861
    %v2863 = vpop.f32.mrf.mxu0
    %v2864 = vadd.f32 %v2775, %v2863
    %2865 = vmatmul.bf16.gmra.mxu0 %v1978
    %v2866 = vpop.f32.mrf.mxu0
    %v2867 = vadd.f32 %v2778, %v2866
    %v2868 = vpop.f32.mrf.mxu0
    %v2869 = vadd.f32 %v2780, %v2868
    %2870 = vmatmul.bf16.gmra.mxu0 %v1980
    %v2871 = vpop.f32.mrf.mxu0
    %v2872 = vadd.f32 %v2783, %v2871
    %v2873 = vpop.f32.mrf.mxu0
    %v2874 = vadd.f32 %v2785, %v2873
    %2875 = vmatmul.bf16.gmra.mxu0 %v1982
    %v2876 = vpop.f32.mrf.mxu0
    %v2877 = vadd.f32 %v2788, %v2876
    %v2878 = vpop.f32.mrf.mxu0
    %v2879 = vadd.f32 %v2790, %v2878
    %2880 = vmatmul.bf16.gmra.mxu0 %v1984
    %v2881 = vpop.f32.mrf.mxu0
    %v2882 = vadd.f32 %v2793, %v2881
    %v2883 = vpop.f32.mrf.mxu0
    %v2884 = vadd.f32 %v2795, %v2883
    %2885 = vmatmul.bf16.gmra.mxu0 %v1986
    %v2886 = vpop.f32.mrf.mxu0
    %v2887 = vadd.f32 %v2798, %v2886
    %v2888 = vpop.f32.mrf.mxu0
    %v2889 = vadd.f32 %v2800, %v2888
    %2890 = vmatmul.bf16.gmra.mxu0 %v1988
    %v2891 = vpop.f32.mrf.mxu0
    %v2892 = vadd.f32 %v2803, %v2891
    %v2893 = vpop.f32.mrf.mxu0
    %v2894 = vadd.f32 %v2805, %v2893
    %2895 = vmatmul.bf16.gmra.mxu0 %v1990
    %v2896 = vpop.f32.mrf.mxu0
    %v2897 = vadd.f32 %v2808, %v2896
    %v2898 = vpop.f32.mrf.mxu0
    %v2899 = vadd.f32 %v2810, %v2898
    %2900 = vmatmul.bf16.gmra.mxu0 %v1992
    %v2901 = vpop.f32.mrf.mxu0
    %v2902 = vadd.f32 %v2813, %v2901
    %v2903 = vpop.f32.mrf.mxu0
    %v2904 = vadd.f32 %v2815, %v2903
    %2905 = vmatmul.bf16.gmra.mxu0 %v1994
    %v2906 = vpop.f32.mrf.mxu0
    %v2907 = vadd.f32 %v2818, %v2906
    %v2908 = vpop.f32.mrf.mxu0
    %v2909 = vadd.f32 %v2820, %v2908
    %2910 = vmatmul.bf16.gmra.mxu0 %v1996
    %v2911 = vpop.f32.mrf.mxu0
    %v2912 = vadd.f32 %v2823, %v2911
    %v2913 = vpop.f32.mrf.mxu0
    %v2914 = vadd.f32 %v2825, %v2913
    %2915 = vmatmul.bf16.gmra.mxu0 %v1998
    %v2916 = vpop.f32.mrf.mxu0
    %v2917 = vadd.f32 %v2828, %v2916
    %v2918 = vpop.f32.mrf.mxu0
    %v2919 = vadd.f32 %v2830, %v2918
    %2920 = vdwg.mxu0
    %2921 = vmatpush.bf16.msra.mxu0 %v1612
    %2922 = vmatpush.bf16.msra.mxu0 %v1604
    %2923 = vmatpush.bf16.msra.mxu0 %v1596
    %2924 = vmatpush.bf16.msra.mxu0 %v1588
    %2925 = vmatpush.bf16.msra.mxu0 %v1580
    %2926 = vmatpush.bf16.msra.mxu0 %v1572
    %2927 = vmatpush.bf16.msra.mxu0 %v1564
    %2928 = vmatpush.bf16.msra.mxu0 %v1556
    %2929 = vmatmul.bf16.gmra.mxu0 %v1967
    %v2930 = vpop.f32.mrf.mxu0
    %v2931 = vadd.f32 %v1714, %v2930
    %v2932 = vpop.f32.mrf.mxu0
    %v2933 = vadd.f32 %v1719, %v2932
    %2934 = vmatmul.bf16.gmra.mxu0 %v1969
    %v2935 = vpop.f32.mrf.mxu0
    %v2936 = vadd.f32 %v1724, %v2935
    %v2937 = vpop.f32.mrf.mxu0
    %v2938 = vadd.f32 %v1729, %v2937
    %2939 = vmatmul.bf16.gmra.mxu0 %v1971
    %v2940 = vpop.f32.mrf.mxu0
    %v2941 = vadd.f32 %v1734, %v2940
    %v2942 = vpop.f32.mrf.mxu0
    %v2943 = vadd.f32 %v1739, %v2942
    %2944 = vmatmul.bf16.gmra.mxu0 %v1973
    %v2945 = vpop.f32.mrf.mxu0
    %v2946 = vadd.f32 %v1744, %v2945
    %v2947 = vpop.f32.mrf.mxu0
    %v2948 = vadd.f32 %v1749, %v2947
    %2949 = vmatmul.bf16.gmra.mxu0 %v1975
    %v2950 = vpop.f32.mrf.mxu0
    %v2951 = vadd.f32 %v1754, %v2950
    %v2952 = vpop.f32.mrf.mxu0
    %v2953 = vadd.f32 %v1759, %v2952
    %2954 = vmatmul.bf16.gmra.mxu0 %v1977
    %v2955 = vpop.f32.mrf.mxu0
    %v2956 = vadd.f32 %v1764, %v2955
    %v2957 = vpop.f32.mrf.mxu0
    %v2958 = vadd.f32 %v1769, %v2957
    %2959 = vmatmul.bf16.gmra.mxu0 %v1979
    %v2960 = vpop.f32.mrf.mxu0
    %v2961 = vadd.f32 %v1774, %v2960
    %v2962 = vpop.f32.mrf.mxu0
    %v2963 = vadd.f32 %v1779, %v2962
    %2964 = vmatmul.bf16.gmra.mxu0 %v1981
    %v2965 = vpop.f32.mrf.mxu0
    %v2966 = vadd.f32 %v1784, %v2965
    %v2967 = vpop.f32.mrf.mxu0
    %v2968 = vadd.f32 %v1789, %v2967
    %2969 = vmatmul.bf16.gmra.mxu0 %v1983
    %v2970 = vpop.f32.mrf.mxu0
    %v2971 = vadd.f32 %v1794, %v2970
    %v2972 = vpop.f32.mrf.mxu0
    %v2973 = vadd.f32 %v1799, %v2972
    %2974 = vmatmul.bf16.gmra.mxu0 %v1985
    %v2975 = vpop.f32.mrf.mxu0
    %v2976 = vadd.f32 %v1804, %v2975
    %v2977 = vpop.f32.mrf.mxu0
    %v2978 = vadd.f32 %v1809, %v2977
    %2979 = vmatmul.bf16.gmra.mxu0 %v1987
    %v2980 = vpop.f32.mrf.mxu0
    %v2981 = vadd.f32 %v1814, %v2980
    %v2982 = vpop.f32.mrf.mxu0
    %v2983 = vadd.f32 %v1819, %v2982
    %2984 = vmatmul.bf16.gmra.mxu0 %v1989
    %v2985 = vpop.f32.mrf.mxu0
    %v2986 = vadd.f32 %v1824, %v2985
    %v2987 = vpop.f32.mrf.mxu0
    %v2988 = vadd.f32 %v1829, %v2987
    %2989 = vmatmul.bf16.gmra.mxu0 %v1991
    %v2990 = vpop.f32.mrf.mxu0
    %v2991 = vadd.f32 %v1834, %v2990
    %v2992 = vpop.f32.mrf.mxu0
    %v2993 = vadd.f32 %v1839, %v2992
    %2994 = vmatmul.bf16.gmra.mxu0 %v1993
    %v2995 = vpop.f32.mrf.mxu0
    %v2996 = vadd.f32 %v1844, %v2995
    %v2997 = vpop.f32.mrf.mxu0
    %v2998 = vadd.f32 %v1849, %v2997
    %2999 = vmatmul.bf16.gmra.mxu0 %v1995
    %v3000 = vpop.f32.mrf.mxu0
    %v3001 = vadd.f32 %v1854, %v3000
    %v3002 = vpop.f32.mrf.mxu0
    %v3003 = vadd.f32 %v1859, %v3002
    %3004 = vmatmul.bf16.gmra.mxu0 %v1997
    %v3005 = vpop.f32.mrf.mxu0
    %v3006 = vadd.f32 %v1864, %v3005
    %v3007 = vpop.f32.mrf.mxu0
    %v3008 = vadd.f32 %v1869, %v3007
    %3009 = vdwg.mxu0
    %3010 = vmatpush.bf16.msra.mxu0 %v1676
    %3011 = vmatpush.bf16.msra.mxu0 %v1668
    %3012 = vmatpush.bf16.msra.mxu0 %v1660
    %3013 = vmatpush.bf16.msra.mxu0 %v1652
    %3014 = vmatpush.bf16.msra.mxu0 %v1644
    %3015 = vmatpush.bf16.msra.mxu0 %v1636
    %3016 = vmatpush.bf16.msra.mxu0 %v1628
    %3017 = vmatpush.bf16.msra.mxu0 %v1620
    %3018 = vmatmul.bf16.gmra.mxu0 %v1968
    %v3019 = vpop.f32.mrf.mxu0
    %v3020 = vadd.f32 %v2931, %v3019
    %v3021 = vpop.f32.mrf.mxu0
    %v3022 = vadd.f32 %v2933, %v3021
    %3023 = vmatmul.bf16.gmra.mxu0 %v1970
    %v3024 = vpop.f32.mrf.mxu0
    %v3025 = vadd.f32 %v2936, %v3024
    %v3026 = vpop.f32.mrf.mxu0
    %v3027 = vadd.f32 %v2938, %v3026
    %3028 = vmatmul.bf16.gmra.mxu0 %v1972
    %v3029 = vpop.f32.mrf.mxu0
    %v3030 = vadd.f32 %v2941, %v3029
    %v3031 = vpop.f32.mrf.mxu0
    %v3032 = vadd.f32 %v2943, %v3031
    %3033 = vmatmul.bf16.gmra.mxu0 %v1974
    %v3034 = vpop.f32.mrf.mxu0
    %v3035 = vadd.f32 %v2946, %v3034
    %v3036 = vpop.f32.mrf.mxu0
    %v3037 = vadd.f32 %v2948, %v3036
    %3038 = vmatmul.bf16.gmra.mxu0 %v1976
    %v3039 = vpop.f32.mrf.mxu0
    %v3040 = vadd.f32 %v2951, %v3039
    %v3041 = vpop.f32.mrf.mxu0
    %v3042 = vadd.f32 %v2953, %v3041
    %3043 = vmatmul.bf16.gmra.mxu0 %v1978
    %v3044 = vpop.f32.mrf.mxu0
    %v3045 = vadd.f32 %v2956, %v3044
    %v3046 = vpop.f32.mrf.mxu0
    %v3047 = vadd.f32 %v2958, %v3046
    %3048 = vmatmul.bf16.gmra.mxu0 %v1980
    %v3049 = vpop.f32.mrf.mxu0
    %v3050 = vadd.f32 %v2961, %v3049
    %v3051 = vpop.f32.mrf.mxu0
    %v3052 = vadd.f32 %v2963, %v3051
    %3053 = vmatmul.bf16.gmra.mxu0 %v1982
    %v3054 = vpop.f32.mrf.mxu0
    %v3055 = vadd.f32 %v2966, %v3054
    %v3056 = vpop.f32.mrf.mxu0
    %v3057 = vadd.f32 %v2968, %v3056
    %3058 = vmatmul.bf16.gmra.mxu0 %v1984
    %v3059 = vpop.f32.mrf.mxu0
    %v3060 = vadd.f32 %v2971, %v3059
    %v3061 = vpop.f32.mrf.mxu0
    %v3062 = vadd.f32 %v2973, %v3061
    %3063 = vmatmul.bf16.gmra.mxu0 %v1986
    %v3064 = vpop.f32.mrf.mxu0
    %v3065 = vadd.f32 %v2976, %v3064
    %v3066 = vpop.f32.mrf.mxu0
    %v3067 = vadd.f32 %v2978, %v3066
    %3068 = vmatmul.bf16.gmra.mxu0 %v1988
    %v3069 = vpop.f32.mrf.mxu0
    %v3070 = vadd.f32 %v2981, %v3069
    %v3071 = vpop.f32.mrf.mxu0
    %v3072 = vadd.f32 %v2983, %v3071
    %3073 = vmatmul.bf16.gmra.mxu0 %v1990
    %v3074 = vpop.f32.mrf.mxu0
    %v3075 = vadd.f32 %v2986, %v3074
    %v3076 = vpop.f32.mrf.mxu0
    %v3077 = vadd.f32 %v2988, %v3076
    %3078 = vmatmul.bf16.gmra.mxu0 %v1992
    %v3079 = vpop.f32.mrf.mxu0
    %v3080 = vadd.f32 %v2991, %v3079
    %v3081 = vpop.f32.mrf.mxu0
    %v3082 = vadd.f32 %v2993, %v3081
    %3083 = vmatmul.bf16.gmra.mxu0 %v1994
    %v3084 = vpop.f32.mrf.mxu0
    %v3085 = vadd.f32 %v2996, %v3084
    %v3086 = vpop.f32.mrf.mxu0
    %v3087 = vadd.f32 %v2998, %v3086
    %3088 = vmatmul.bf16.gmra.mxu0 %v1996
    %v3089 = vpop.f32.mrf.mxu0
    %v3090 = vadd.f32 %v3001, %v3089
    %v3091 = vpop.f32.mrf.mxu0
    %v3092 = vadd.f32 %v3003, %v3091
    %3093 = vmatmul.bf16.gmra.mxu0 %v1998
    %v3094 = vpop.f32.mrf.mxu0
    %v3095 = vadd.f32 %v3006, %v3094
    %v3096 = vpop.f32.mrf.mxu0
    %v3097 = vadd.f32 %v3008, %v3096
    %3098 = vdwg.mxu0
    %3099 = vmatpush.bf16.msra.mxu0 %v1613
    %3100 = vmatpush.bf16.msra.mxu0 %v1605
    %3101 = vmatpush.bf16.msra.mxu0 %v1597
    %3102 = vmatpush.bf16.msra.mxu0 %v1589
    %3103 = vmatpush.bf16.msra.mxu0 %v1581
    %3104 = vmatpush.bf16.msra.mxu0 %v1573
    %3105 = vmatpush.bf16.msra.mxu0 %v1565
    %3106 = vmatpush.bf16.msra.mxu0 %v1557
    %3107 = vmatmul.bf16.gmra.mxu0 %v1967
    %v3108 = vpop.f32.mrf.mxu0
    %v3109 = vadd.f32 %v1714, %v3108
    %v3110 = vpop.f32.mrf.mxu0
    %v3111 = vadd.f32 %v1719, %v3110
    %3112 = vmatmul.bf16.gmra.mxu0 %v1969
    %v3113 = vpop.f32.mrf.mxu0
    %v3114 = vadd.f32 %v1724, %v3113
    %v3115 = vpop.f32.mrf.mxu0
    %v3116 = vadd.f32 %v1729, %v3115
    %3117 = vmatmul.bf16.gmra.mxu0 %v1971
    %v3118 = vpop.f32.mrf.mxu0
    %v3119 = vadd.f32 %v1734, %v3118
    %v3120 = vpop.f32.mrf.mxu0
    %v3121 = vadd.f32 %v1739, %v3120
    %3122 = vmatmul.bf16.gmra.mxu0 %v1973
    %v3123 = vpop.f32.mrf.mxu0
    %v3124 = vadd.f32 %v1744, %v3123
    %v3125 = vpop.f32.mrf.mxu0
    %v3126 = vadd.f32 %v1749, %v3125
    %3127 = vmatmul.bf16.gmra.mxu0 %v1975
    %v3128 = vpop.f32.mrf.mxu0
    %v3129 = vadd.f32 %v1754, %v3128
    %v3130 = vpop.f32.mrf.mxu0
    %v3131 = vadd.f32 %v1759, %v3130
    %3132 = vmatmul.bf16.gmra.mxu0 %v1977
    %v3133 = vpop.f32.mrf.mxu0
    %v3134 = vadd.f32 %v1764, %v3133
    %v3135 = vpop.f32.mrf.mxu0
    %v3136 = vadd.f32 %v1769, %v3135
    %3137 = vmatmul.bf16.gmra.mxu0 %v1979
    %v3138 = vpop.f32.mrf.mxu0
    %v3139 = vadd.f32 %v1774, %v3138
    %v3140 = vpop.f32.mrf.mxu0
    %v3141 = vadd.f32 %v1779, %v3140
    %3142 = vmatmul.bf16.gmra.mxu0 %v1981
    %v3143 = vpop.f32.mrf.mxu0
    %v3144 = vadd.f32 %v1784, %v3143
    %v3145 = vpop.f32.mrf.mxu0
    %v3146 = vadd.f32 %v1789, %v3145
    %3147 = vmatmul.bf16.gmra.mxu0 %v1983
    %v3148 = vpop.f32.mrf.mxu0
    %v3149 = vadd.f32 %v1794, %v3148
    %v3150 = vpop.f32.mrf.mxu0
    %v3151 = vadd.f32 %v1799, %v3150
    %3152 = vmatmul.bf16.gmra.mxu0 %v1985
    %v3153 = vpop.f32.mrf.mxu0
    %v3154 = vadd.f32 %v1804, %v3153
    %v3155 = vpop.f32.mrf.mxu0
    %v3156 = vadd.f32 %v1809, %v3155
    %3157 = vmatmul.bf16.gmra.mxu0 %v1987
    %v3158 = vpop.f32.mrf.mxu0
    %v3159 = vadd.f32 %v1814, %v3158
    %v3160 = vpop.f32.mrf.mxu0
    %v3161 = vadd.f32 %v1819, %v3160
    %3162 = vmatmul.bf16.gmra.mxu0 %v1989
    %v3163 = vpop.f32.mrf.mxu0
    %v3164 = vadd.f32 %v1824, %v3163
    %v3165 = vpop.f32.mrf.mxu0
    %v3166 = vadd.f32 %v1829, %v3165
    %3167 = vmatmul.bf16.gmra.mxu0 %v1991
    %v3168 = vpop.f32.mrf.mxu0
    %v3169 = vadd.f32 %v1834, %v3168
    %v3170 = vpop.f32.mrf.mxu0
    %v3171 = vadd.f32 %v1839, %v3170
    %3172 = vmatmul.bf16.gmra.mxu0 %v1993
    %v3173 = vpop.f32.mrf.mxu0
    %v3174 = vadd.f32 %v1844, %v3173
    %v3175 = vpop.f32.mrf.mxu0
    %v3176 = vadd.f32 %v1849, %v3175
    %3177 = vmatmul.bf16.gmra.mxu0 %v1995
    %v3178 = vpop.f32.mrf.mxu0
    %v3179 = vadd.f32 %v1854, %v3178
    %v3180 = vpop.f32.mrf.mxu0
    %v3181 = vadd.f32 %v1859, %v3180
    %3182 = vmatmul.bf16.gmra.mxu0 %v1997
    %v3183 = vpop.f32.mrf.mxu0
    %v3184 = vadd.f32 %v1864, %v3183
    %v3185 = vpop.f32.mrf.mxu0
    %v3186 = vadd.f32 %v1869, %v3185
    %3187 = vdwg.mxu0
    %3188 = vmatpush.bf16.msra.mxu0 %v1677
    %3189 = vmatpush.bf16.msra.mxu0 %v1669
    %3190 = vmatpush.bf16.msra.mxu0 %v1661
    %3191 = vmatpush.bf16.msra.mxu0 %v1653
    %3192 = vmatpush.bf16.msra.mxu0 %v1645
    %3193 = vmatpush.bf16.msra.mxu0 %v1637
    %3194 = vmatpush.bf16.msra.mxu0 %v1629
    %3195 = vmatpush.bf16.msra.mxu0 %v1621
    %3196 = vmatmul.bf16.gmra.mxu0 %v1968
    %v3197 = vpop.f32.mrf.mxu0
    %v3198 = vadd.f32 %v3109, %v3197
    %v3199 = vpop.f32.mrf.mxu0
    %v3200 = vadd.f32 %v3111, %v3199
    %3201 = vmatmul.bf16.gmra.mxu0 %v1970
    %v3202 = vpop.f32.mrf.mxu0
    %v3203 = vadd.f32 %v3114, %v3202
    %v3204 = vpop.f32.mrf.mxu0
    %v3205 = vadd.f32 %v3116, %v3204
    %3206 = vmatmul.bf16.gmra.mxu0 %v1972
    %v3207 = vpop.f32.mrf.mxu0
    %v3208 = vadd.f32 %v3119, %v3207
    %v3209 = vpop.f32.mrf.mxu0
    %v3210 = vadd.f32 %v3121, %v3209
    %3211 = vmatmul.bf16.gmra.mxu0 %v1974
    %v3212 = vpop.f32.mrf.mxu0
    %v3213 = vadd.f32 %v3124, %v3212
    %v3214 = vpop.f32.mrf.mxu0
    %v3215 = vadd.f32 %v3126, %v3214
    %3216 = vmatmul.bf16.gmra.mxu0 %v1976
    %v3217 = vpop.f32.mrf.mxu0
    %v3218 = vadd.f32 %v3129, %v3217
    %v3219 = vpop.f32.mrf.mxu0
    %v3220 = vadd.f32 %v3131, %v3219
    %3221 = vmatmul.bf16.gmra.mxu0 %v1978
    %v3222 = vpop.f32.mrf.mxu0
    %v3223 = vadd.f32 %v3134, %v3222
    %v3224 = vpop.f32.mrf.mxu0
    %v3225 = vadd.f32 %v3136, %v3224
    %3226 = vmatmul.bf16.gmra.mxu0 %v1980
    %v3227 = vpop.f32.mrf.mxu0
    %v3228 = vadd.f32 %v3139, %v3227
    %v3229 = vpop.f32.mrf.mxu0
    %v3230 = vadd.f32 %v3141, %v3229
    %3231 = vmatmul.bf16.gmra.mxu0 %v1982
    %v3232 = vpop.f32.mrf.mxu0
    %v3233 = vadd.f32 %v3144, %v3232
    %v3234 = vpop.f32.mrf.mxu0
    %v3235 = vadd.f32 %v3146, %v3234
    %3236 = vmatmul.bf16.gmra.mxu0 %v1984
    %v3237 = vpop.f32.mrf.mxu0
    %v3238 = vadd.f32 %v3149, %v3237
    %v3239 = vpop.f32.mrf.mxu0
    %v3240 = vadd.f32 %v3151, %v3239
    %3241 = vmatmul.bf16.gmra.mxu0 %v1986
    %v3242 = vpop.f32.mrf.mxu0
    %v3243 = vadd.f32 %v3154, %v3242
    %v3244 = vpop.f32.mrf.mxu0
    %v3245 = vadd.f32 %v3156, %v3244
    %3246 = vmatmul.bf16.gmra.mxu0 %v1988
    %v3247 = vpop.f32.mrf.mxu0
    %v3248 = vadd.f32 %v3159, %v3247
    %v3249 = vpop.f32.mrf.mxu0
    %v3250 = vadd.f32 %v3161, %v3249
    %3251 = vmatmul.bf16.gmra.mxu0 %v1990
    %v3252 = vpop.f32.mrf.mxu0
    %v3253 = vadd.f32 %v3164, %v3252
    %v3254 = vpop.f32.mrf.mxu0
    %v3255 = vadd.f32 %v3166, %v3254
    %3256 = vmatmul.bf16.gmra.mxu0 %v1992
    %v3257 = vpop.f32.mrf.mxu0
    %v3258 = vadd.f32 %v3169, %v3257
    %v3259 = vpop.f32.mrf.mxu0
    %v3260 = vadd.f32 %v3171, %v3259
    %3261 = vmatmul.bf16.gmra.mxu0 %v1994
    %v3262 = vpop.f32.mrf.mxu0
    %v3263 = vadd.f32 %v3174, %v3262
    %v3264 = vpop.f32.mrf.mxu0
    %v3265 = vadd.f32 %v3176, %v3264
    %3266 = vmatmul.bf16.gmra.mxu0 %v1996
    %v3267 = vpop.f32.mrf.mxu0
    %v3268 = vadd.f32 %v3179, %v3267
    %v3269 = vpop.f32.mrf.mxu0
    %v3270 = vadd.f32 %v3181, %v3269
    %3271 = vmatmul.bf16.gmra.mxu0 %v1998
    %v3272 = vpop.f32.mrf.mxu0
    %v3273 = vadd.f32 %v3184, %v3272
    %v3274 = vpop.f32.mrf.mxu0
    %v3275 = vadd.f32 %v3186, %v3274
    %3276 = vdwg.mxu0
    %3277 = vmatpush.bf16.msra.mxu0 %v1614
    %3278 = vmatpush.bf16.msra.mxu0 %v1606
    %3279 = vmatpush.bf16.msra.mxu0 %v1598
    %3280 = vmatpush.bf16.msra.mxu0 %v1590
    %3281 = vmatpush.bf16.msra.mxu0 %v1582
    %3282 = vmatpush.bf16.msra.mxu0 %v1574
    %3283 = vmatpush.bf16.msra.mxu0 %v1566
    %3284 = vmatpush.bf16.msra.mxu0 %v1558
    %3285 = vmatmul.bf16.gmra.mxu0 %v1967
    %v3286 = vpop.f32.mrf.mxu0
    %v3287 = vadd.f32 %v1714, %v3286
    %v3288 = vpop.f32.mrf.mxu0
    %v3289 = vadd.f32 %v1719, %v3288
    %3290 = vmatmul.bf16.gmra.mxu0 %v1969
    %v3291 = vpop.f32.mrf.mxu0
    %v3292 = vadd.f32 %v1724, %v3291
    %v3293 = vpop.f32.mrf.mxu0
    %v3294 = vadd.f32 %v1729, %v3293
    %3295 = vmatmul.bf16.gmra.mxu0 %v1971
    %v3296 = vpop.f32.mrf.mxu0
    %v3297 = vadd.f32 %v1734, %v3296
    %v3298 = vpop.f32.mrf.mxu0
    %v3299 = vadd.f32 %v1739, %v3298
    %3300 = vmatmul.bf16.gmra.mxu0 %v1973
    %v3301 = vpop.f32.mrf.mxu0
    %v3302 = vadd.f32 %v1744, %v3301
    %v3303 = vpop.f32.mrf.mxu0
    %v3304 = vadd.f32 %v1749, %v3303
    %3305 = vmatmul.bf16.gmra.mxu0 %v1975
    %v3306 = vpop.f32.mrf.mxu0
    %v3307 = vadd.f32 %v1754, %v3306
    %v3308 = vpop.f32.mrf.mxu0
    %v3309 = vadd.f32 %v1759, %v3308
    %3310 = vmatmul.bf16.gmra.mxu0 %v1977
    %v3311 = vpop.f32.mrf.mxu0
    %v3312 = vadd.f32 %v1764, %v3311
    %v3313 = vpop.f32.mrf.mxu0
    %v3314 = vadd.f32 %v1769, %v3313
    %3315 = vmatmul.bf16.gmra.mxu0 %v1979
    %v3316 = vpop.f32.mrf.mxu0
    %v3317 = vadd.f32 %v1774, %v3316
    %v3318 = vpop.f32.mrf.mxu0
    %v3319 = vadd.f32 %v1779, %v3318
    %3320 = vmatmul.bf16.gmra.mxu0 %v1981
    %v3321 = vpop.f32.mrf.mxu0
    %v3322 = vadd.f32 %v1784, %v3321
    %v3323 = vpop.f32.mrf.mxu0
    %v3324 = vadd.f32 %v1789, %v3323
    %3325 = vmatmul.bf16.gmra.mxu0 %v1983
    %v3326 = vpop.f32.mrf.mxu0
    %v3327 = vadd.f32 %v1794, %v3326
    %v3328 = vpop.f32.mrf.mxu0
    %v3329 = vadd.f32 %v1799, %v3328
    %3330 = vmatmul.bf16.gmra.mxu0 %v1985
    %v3331 = vpop.f32.mrf.mxu0
    %v3332 = vadd.f32 %v1804, %v3331
    %v3333 = vpop.f32.mrf.mxu0
    %v3334 = vadd.f32 %v1809, %v3333
    %3335 = vmatmul.bf16.gmra.mxu0 %v1987
    %v3336 = vpop.f32.mrf.mxu0
    %v3337 = vadd.f32 %v1814, %v3336
    %v3338 = vpop.f32.mrf.mxu0
    %v3339 = vadd.f32 %v1819, %v3338
    %3340 = vmatmul.bf16.gmra.mxu0 %v1989
    %v3341 = vpop.f32.mrf.mxu0
    %v3342 = vadd.f32 %v1824, %v3341
    %v3343 = vpop.f32.mrf.mxu0
    %v3344 = vadd.f32 %v1829, %v3343
    %3345 = vmatmul.bf16.gmra.mxu0 %v1991
    %v3346 = vpop.f32.mrf.mxu0
    %v3347 = vadd.f32 %v1834, %v3346
    %v3348 = vpop.f32.mrf.mxu0
    %v3349 = vadd.f32 %v1839, %v3348
    %3350 = vmatmul.bf16.gmra.mxu0 %v1993
    %v3351 = vpop.f32.mrf.mxu0
    %v3352 = vadd.f32 %v1844, %v3351
    %v3353 = vpop.f32.mrf.mxu0
    %v3354 = vadd.f32 %v1849, %v3353
    %3355 = vmatmul.bf16.gmra.mxu0 %v1995
    %v3356 = vpop.f32.mrf.mxu0
    %v3357 = vadd.f32 %v1854, %v3356
    %v3358 = vpop.f32.mrf.mxu0
    %v3359 = vadd.f32 %v1859, %v3358
    %3360 = vmatmul.bf16.gmra.mxu0 %v1997
    %v3361 = vpop.f32.mrf.mxu0
    %v3362 = vadd.f32 %v1864, %v3361
    %v3363 = vpop.f32.mrf.mxu0
    %v3364 = vadd.f32 %v1869, %v3363
    %3365 = vdwg.mxu0
    %3366 = vmatpush.bf16.msra.mxu0 %v1678
    %3367 = vmatpush.bf16.msra.mxu0 %v1670
    %3368 = vmatpush.bf16.msra.mxu0 %v1662
    %3369 = vmatpush.bf16.msra.mxu0 %v1654
    %3370 = vmatpush.bf16.msra.mxu0 %v1646
    %3371 = vmatpush.bf16.msra.mxu0 %v1638
    %3372 = vmatpush.bf16.msra.mxu0 %v1630
    %3373 = vmatpush.bf16.msra.mxu0 %v1622
    %3374 = vmatmul.bf16.gmra.mxu0 %v1968
    %v3375 = vpop.f32.mrf.mxu0
    %v3376 = vadd.f32 %v3287, %v3375
    %v3377 = vpop.f32.mrf.mxu0
    %v3378 = vadd.f32 %v3289, %v3377
    %3379 = vmatmul.bf16.gmra.mxu0 %v1970
    %v3380 = vpop.f32.mrf.mxu0
    %v3381 = vadd.f32 %v3292, %v3380
    %v3382 = vpop.f32.mrf.mxu0
    %v3383 = vadd.f32 %v3294, %v3382
    %3384 = vmatmul.bf16.gmra.mxu0 %v1972
    %v3385 = vpop.f32.mrf.mxu0
    %v3386 = vadd.f32 %v3297, %v3385
    %v3387 = vpop.f32.mrf.mxu0
    %v3388 = vadd.f32 %v3299, %v3387
    %3389 = vmatmul.bf16.gmra.mxu0 %v1974
    %v3390 = vpop.f32.mrf.mxu0
    %v3391 = vadd.f32 %v3302, %v3390
    %v3392 = vpop.f32.mrf.mxu0
    %v3393 = vadd.f32 %v3304, %v3392
    %3394 = vmatmul.bf16.gmra.mxu0 %v1976
    %v3395 = vpop.f32.mrf.mxu0
    %v3396 = vadd.f32 %v3307, %v3395
    %v3397 = vpop.f32.mrf.mxu0
    %v3398 = vadd.f32 %v3309, %v3397
    %3399 = vmatmul.bf16.gmra.mxu0 %v1978
    %v3400 = vpop.f32.mrf.mxu0
    %v3401 = vadd.f32 %v3312, %v3400
    %v3402 = vpop.f32.mrf.mxu0
    %v3403 = vadd.f32 %v3314, %v3402
    %3404 = vmatmul.bf16.gmra.mxu0 %v1980
    %v3405 = vpop.f32.mrf.mxu0
    %v3406 = vadd.f32 %v3317, %v3405
    %v3407 = vpop.f32.mrf.mxu0
    %v3408 = vadd.f32 %v3319, %v3407
    %3409 = vmatmul.bf16.gmra.mxu0 %v1982
    %v3410 = vpop.f32.mrf.mxu0
    %v3411 = vadd.f32 %v3322, %v3410
    %v3412 = vpop.f32.mrf.mxu0
    %v3413 = vadd.f32 %v3324, %v3412
    %3414 = vmatmul.bf16.gmra.mxu0 %v1984
    %v3415 = vpop.f32.mrf.mxu0
    %v3416 = vadd.f32 %v3327, %v3415
    %v3417 = vpop.f32.mrf.mxu0
    %v3418 = vadd.f32 %v3329, %v3417
    %3419 = vmatmul.bf16.gmra.mxu0 %v1986
    %v3420 = vpop.f32.mrf.mxu0
    %v3421 = vadd.f32 %v3332, %v3420
    %v3422 = vpop.f32.mrf.mxu0
    %v3423 = vadd.f32 %v3334, %v3422
    %3424 = vmatmul.bf16.gmra.mxu0 %v1988
    %v3425 = vpop.f32.mrf.mxu0
    %v3426 = vadd.f32 %v3337, %v3425
    %v3427 = vpop.f32.mrf.mxu0
    %v3428 = vadd.f32 %v3339, %v3427
    %3429 = vmatmul.bf16.gmra.mxu0 %v1990
    %v3430 = vpop.f32.mrf.mxu0
    %v3431 = vadd.f32 %v3342, %v3430
    %v3432 = vpop.f32.mrf.mxu0
    %v3433 = vadd.f32 %v3344, %v3432
    %3434 = vmatmul.bf16.gmra.mxu0 %v1992
    %v3435 = vpop.f32.mrf.mxu0
    %v3436 = vadd.f32 %v3347, %v3435
    %v3437 = vpop.f32.mrf.mxu0
    %v3438 = vadd.f32 %v3349, %v3437
    %3439 = vmatmul.bf16.gmra.mxu0 %v1994
    %v3440 = vpop.f32.mrf.mxu0
    %v3441 = vadd.f32 %v3352, %v3440
    %v3442 = vpop.f32.mrf.mxu0
    %v3443 = vadd.f32 %v3354, %v3442
    %3444 = vmatmul.bf16.gmra.mxu0 %v1996
    %v3445 = vpop.f32.mrf.mxu0
    %v3446 = vadd.f32 %v3357, %v3445
    %v3447 = vpop.f32.mrf.mxu0
    %v3448 = vadd.f32 %v3359, %v3447
    %3449 = vmatmul.bf16.gmra.mxu0 %v1998
    %v3450 = vpop.f32.mrf.mxu0
    %v3451 = vadd.f32 %v3362, %v3450
    %v3452 = vpop.f32.mrf.mxu0
    %v3453 = vadd.f32 %v3364, %v3452
    %3454 = vdwg.mxu0
    %v3455 = vmax.f32 %v2130, 0.0
    %v3456 = vmax.f32 %v2308, 0.0
    %v3457 = vmax.f32 %v2486, 0.0
    %v3458 = vmax.f32 %v2664, 0.0
    %v3459 = vmax.f32 %v2842, 0.0
    %v3460 = vmax.f32 %v3020, 0.0
    %v3461 = vmax.f32 %v3198, 0.0
    %v3462 = vmax.f32 %v3376, 0.0
    %v3463 = vmax.f32 %v2132, 0.0
    %v3464 = vmax.f32 %v2310, 0.0
    %v3465 = vmax.f32 %v2488, 0.0
    %v3466 = vmax.f32 %v2666, 0.0
    %v3467 = vmax.f32 %v2844, 0.0
    %v3468 = vmax.f32 %v3022, 0.0
    %v3469 = vmax.f32 %v3200, 0.0
    %v3470 = vmax.f32 %v3378, 0.0
    %v3471 = vmax.f32 %v2135, 0.0
    %v3472 = vmax.f32 %v2313, 0.0
    %v3473 = vmax.f32 %v2491, 0.0
    %v3474 = vmax.f32 %v2669, 0.0
    %v3475 = vmax.f32 %v2847, 0.0
    %v3476 = vmax.f32 %v3025, 0.0
    %v3477 = vmax.f32 %v3203, 0.0
    %v3478 = vmax.f32 %v3381, 0.0
    %v3479 = vmax.f32 %v2137, 0.0
    %v3480 = vmax.f32 %v2315, 0.0
    %v3481 = vmax.f32 %v2493, 0.0
    %v3482 = vmax.f32 %v2671, 0.0
    %v3483 = vmax.f32 %v2849, 0.0
    %v3484 = vmax.f32 %v3027, 0.0
    %v3485 = vmax.f32 %v3205, 0.0
    %v3486 = vmax.f32 %v3383, 0.0
    %v3487 = vmax.f32 %v2140, 0.0
    %v3488 = vmax.f32 %v2318, 0.0
    %v3489 = vmax.f32 %v2496, 0.0
    %v3490 = vmax.f32 %v2674, 0.0
    %v3491 = vmax.f32 %v2852, 0.0
    %v3492 = vmax.f32 %v3030, 0.0
    %v3493 = vmax.f32 %v3208, 0.0
    %v3494 = vmax.f32 %v3386, 0.0
    %v3495 = vmax.f32 %v2142, 0.0
    %v3496 = vmax.f32 %v2320, 0.0
    %v3497 = vmax.f32 %v2498, 0.0
    %v3498 = vmax.f32 %v2676, 0.0
    %v3499 = vmax.f32 %v2854, 0.0
    %v3500 = vmax.f32 %v3032, 0.0
    %v3501 = vmax.f32 %v3210, 0.0
    %v3502 = vmax.f32 %v3388, 0.0
    %v3503 = vmax.f32 %v2145, 0.0
    %v3504 = vmax.f32 %v2323, 0.0
    %v3505 = vmax.f32 %v2501, 0.0
    %v3506 = vmax.f32 %v2679, 0.0
    %v3507 = vmax.f32 %v2857, 0.0
    %v3508 = vmax.f32 %v3035, 0.0
    %v3509 = vmax.f32 %v3213, 0.0
    %v3510 = vmax.f32 %v3391, 0.0
    %v3511 = vmax.f32 %v2147, 0.0
    %v3512 = vmax.f32 %v2325, 0.0
    %v3513 = vmax.f32 %v2503, 0.0
    %v3514 = vmax.f32 %v2681, 0.0
    %v3515 = vmax.f32 %v2859, 0.0
    %v3516 = vmax.f32 %v3037, 0.0
    %v3517 = vmax.f32 %v3215, 0.0
    %v3518 = vmax.f32 %v3393, 0.0
    %v3519 = vmax.f32 %v2150, 0.0
    %v3520 = vmax.f32 %v2328, 0.0
    %v3521 = vmax.f32 %v2506, 0.0
    %v3522 = vmax.f32 %v2684, 0.0
    %v3523 = vmax.f32 %v2862, 0.0
    %v3524 = vmax.f32 %v3040, 0.0
    %v3525 = vmax.f32 %v3218, 0.0
    %v3526 = vmax.f32 %v3396, 0.0
    %v3527 = vmax.f32 %v2152, 0.0
    %v3528 = vmax.f32 %v2330, 0.0
    %v3529 = vmax.f32 %v2508, 0.0
    %v3530 = vmax.f32 %v2686, 0.0
    %v3531 = vmax.f32 %v2864, 0.0
    %v3532 = vmax.f32 %v3042, 0.0
    %v3533 = vmax.f32 %v3220, 0.0
    %v3534 = vmax.f32 %v3398, 0.0
    %v3535 = vmax.f32 %v2155, 0.0
    %v3536 = vmax.f32 %v2333, 0.0
    %v3537 = vmax.f32 %v2511, 0.0
    %v3538 = vmax.f32 %v2689, 0.0
    %v3539 = vmax.f32 %v2867, 0.0
    %v3540 = vmax.f32 %v3045, 0.0
    %v3541 = vmax.f32 %v3223, 0.0
    %v3542 = vmax.f32 %v3401, 0.0
    %v3543 = vmax.f32 %v2157, 0.0
    %v3544 = vmax.f32 %v2335, 0.0
    %v3545 = vmax.f32 %v2513, 0.0
    %v3546 = vmax.f32 %v2691, 0.0
    %v3547 = vmax.f32 %v2869, 0.0
    %v3548 = vmax.f32 %v3047, 0.0
    %v3549 = vmax.f32 %v3225, 0.0
    %v3550 = vmax.f32 %v3403, 0.0
    %v3551 = vmax.f32 %v2160, 0.0
    %v3552 = vmax.f32 %v2338, 0.0
    %v3553 = vmax.f32 %v2516, 0.0
    %v3554 = vmax.f32 %v2694, 0.0
    %v3555 = vmax.f32 %v2872, 0.0
    %v3556 = vmax.f32 %v3050, 0.0
    %v3557 = vmax.f32 %v3228, 0.0
    %v3558 = vmax.f32 %v3406, 0.0
    %v3559 = vmax.f32 %v2162, 0.0
    %v3560 = vmax.f32 %v2340, 0.0
    %v3561 = vmax.f32 %v2518, 0.0
    %v3562 = vmax.f32 %v2696, 0.0
    %v3563 = vmax.f32 %v2874, 0.0
    %v3564 = vmax.f32 %v3052, 0.0
    %v3565 = vmax.f32 %v3230, 0.0
    %v3566 = vmax.f32 %v3408, 0.0
    %v3567 = vmax.f32 %v2165, 0.0
    %v3568 = vmax.f32 %v2343, 0.0
    %v3569 = vmax.f32 %v2521, 0.0
    %v3570 = vmax.f32 %v2699, 0.0
    %v3571 = vmax.f32 %v2877, 0.0
    %v3572 = vmax.f32 %v3055, 0.0
    %v3573 = vmax.f32 %v3233, 0.0
    %v3574 = vmax.f32 %v3411, 0.0
    %v3575 = vmax.f32 %v2167, 0.0
    %v3576 = vmax.f32 %v2345, 0.0
    %v3577 = vmax.f32 %v2523, 0.0
    %v3578 = vmax.f32 %v2701, 0.0
    %v3579 = vmax.f32 %v2879, 0.0
    %v3580 = vmax.f32 %v3057, 0.0
    %v3581 = vmax.f32 %v3235, 0.0
    %v3582 = vmax.f32 %v3413, 0.0
    %v3583 = vmax.f32 %v2170, 0.0
    %v3584 = vmax.f32 %v2348, 0.0
    %v3585 = vmax.f32 %v2526, 0.0
    %v3586 = vmax.f32 %v2704, 0.0
    %v3587 = vmax.f32 %v2882, 0.0
    %v3588 = vmax.f32 %v3060, 0.0
    %v3589 = vmax.f32 %v3238, 0.0
    %v3590 = vmax.f32 %v3416, 0.0
    %v3591 = vmax.f32 %v2172, 0.0
    %v3592 = vmax.f32 %v2350, 0.0
    %v3593 = vmax.f32 %v2528, 0.0
    %v3594 = vmax.f32 %v2706, 0.0
    %v3595 = vmax.f32 %v2884, 0.0
    %v3596 = vmax.f32 %v3062, 0.0
    %v3597 = vmax.f32 %v3240, 0.0
    %v3598 = vmax.f32 %v3418, 0.0
    %v3599 = vmax.f32 %v2175, 0.0
    %v3600 = vmax.f32 %v2353, 0.0
    %v3601 = vmax.f32 %v2531, 0.0
    %v3602 = vmax.f32 %v2709, 0.0
    %v3603 = vmax.f32 %v2887, 0.0
    %v3604 = vmax.f32 %v3065, 0.0
    %v3605 = vmax.f32 %v3243, 0.0
    %v3606 = vmax.f32 %v3421, 0.0
    %v3607 = vmax.f32 %v2177, 0.0
    %v3608 = vmax.f32 %v2355, 0.0
    %v3609 = vmax.f32 %v2533, 0.0
    %v3610 = vmax.f32 %v2711, 0.0
    %v3611 = vmax.f32 %v2889, 0.0
    %v3612 = vmax.f32 %v3067, 0.0
    %v3613 = vmax.f32 %v3245, 0.0
    %v3614 = vmax.f32 %v3423, 0.0
    %v3615 = vmax.f32 %v2180, 0.0
    %v3616 = vmax.f32 %v2358, 0.0
    %v3617 = vmax.f32 %v2536, 0.0
    %v3618 = vmax.f32 %v2714, 0.0
    %v3619 = vmax.f32 %v2892, 0.0
    %v3620 = vmax.f32 %v3070, 0.0
    %v3621 = vmax.f32 %v3248, 0.0
    %v3622 = vmax.f32 %v3426, 0.0
    %v3623 = vmax.f32 %v2182, 0.0
    %v3624 = vmax.f32 %v2360, 0.0
    %v3625 = vmax.f32 %v2538, 0.0
    %v3626 = vmax.f32 %v2716, 0.0
    %v3627 = vmax.f32 %v2894, 0.0
    %v3628 = vmax.f32 %v3072, 0.0
    %v3629 = vmax.f32 %v3250, 0.0
    %v3630 = vmax.f32 %v3428, 0.0
    %v3631 = vmax.f32 %v2185, 0.0
    %v3632 = vmax.f32 %v2363, 0.0
    %v3633 = vmax.f32 %v2541, 0.0
    %v3634 = vmax.f32 %v2719, 0.0
    %v3635 = vmax.f32 %v2897, 0.0
    %v3636 = vmax.f32 %v3075, 0.0
    %v3637 = vmax.f32 %v3253, 0.0
    %v3638 = vmax.f32 %v3431, 0.0
    %v3639 = vmax.f32 %v2187, 0.0
    %v3640 = vmax.f32 %v2365, 0.0
    %v3641 = vmax.f32 %v2543, 0.0
    %v3642 = vmax.f32 %v2721, 0.0
    %v3643 = vmax.f32 %v2899, 0.0
    %v3644 = vmax.f32 %v3077, 0.0
    %v3645 = vmax.f32 %v3255, 0.0
    %v3646 = vmax.f32 %v3433, 0.0
    %v3647 = vmax.f32 %v2190, 0.0
    %v3648 = vmax.f32 %v2368, 0.0
    %v3649 = vmax.f32 %v2546, 0.0
    %v3650 = vmax.f32 %v2724, 0.0
    %v3651 = vmax.f32 %v2902, 0.0
    %v3652 = vmax.f32 %v3080, 0.0
    %v3653 = vmax.f32 %v3258, 0.0
    %v3654 = vmax.f32 %v3436, 0.0
    %v3655 = vmax.f32 %v2192, 0.0
    %v3656 = vmax.f32 %v2370, 0.0
    %v3657 = vmax.f32 %v2548, 0.0
    %v3658 = vmax.f32 %v2726, 0.0
    %v3659 = vmax.f32 %v2904, 0.0
    %v3660 = vmax.f32 %v3082, 0.0
    %v3661 = vmax.f32 %v3260, 0.0
    %v3662 = vmax.f32 %v3438, 0.0
    %v3663 = vmax.f32 %v2195, 0.0
    %v3664 = vmax.f32 %v2373, 0.0
    %v3665 = vmax.f32 %v2551, 0.0
    %v3666 = vmax.f32 %v2729, 0.0
    %v3667 = vmax.f32 %v2907, 0.0
    %v3668 = vmax.f32 %v3085, 0.0
    %v3669 = vmax.f32 %v3263, 0.0
    %v3670 = vmax.f32 %v3441, 0.0
    %v3671 = vmax.f32 %v2197, 0.0
    %v3672 = vmax.f32 %v2375, 0.0
    %v3673 = vmax.f32 %v2553, 0.0
    %v3674 = vmax.f32 %v2731, 0.0
    %v3675 = vmax.f32 %v2909, 0.0
    %v3676 = vmax.f32 %v3087, 0.0
    %v3677 = vmax.f32 %v3265, 0.0
    %v3678 = vmax.f32 %v3443, 0.0
    %v3679 = vmax.f32 %v2200, 0.0
    %v3680 = vmax.f32 %v2378, 0.0
    %v3681 = vmax.f32 %v2556, 0.0
    %v3682 = vmax.f32 %v2734, 0.0
    %v3683 = vmax.f32 %v2912, 0.0
    %v3684 = vmax.f32 %v3090, 0.0
    %v3685 = vmax.f32 %v3268, 0.0
    %v3686 = vmax.f32 %v3446, 0.0
    %v3687 = vmax.f32 %v2202, 0.0
    %v3688 = vmax.f32 %v2380, 0.0
    %v3689 = vmax.f32 %v2558, 0.0
    %v3690 = vmax.f32 %v2736, 0.0
    %v3691 = vmax.f32 %v2914, 0.0
    %v3692 = vmax.f32 %v3092, 0.0
    %v3693 = vmax.f32 %v3270, 0.0
    %v3694 = vmax.f32 %v3448, 0.0
    %v3695 = vmax.f32 %v2205, 0.0
    %v3696 = vmax.f32 %v2383, 0.0
    %v3697 = vmax.f32 %v2561, 0.0
    %v3698 = vmax.f32 %v2739, 0.0
    %v3699 = vmax.f32 %v2917, 0.0
    %v3700 = vmax.f32 %v3095, 0.0
    %v3701 = vmax.f32 %v3273, 0.0
    %v3702 = vmax.f32 %v3451, 0.0
    %v3703 = vmax.f32 %v2207, 0.0
    %v3704 = vmax.f32 %v2385, 0.0
    %v3705 = vmax.f32 %v2563, 0.0
    %v3706 = vmax.f32 %v2741, 0.0
    %v3707 = vmax.f32 %v2919, 0.0
    %v3708 = vmax.f32 %v3097, 0.0
    %v3709 = vmax.f32 %v3275, 0.0
    %v3710 = vmax.f32 %v3453, 0.0
    %v3711 = vld [vmem:[%s5] sm:$0xff]
    %v3712 = vld [vmem:[%s5 + $0x8] sm:$0xff]
    %v3713 = vld [vmem:[%s5 + $0x10] sm:$0xff]
    %v3714 = vld [vmem:[%s5 + $0x18] sm:$0xff]
    %v3715 = vld [vmem:[%s5 + $0x20] sm:$0xff]
    %v3716 = vld [vmem:[%s5 + $0x28] sm:$0xff]
    %v3717 = vld [vmem:[%s5 + $0x30] sm:$0xff]
    %v3718 = vld [vmem:[%s5 + $0x38] sm:$0xff]
    %v3719 = vld [vmem:[%s5 + $0x40] sm:$0xff]
    %v3720 = vld [vmem:[%s5 + $0x48] sm:$0xff]
    %v3721 = vld [vmem:[%s5 + $0x50] sm:$0xff]
    %v3722 = vld [vmem:[%s5 + $0x58] sm:$0xff]
    %v3723 = vld [vmem:[%s5 + $0x60] sm:$0xff]
    %v3724 = vld [vmem:[%s5 + $0x68] sm:$0xff]
    %v3725 = vld [vmem:[%s5 + $0x70] sm:$0xff]
    %v3726 = vld [vmem:[%s5 + $0x78] sm:$0xff]
    %v3727 = vld [vmem:[%s5 + $0x80] sm:$0xff]
    %v3728 = vld [vmem:[%s5 + $0x88] sm:$0xff]
    %v3729 = vld [vmem:[%s5 + $0x90] sm:$0xff]
    %v3730 = vld [vmem:[%s5 + $0x98] sm:$0xff]
    %v3731 = vld [vmem:[%s5 + $0xa0] sm:$0xff]
    %v3732 = vld [vmem:[%s5 + $0xa8] sm:$0xff]
    %v3733 = vld [vmem:[%s5 + $0xb0] sm:$0xff]
    %v3734 = vld [vmem:[%s5 + $0xb8] sm:$0xff]
    %v3735 = vld [vmem:[%s5 + $0xc0] sm:$0xff]
    %v3736 = vld [vmem:[%s5 + $0xc8] sm:$0xff]
    %v3737 = vld [vmem:[%s5 + $0xd0] sm:$0xff]
    %v3738 = vld [vmem:[%s5 + $0xd8] sm:$0xff]
    %v3739 = vld [vmem:[%s5 + $0xe0] sm:$0xff]
    %v3740 = vld [vmem:[%s5 + $0xe8] sm:$0xff]
    %v3741 = vld [vmem:[%s5 + $0xf0] sm:$0xff]
    %v3742 = vld [vmem:[%s5 + $0xf8] sm:$0xff]
    %v3743 = vpack.c.bf16 %v3463, %v3455
    %v3744 = vpack.c.bf16 %v3464, %v3456
    %v3745 = vpack.c.bf16 %v3465, %v3457
    %v3746 = vpack.c.bf16 %v3466, %v3458
    %v3747 = vpack.c.bf16 %v3467, %v3459
    %v3748 = vpack.c.bf16 %v3468, %v3460
    %v3749 = vpack.c.bf16 %v3469, %v3461
    %v3750 = vpack.c.bf16 %v3470, %v3462
    %v3751 = vpack.c.bf16 %v3479, %v3471
    %v3752 = vpack.c.bf16 %v3480, %v3472
    %v3753 = vpack.c.bf16 %v3481, %v3473
    %v3754 = vpack.c.bf16 %v3482, %v3474
    %v3755 = vpack.c.bf16 %v3483, %v3475
    %v3756 = vpack.c.bf16 %v3484, %v3476
    %v3757 = vpack.c.bf16 %v3485, %v3477
    %v3758 = vpack.c.bf16 %v3486, %v3478
    %v3759 = vpack.c.bf16 %v3495, %v3487
    %v3760 = vpack.c.bf16 %v3496, %v3488
    %v3761 = vpack.c.bf16 %v3497, %v3489
    %v3762 = vpack.c.bf16 %v3498, %v3490
    %v3763 = vpack.c.bf16 %v3499, %v3491
    %v3764 = vpack.c.bf16 %v3500, %v3492
    %v3765 = vpack.c.bf16 %v3501, %v3493
    %v3766 = vpack.c.bf16 %v3502, %v3494
    %v3767 = vpack.c.bf16 %v3511, %v3503
    %v3768 = vpack.c.bf16 %v3512, %v3504
    %v3769 = vpack.c.bf16 %v3513, %v3505
    %v3770 = vpack.c.bf16 %v3514, %v3506
    %v3771 = vpack.c.bf16 %v3515, %v3507
    %v3772 = vpack.c.bf16 %v3516, %v3508
    %v3773 = vpack.c.bf16 %v3517, %v3509
    %v3774 = vpack.c.bf16 %v3518, %v3510
    %v3775 = vpack.c.bf16 %v3527, %v3519
    %v3776 = vpack.c.bf16 %v3528, %v3520
    %v3777 = vpack.c.bf16 %v3529, %v3521
    %v3778 = vpack.c.bf16 %v3530, %v3522
    %v3779 = vpack.c.bf16 %v3531, %v3523
    %v3780 = vpack.c.bf16 %v3532, %v3524
    %v3781 = vpack.c.bf16 %v3533, %v3525
    %v3782 = vpack.c.bf16 %v3534, %v3526
    %v3783 = vpack.c.bf16 %v3543, %v3535
    %v3784 = vpack.c.bf16 %v3544, %v3536
    %v3785 = vpack.c.bf16 %v3545, %v3537
    %v3786 = vpack.c.bf16 %v3546, %v3538
    %v3787 = vpack.c.bf16 %v3547, %v3539
    %v3788 = vpack.c.bf16 %v3548, %v3540
    %v3789 = vpack.c.bf16 %v3549, %v3541
    %v3790 = vpack.c.bf16 %v3550, %v3542
    %v3791 = vpack.c.bf16 %v3559, %v3551
    %v3792 = vpack.c.bf16 %v3560, %v3552
    %v3793 = vpack.c.bf16 %v3561, %v3553
    %v3794 = vpack.c.bf16 %v3562, %v3554
    %v3795 = vpack.c.bf16 %v3563, %v3555
    %v3796 = vpack.c.bf16 %v3564, %v3556
    %v3797 = vpack.c.bf16 %v3565, %v3557
    %v3798 = vpack.c.bf16 %v3566, %v3558
    %v3799 = vpack.c.bf16 %v3575, %v3567
    %v3800 = vpack.c.bf16 %v3576, %v3568
    %v3801 = vpack.c.bf16 %v3577, %v3569
    %v3802 = vpack.c.bf16 %v3578, %v3570
    %v3803 = vpack.c.bf16 %v3579, %v3571
    %v3804 = vpack.c.bf16 %v3580, %v3572
    %v3805 = vpack.c.bf16 %v3581, %v3573
    %v3806 = vpack.c.bf16 %v3582, %v3574
    %v3807 = vpack.c.bf16 %v3591, %v3583
    %v3808 = vpack.c.bf16 %v3592, %v3584
    %v3809 = vpack.c.bf16 %v3593, %v3585
    %v3810 = vpack.c.bf16 %v3594, %v3586
    %v3811 = vpack.c.bf16 %v3595, %v3587
    %v3812 = vpack.c.bf16 %v3596, %v3588
    %v3813 = vpack.c.bf16 %v3597, %v3589
    %v3814 = vpack.c.bf16 %v3598, %v3590
    %v3815 = vpack.c.bf16 %v3607, %v3599
    %v3816 = vpack.c.bf16 %v3608, %v3600
    %v3817 = vpack.c.bf16 %v3609, %v3601
    %v3818 = vpack.c.bf16 %v3610, %v3602
    %v3819 = vpack.c.bf16 %v3611, %v3603
    %v3820 = vpack.c.bf16 %v3612, %v3604
    %v3821 = vpack.c.bf16 %v3613, %v3605
    %v3822 = vpack.c.bf16 %v3614, %v3606
    %v3823 = vpack.c.bf16 %v3623, %v3615
    %v3824 = vpack.c.bf16 %v3624, %v3616
    %v3825 = vpack.c.bf16 %v3625, %v3617
    %v3826 = vpack.c.bf16 %v3626, %v3618
    %v3827 = vpack.c.bf16 %v3627, %v3619
    %v3828 = vpack.c.bf16 %v3628, %v3620
    %v3829 = vpack.c.bf16 %v3629, %v3621
    %v3830 = vpack.c.bf16 %v3630, %v3622
    %v3831 = vpack.c.bf16 %v3639, %v3631
    %v3832 = vpack.c.bf16 %v3640, %v3632
    %v3833 = vpack.c.bf16 %v3641, %v3633
    %v3834 = vpack.c.bf16 %v3642, %v3634
    %v3835 = vpack.c.bf16 %v3643, %v3635
    %v3836 = vpack.c.bf16 %v3644, %v3636
    %v3837 = vpack.c.bf16 %v3645, %v3637
    %v3838 = vpack.c.bf16 %v3646, %v3638
    %v3839 = vpack.c.bf16 %v3655, %v3647
    %v3840 = vpack.c.bf16 %v3656, %v3648
    %v3841 = vpack.c.bf16 %v3657, %v3649
    %v3842 = vpack.c.bf16 %v3658, %v3650
    %v3843 = vpack.c.bf16 %v3659, %v3651
    %v3844 = vpack.c.bf16 %v3660, %v3652
    %v3845 = vpack.c.bf16 %v3661, %v3653
    %v3846 = vpack.c.bf16 %v3662, %v3654
    %v3847 = vpack.c.bf16 %v3671, %v3663
    %v3848 = vpack.c.bf16 %v3672, %v3664
    %v3849 = vpack.c.bf16 %v3673, %v3665
    %v3850 = vpack.c.bf16 %v3674, %v3666
    %v3851 = vpack.c.bf16 %v3675, %v3667
    %v3852 = vpack.c.bf16 %v3676, %v3668
    %v3853 = vpack.c.bf16 %v3677, %v3669
    %v3854 = vpack.c.bf16 %v3678, %v3670
    %v3855 = vpack.c.bf16 %v3687, %v3679
    %v3856 = vpack.c.bf16 %v3688, %v3680
    %v3857 = vpack.c.bf16 %v3689, %v3681
    %v3858 = vpack.c.bf16 %v3690, %v3682
    %v3859 = vpack.c.bf16 %v3691, %v3683
    %v3860 = vpack.c.bf16 %v3692, %v3684
    %v3861 = vpack.c.bf16 %v3693, %v3685
    %v3862 = vpack.c.bf16 %v3694, %v3686
    %v3863 = vpack.c.bf16 %v3703, %v3695
    %v3864 = vpack.c.bf16 %v3704, %v3696
    %v3865 = vpack.c.bf16 %v3705, %v3697
    %v3866 = vpack.c.bf16 %v3706, %v3698
    %v3867 = vpack.c.bf16 %v3707, %v3699
    %v3868 = vpack.c.bf16 %v3708, %v3700
    %v3869 = vpack.c.bf16 %v3709, %v3701
    %v3870 = vpack.c.bf16 %v3710, %v3702
    %v3871 = vld [vmem:[%s6] sm:$0xff]
    %v3872 = vld [vmem:[%s6 + $0x8] sm:$0xff]
    %v3873 = vld [vmem:[%s6 + $0x10] sm:$0xff]
    %v3874 = vld [vmem:[%s6 + $0x18] sm:$0xff]
    %v3875 = vld [vmem:[%s6 + $0x20] sm:$0xff]
    %v3876 = vld [vmem:[%s6 + $0x28] sm:$0xff]
    %v3877 = vld [vmem:[%s6 + $0x30] sm:$0xff]
    %v3878 = vld [vmem:[%s6 + $0x38] sm:$0xff]
    %v3879 = vld [vmem:[%s6 + $0x40] sm:$0xff]
    %v3880 = vld [vmem:[%s6 + $0x48] sm:$0xff]
    %v3881 = vld [vmem:[%s6 + $0x50] sm:$0xff]
    %v3882 = vld [vmem:[%s6 + $0x58] sm:$0xff]
    %v3883 = vld [vmem:[%s6 + $0x60] sm:$0xff]
    %v3884 = vld [vmem:[%s6 + $0x68] sm:$0xff]
    %v3885 = vld [vmem:[%s6 + $0x70] sm:$0xff]
    %v3886 = vld [vmem:[%s6 + $0x78] sm:$0xff]
    %v3887 = vld [vmem:[%s6 + $0x80] sm:$0xff]
    %v3888 = vld [vmem:[%s6 + $0x88] sm:$0xff]
    %v3889 = vld [vmem:[%s6 + $0x90] sm:$0xff]
    %v3890 = vld [vmem:[%s6 + $0x98] sm:$0xff]
    %v3891 = vld [vmem:[%s6 + $0xa0] sm:$0xff]
    %v3892 = vld [vmem:[%s6 + $0xa8] sm:$0xff]
    %v3893 = vld [vmem:[%s6 + $0xb0] sm:$0xff]
    %v3894 = vld [vmem:[%s6 + $0xb8] sm:$0xff]
    %v3895 = vld [vmem:[%s6 + $0xc0] sm:$0xff]
    %v3896 = vld [vmem:[%s6 + $0xc8] sm:$0xff]
    %v3897 = vld [vmem:[%s6 + $0xd0] sm:$0xff]
    %v3898 = vld [vmem:[%s6 + $0xd8] sm:$0xff]
    %v3899 = vld [vmem:[%s6 + $0xe0] sm:$0xff]
    %v3900 = vld [vmem:[%s6 + $0xe8] sm:$0xff]
    %v3901 = vld [vmem:[%s6 + $0xf0] sm:$0xff]
    %v3902 = vld [vmem:[%s6 + $0xf8] sm:$0xff]
    %3904 = vset.pattern.permute.xlu0 0
    %3905 = vperm.xlu0 %3904, %v3871
    %v3906 = vpop.permute.xlu0 %3905
    %3909 = vset.pattern.permute.xlu0 0
    %3910 = vperm.xlu0 %3909, %v3872
    %v3911 = vpop.permute.xlu0 %3910
    %3914 = vset.pattern.permute.xlu0 0
    %3915 = vperm.xlu0 %3914, %v3873
    %v3916 = vpop.permute.xlu0 %3915
    %3919 = vset.pattern.permute.xlu0 0
    %3920 = vperm.xlu0 %3919, %v3874
    %v3921 = vpop.permute.xlu0 %3920
    %3924 = vset.pattern.permute.xlu0 0
    %3925 = vperm.xlu0 %3924, %v3875
    %v3926 = vpop.permute.xlu0 %3925
    %3929 = vset.pattern.permute.xlu0 0
    %3930 = vperm.xlu0 %3929, %v3876
    %v3931 = vpop.permute.xlu0 %3930
    %3934 = vset.pattern.permute.xlu0 0
    %3935 = vperm.xlu0 %3934, %v3877
    %v3936 = vpop.permute.xlu0 %3935
    %3939 = vset.pattern.permute.xlu0 0
    %3940 = vperm.xlu0 %3939, %v3878
    %v3941 = vpop.permute.xlu0 %3940
    %3944 = vset.pattern.permute.xlu0 0
    %3945 = vperm.xlu0 %3944, %v3879
    %v3946 = vpop.permute.xlu0 %3945
    %3949 = vset.pattern.permute.xlu0 0
    %3950 = vperm.xlu0 %3949, %v3880
    %v3951 = vpop.permute.xlu0 %3950
    %3954 = vset.pattern.permute.xlu0 0
    %3955 = vperm.xlu0 %3954, %v3881
    %v3956 = vpop.permute.xlu0 %3955
    %3959 = vset.pattern.permute.xlu0 0
    %3960 = vperm.xlu0 %3959, %v3882
    %v3961 = vpop.permute.xlu0 %3960
    %3964 = vset.pattern.permute.xlu0 0
    %3965 = vperm.xlu0 %3964, %v3883
    %v3966 = vpop.permute.xlu0 %3965
    %3969 = vset.pattern.permute.xlu0 0
    %3970 = vperm.xlu0 %3969, %v3884
    %v3971 = vpop.permute.xlu0 %3970
    %3974 = vset.pattern.permute.xlu0 0
    %3975 = vperm.xlu0 %3974, %v3885
    %v3976 = vpop.permute.xlu0 %3975
    %3979 = vset.pattern.permute.xlu0 0
    %3980 = vperm.xlu0 %3979, %v3886
    %v3981 = vpop.permute.xlu0 %3980
    %3984 = vset.pattern.permute.xlu0 0
    %3985 = vperm.xlu0 %3984, %v3887
    %v3986 = vpop.permute.xlu0 %3985
    %3989 = vset.pattern.permute.xlu0 0
    %3990 = vperm.xlu0 %3989, %v3888
    %v3991 = vpop.permute.xlu0 %3990
    %3994 = vset.pattern.permute.xlu0 0
    %3995 = vperm.xlu0 %3994, %v3889
    %v3996 = vpop.permute.xlu0 %3995
    %3999 = vset.pattern.permute.xlu0 0
    %4000 = vperm.xlu0 %3999, %v3890
    %v4001 = vpop.permute.xlu0 %4000
    %4004 = vset.pattern.permute.xlu0 0
    %4005 = vperm.xlu0 %4004, %v3891
    %v4006 = vpop.permute.xlu0 %4005
    %4009 = vset.pattern.permute.xlu0 0
    %4010 = vperm.xlu0 %4009, %v3892
    %v4011 = vpop.permute.xlu0 %4010
    %4014 = vset.pattern.permute.xlu0 0
    %4015 = vperm.xlu0 %4014, %v3893
    %v4016 = vpop.permute.xlu0 %4015
    %4019 = vset.pattern.permute.xlu0 0
    %4020 = vperm.xlu0 %4019, %v3894
    %v4021 = vpop.permute.xlu0 %4020
    %4024 = vset.pattern.permute.xlu0 0
    %4025 = vperm.xlu0 %4024, %v3895
    %v4026 = vpop.permute.xlu0 %4025
    %4029 = vset.pattern.permute.xlu0 0
    %4030 = vperm.xlu0 %4029, %v3896
    %v4031 = vpop.permute.xlu0 %4030
    %4034 = vset.pattern.permute.xlu0 0
    %4035 = vperm.xlu0 %4034, %v3897
    %v4036 = vpop.permute.xlu0 %4035
    %4039 = vset.pattern.permute.xlu0 0
    %4040 = vperm.xlu0 %4039, %v3898
    %v4041 = vpop.permute.xlu0 %4040
    %4044 = vset.pattern.permute.xlu0 0
    %4045 = vperm.xlu0 %4044, %v3899
    %v4046 = vpop.permute.xlu0 %4045
    %4049 = vset.pattern.permute.xlu0 0
    %4050 = vperm.xlu0 %4049, %v3900
    %v4051 = vpop.permute.xlu0 %4050
    %4054 = vset.pattern.permute.xlu0 0
    %4055 = vperm.xlu0 %4054, %v3901
    %v4056 = vpop.permute.xlu0 %4055
    %4059 = vset.pattern.permute.xlu0 0
    %4060 = vperm.xlu0 %4059, %v3902
    %v4061 = vpop.permute.xlu0 %4060
    %v4095 = vunpack.c.l.b16 %v3711
    %v4096 = vunpack.c.h.b16 %v3711
    %v4097 = vunpack.c.l.b16 %v3712
    %v4098 = vunpack.c.h.b16 %v3712
    %v4099 = vunpack.c.l.b16 %v3713
    %v4100 = vunpack.c.h.b16 %v3713
    %v4101 = vunpack.c.l.b16 %v3714
    %v4102 = vunpack.c.h.b16 %v3714
    %v4103 = vunpack.c.l.b16 %v3715
    %v4104 = vunpack.c.h.b16 %v3715
    %v4105 = vunpack.c.l.b16 %v3716
    %v4106 = vunpack.c.h.b16 %v3716
    %v4107 = vunpack.c.l.b16 %v3717
    %v4108 = vunpack.c.h.b16 %v3717
    %v4109 = vunpack.c.l.b16 %v3718
    %v4110 = vunpack.c.h.b16 %v3718
    %v4111 = vunpack.c.l.b16 %v3719
    %v4112 = vunpack.c.h.b16 %v3719
    %v4113 = vunpack.c.l.b16 %v3720
    %v4114 = vunpack.c.h.b16 %v3720
    %v4115 = vunpack.c.l.b16 %v3721
    %v4116 = vunpack.c.h.b16 %v3721
    %v4117 = vunpack.c.l.b16 %v3722
    %v4118 = vunpack.c.h.b16 %v3722
    %v4119 = vunpack.c.l.b16 %v3723
    %v4120 = vunpack.c.h.b16 %v3723
    %v4121 = vunpack.c.l.b16 %v3724
    %v4122 = vunpack.c.h.b16 %v3724
    %v4123 = vunpack.c.l.b16 %v3725
    %v4124 = vunpack.c.h.b16 %v3725
    %v4125 = vunpack.c.l.b16 %v3726
    %v4126 = vunpack.c.h.b16 %v3726
    %v4127 = vunpack.c.l.b16 %v3727
    %v4128 = vunpack.c.h.b16 %v3727
    %v4129 = vunpack.c.l.b16 %v3728
    %v4130 = vunpack.c.h.b16 %v3728
    %v4131 = vunpack.c.l.b16 %v3729
    %v4132 = vunpack.c.h.b16 %v3729
    %v4133 = vunpack.c.l.b16 %v3730
    %v4134 = vunpack.c.h.b16 %v3730
    %v4135 = vunpack.c.l.b16 %v3731
    %v4136 = vunpack.c.h.b16 %v3731
    %v4137 = vunpack.c.l.b16 %v3732
    %v4138 = vunpack.c.h.b16 %v3732
    %v4139 = vunpack.c.l.b16 %v3733
    %v4140 = vunpack.c.h.b16 %v3733
    %v4141 = vunpack.c.l.b16 %v3734
    %v4142 = vunpack.c.h.b16 %v3734
    %v4143 = vunpack.c.l.b16 %v3735
    %v4144 = vunpack.c.h.b16 %v3735
    %v4145 = vunpack.c.l.b16 %v3736
    %v4146 = vunpack.c.h.b16 %v3736
    %v4147 = vunpack.c.l.b16 %v3737
    %v4148 = vunpack.c.h.b16 %v3737
    %v4149 = vunpack.c.l.b16 %v3738
    %v4150 = vunpack.c.h.b16 %v3738
    %v4151 = vunpack.c.l.b16 %v3739
    %v4152 = vunpack.c.h.b16 %v3739
    %v4153 = vunpack.c.l.b16 %v3740
    %v4154 = vunpack.c.h.b16 %v3740
    %v4155 = vunpack.c.l.b16 %v3741
    %v4156 = vunpack.c.h.b16 %v3741
    %v4157 = vunpack.c.l.b16 %v3742
    %v4158 = vunpack.c.h.b16 %v3742
    %v4159 = vpack.c.b16 %v4097, %v4095
    %v4160 = vpack.c.b16 %v4098, %v4096
    %v4161 = vpack.c.b16 %v4101, %v4099
    %v4162 = vpack.c.b16 %v4102, %v4100
    %v4163 = vpack.c.b16 %v4105, %v4103
    %v4164 = vpack.c.b16 %v4106, %v4104
    %v4165 = vpack.c.b16 %v4109, %v4107
    %v4166 = vpack.c.b16 %v4110, %v4108
    %v4167 = vpack.c.b16 %v4113, %v4111
    %v4168 = vpack.c.b16 %v4114, %v4112
    %v4169 = vpack.c.b16 %v4117, %v4115
    %v4170 = vpack.c.b16 %v4118, %v4116
    %v4171 = vpack.c.b16 %v4121, %v4119
    %v4172 = vpack.c.b16 %v4122, %v4120
    %v4173 = vpack.c.b16 %v4125, %v4123
    %v4174 = vpack.c.b16 %v4126, %v4124
    %v4175 = vpack.c.b16 %v4129, %v4127
    %v4176 = vpack.c.b16 %v4130, %v4128
    %v4177 = vpack.c.b16 %v4133, %v4131
    %v4178 = vpack.c.b16 %v4134, %v4132
    %v4179 = vpack.c.b16 %v4137, %v4135
    %v4180 = vpack.c.b16 %v4138, %v4136
    %v4181 = vpack.c.b16 %v4141, %v4139
    %v4182 = vpack.c.b16 %v4142, %v4140
    %v4183 = vpack.c.b16 %v4145, %v4143
    %v4184 = vpack.c.b16 %v4146, %v4144
    %v4185 = vpack.c.b16 %v4149, %v4147
    %v4186 = vpack.c.b16 %v4150, %v4148
    %v4187 = vpack.c.b16 %v4153, %v4151
    %v4188 = vpack.c.b16 %v4154, %v4152
    %v4189 = vpack.c.b16 %v4157, %v4155
    %v4190 = vpack.c.b16 %v4158, %v4156
    %4223 = vmatpush.bf16.msra.mxu0 %v3799
    %4224 = vmatpush.bf16.msra.mxu0 %v3791
    %4225 = vmatpush.bf16.msra.mxu0 %v3783
    %4226 = vmatpush.bf16.msra.mxu0 %v3775
    %4227 = vmatpush.bf16.msra.mxu0 %v3767
    %4228 = vmatpush.bf16.msra.mxu0 %v3759
    %4229 = vmatpush.bf16.msra.mxu0 %v3751
    %4230 = vmatpush.bf16.msra.mxu0 %v3743
    %4231 = vmatmul.bf16.gmra.mxu0 %v4159
    %v4232 = vpop.f32.mrf.mxu0
    %v4233 = vadd.f32 %v3906, %v4232
    %v4234 = vpop.f32.mrf.mxu0
    %v4235 = vadd.f32 %v3911, %v4234
    %4236 = vmatmul.bf16.gmra.mxu0 %v4161
    %v4237 = vpop.f32.mrf.mxu0
    %v4238 = vadd.f32 %v3916, %v4237
    %v4239 = vpop.f32.mrf.mxu0
    %v4240 = vadd.f32 %v3921, %v4239
    %4241 = vmatmul.bf16.gmra.mxu0 %v4163
    %v4242 = vpop.f32.mrf.mxu0
    %v4243 = vadd.f32 %v3926, %v4242
    %v4244 = vpop.f32.mrf.mxu0
    %v4245 = vadd.f32 %v3931, %v4244
    %4246 = vmatmul.bf16.gmra.mxu0 %v4165
    %v4247 = vpop.f32.mrf.mxu0
    %v4248 = vadd.f32 %v3936, %v4247
    %v4249 = vpop.f32.mrf.mxu0
    %v4250 = vadd.f32 %v3941, %v4249
    %4251 = vmatmul.bf16.gmra.mxu0 %v4167
    %v4252 = vpop.f32.mrf.mxu0
    %v4253 = vadd.f32 %v3946, %v4252
    %v4254 = vpop.f32.mrf.mxu0
    %v4255 = vadd.f32 %v3951, %v4254
    %4256 = vmatmul.bf16.gmra.mxu0 %v4169
    %v4257 = vpop.f32.mrf.mxu0
    %v4258 = vadd.f32 %v3956, %v4257
    %v4259 = vpop.f32.mrf.mxu0
    %v4260 = vadd.f32 %v3961, %v4259
    %4261 = vmatmul.bf16.gmra.mxu0 %v4171
    %v4262 = vpop.f32.mrf.mxu0
    %v4263 = vadd.f32 %v3966, %v4262
    %v4264 = vpop.f32.mrf.mxu0
    %v4265 = vadd.f32 %v3971, %v4264
    %4266 = vmatmul.bf16.gmra.mxu0 %v4173
    %v4267 = vpop.f32.mrf.mxu0
    %v4268 = vadd.f32 %v3976, %v4267
    %v4269 = vpop.f32.mrf.mxu0
    %v4270 = vadd.f32 %v3981, %v4269
    %4271 = vmatmul.bf16.gmra.mxu0 %v4175
    %v4272 = vpop.f32.mrf.mxu0
    %v4273 = vadd.f32 %v3986, %v4272
    %v4274 = vpop.f32.mrf.mxu0
    %v4275 = vadd.f32 %v3991, %v4274
    %4276 = vmatmul.bf16.gmra.mxu0 %v4177
    %v4277 = vpop.f32.mrf.mxu0
    %v4278 = vadd.f32 %v3996, %v4277
    %v4279 = vpop.f32.mrf.mxu0
    %v4280 = vadd.f32 %v4001, %v4279
    %4281 = vmatmul.bf16.gmra.mxu0 %v4179
    %v4282 = vpop.f32.mrf.mxu0
    %v4283 = vadd.f32 %v4006, %v4282
    %v4284 = vpop.f32.mrf.mxu0
    %v4285 = vadd.f32 %v4011, %v4284
    %4286 = vmatmul.bf16.gmra.mxu0 %v4181
    %v4287 = vpop.f32.mrf.mxu0
    %v4288 = vadd.f32 %v4016, %v4287
    %v4289 = vpop.f32.mrf.mxu0
    %v4290 = vadd.f32 %v4021, %v4289
    %4291 = vmatmul.bf16.gmra.mxu0 %v4183
    %v4292 = vpop.f32.mrf.mxu0
    %v4293 = vadd.f32 %v4026, %v4292
    %v4294 = vpop.f32.mrf.mxu0
    %v4295 = vadd.f32 %v4031, %v4294
    %4296 = vmatmul.bf16.gmra.mxu0 %v4185
    %v4297 = vpop.f32.mrf.mxu0
    %v4298 = vadd.f32 %v4036, %v4297
    %v4299 = vpop.f32.mrf.mxu0
    %v4300 = vadd.f32 %v4041, %v4299
    %4301 = vmatmul.bf16.gmra.mxu0 %v4187
    %v4302 = vpop.f32.mrf.mxu0
    %v4303 = vadd.f32 %v4046, %v4302
    %v4304 = vpop.f32.mrf.mxu0
    %v4305 = vadd.f32 %v4051, %v4304
    %4306 = vmatmul.bf16.gmra.mxu0 %v4189
    %v4307 = vpop.f32.mrf.mxu0
    %v4308 = vadd.f32 %v4056, %v4307
    %v4309 = vpop.f32.mrf.mxu0
    %v4310 = vadd.f32 %v4061, %v4309
    %4311 = vdwg.mxu0
    %4312 = vmatpush.bf16.msra.mxu0 %v3863
    %4313 = vmatpush.bf16.msra.mxu0 %v3855
    %4314 = vmatpush.bf16.msra.mxu0 %v3847
    %4315 = vmatpush.bf16.msra.mxu0 %v3839
    %4316 = vmatpush.bf16.msra.mxu0 %v3831
    %4317 = vmatpush.bf16.msra.mxu0 %v3823
    %4318 = vmatpush.bf16.msra.mxu0 %v3815
    %4319 = vmatpush.bf16.msra.mxu0 %v3807
    %4320 = vmatmul.bf16.gmra.mxu0 %v4160
    %v4321 = vpop.f32.mrf.mxu0
    %v4322 = vadd.f32 %v4233, %v4321
    %v4323 = vpop.f32.mrf.mxu0
    %v4324 = vadd.f32 %v4235, %v4323
    %4325 = vmatmul.bf16.gmra.mxu0 %v4162
    %v4326 = vpop.f32.mrf.mxu0
    %v4327 = vadd.f32 %v4238, %v4326
    %v4328 = vpop.f32.mrf.mxu0
    %v4329 = vadd.f32 %v4240, %v4328
    %4330 = vmatmul.bf16.gmra.mxu0 %v4164
    %v4331 = vpop.f32.mrf.mxu0
    %v4332 = vadd.f32 %v4243, %v4331
    %v4333 = vpop.f32.mrf.mxu0
    %v4334 = vadd.f32 %v4245, %v4333
    %4335 = vmatmul.bf16.gmra.mxu0 %v4166
    %v4336 = vpop.f32.mrf.mxu0
    %v4337 = vadd.f32 %v4248, %v4336
    %v4338 = vpop.f32.mrf.mxu0
    %v4339 = vadd.f32 %v4250, %v4338
    %4340 = vmatmul.bf16.gmra.mxu0 %v4168
    %v4341 = vpop.f32.mrf.mxu0
    %v4342 = vadd.f32 %v4253, %v4341
    %v4343 = vpop.f32.mrf.mxu0
    %v4344 = vadd.f32 %v4255, %v4343
    %4345 = vmatmul.bf16.gmra.mxu0 %v4170
    %v4346 = vpop.f32.mrf.mxu0
    %v4347 = vadd.f32 %v4258, %v4346
    %v4348 = vpop.f32.mrf.mxu0
    %v4349 = vadd.f32 %v4260, %v4348
    %4350 = vmatmul.bf16.gmra.mxu0 %v4172
    %v4351 = vpop.f32.mrf.mxu0
    %v4352 = vadd.f32 %v4263, %v4351
    %v4353 = vpop.f32.mrf.mxu0
    %v4354 = vadd.f32 %v4265, %v4353
    %4355 = vmatmul.bf16.gmra.mxu0 %v4174
    %v4356 = vpop.f32.mrf.mxu0
    %v4357 = vadd.f32 %v4268, %v4356
    %v4358 = vpop.f32.mrf.mxu0
    %v4359 = vadd.f32 %v4270, %v4358
    %4360 = vmatmul.bf16.gmra.mxu0 %v4176
    %v4361 = vpop.f32.mrf.mxu0
    %v4362 = vadd.f32 %v4273, %v4361
    %v4363 = vpop.f32.mrf.mxu0
    %v4364 = vadd.f32 %v4275, %v4363
    %4365 = vmatmul.bf16.gmra.mxu0 %v4178
    %v4366 = vpop.f32.mrf.mxu0
    %v4367 = vadd.f32 %v4278, %v4366
    %v4368 = vpop.f32.mrf.mxu0
    %v4369 = vadd.f32 %v4280, %v4368
    %4370 = vmatmul.bf16.gmra.mxu0 %v4180
    %v4371 = vpop.f32.mrf.mxu0
    %v4372 = vadd.f32 %v4283, %v4371
    %v4373 = vpop.f32.mrf.mxu0
    %v4374 = vadd.f32 %v4285, %v4373
    %4375 = vmatmul.bf16.gmra.mxu0 %v4182
    %v4376 = vpop.f32.mrf.mxu0
    %v4377 = vadd.f32 %v4288, %v4376
    %v4378 = vpop.f32.mrf.mxu0
    %v4379 = vadd.f32 %v4290, %v4378
    %4380 = vmatmul.bf16.gmra.mxu0 %v4184
    %v4381 = vpop.f32.mrf.mxu0
    %v4382 = vadd.f32 %v4293, %v4381
    %v4383 = vpop.f32.mrf.mxu0
    %v4384 = vadd.f32 %v4295, %v4383
    %4385 = vmatmul.bf16.gmra.mxu0 %v4186
    %v4386 = vpop.f32.mrf.mxu0
    %v4387 = vadd.f32 %v4298, %v4386
    %v4388 = vpop.f32.mrf.mxu0
    %v4389 = vadd.f32 %v4300, %v4388
    %4390 = vmatmul.bf16.gmra.mxu0 %v4188
    %v4391 = vpop.f32.mrf.mxu0
    %v4392 = vadd.f32 %v4303, %v4391
    %v4393 = vpop.f32.mrf.mxu0
    %v4394 = vadd.f32 %v4305, %v4393
    %4395 = vmatmul.bf16.gmra.mxu0 %v4190
    %v4396 = vpop.f32.mrf.mxu0
    %v4397 = vadd.f32 %v4308, %v4396
    %v4398 = vpop.f32.mrf.mxu0
    %v4399 = vadd.f32 %v4310, %v4398
    %4400 = vdwg.mxu0
    %4401 = vmatpush.bf16.msra.mxu0 %v3800
    %4402 = vmatpush.bf16.msra.mxu0 %v3792
    %4403 = vmatpush.bf16.msra.mxu0 %v3784
    %4404 = vmatpush.bf16.msra.mxu0 %v3776
    %4405 = vmatpush.bf16.msra.mxu0 %v3768
    %4406 = vmatpush.bf16.msra.mxu0 %v3760
    %4407 = vmatpush.bf16.msra.mxu0 %v3752
    %4408 = vmatpush.bf16.msra.mxu0 %v3744
    %4409 = vmatmul.bf16.gmra.mxu0 %v4159
    %v4410 = vpop.f32.mrf.mxu0
    %v4411 = vadd.f32 %v3906, %v4410
    %v4412 = vpop.f32.mrf.mxu0
    %v4413 = vadd.f32 %v3911, %v4412
    %4414 = vmatmul.bf16.gmra.mxu0 %v4161
    %v4415 = vpop.f32.mrf.mxu0
    %v4416 = vadd.f32 %v3916, %v4415
    %v4417 = vpop.f32.mrf.mxu0
    %v4418 = vadd.f32 %v3921, %v4417
    %4419 = vmatmul.bf16.gmra.mxu0 %v4163
    %v4420 = vpop.f32.mrf.mxu0
    %v4421 = vadd.f32 %v3926, %v4420
    %v4422 = vpop.f32.mrf.mxu0
    %v4423 = vadd.f32 %v3931, %v4422
    %4424 = vmatmul.bf16.gmra.mxu0 %v4165
    %v4425 = vpop.f32.mrf.mxu0
    %v4426 = vadd.f32 %v3936, %v4425
    %v4427 = vpop.f32.mrf.mxu0
    %v4428 = vadd.f32 %v3941, %v4427
    %4429 = vmatmul.bf16.gmra.mxu0 %v4167
    %v4430 = vpop.f32.mrf.mxu0
    %v4431 = vadd.f32 %v3946, %v4430
    %v4432 = vpop.f32.mrf.mxu0
    %v4433 = vadd.f32 %v3951, %v4432
    %4434 = vmatmul.bf16.gmra.mxu0 %v4169
    %v4435 = vpop.f32.mrf.mxu0
    %v4436 = vadd.f32 %v3956, %v4435
    %v4437 = vpop.f32.mrf.mxu0
    %v4438 = vadd.f32 %v3961, %v4437
    %4439 = vmatmul.bf16.gmra.mxu0 %v4171
    %v4440 = vpop.f32.mrf.mxu0
    %v4441 = vadd.f32 %v3966, %v4440
    %v4442 = vpop.f32.mrf.mxu0
    %v4443 = vadd.f32 %v3971, %v4442
    %4444 = vmatmul.bf16.gmra.mxu0 %v4173
    %v4445 = vpop.f32.mrf.mxu0
    %v4446 = vadd.f32 %v3976, %v4445
    %v4447 = vpop.f32.mrf.mxu0
    %v4448 = vadd.f32 %v3981, %v4447
    %4449 = vmatmul.bf16.gmra.mxu0 %v4175
    %v4450 = vpop.f32.mrf.mxu0
    %v4451 = vadd.f32 %v3986, %v4450
    %v4452 = vpop.f32.mrf.mxu0
    %v4453 = vadd.f32 %v3991, %v4452
    %4454 = vmatmul.bf16.gmra.mxu0 %v4177
    %v4455 = vpop.f32.mrf.mxu0
    %v4456 = vadd.f32 %v3996, %v4455
    %v4457 = vpop.f32.mrf.mxu0
    %v4458 = vadd.f32 %v4001, %v4457
    %4459 = vmatmul.bf16.gmra.mxu0 %v4179
    %v4460 = vpop.f32.mrf.mxu0
    %v4461 = vadd.f32 %v4006, %v4460
    %v4462 = vpop.f32.mrf.mxu0
    %v4463 = vadd.f32 %v4011, %v4462
    %4464 = vmatmul.bf16.gmra.mxu0 %v4181
    %v4465 = vpop.f32.mrf.mxu0
    %v4466 = vadd.f32 %v4016, %v4465
    %v4467 = vpop.f32.mrf.mxu0
    %v4468 = vadd.f32 %v4021, %v4467
    %4469 = vmatmul.bf16.gmra.mxu0 %v4183
    %v4470 = vpop.f32.mrf.mxu0
    %v4471 = vadd.f32 %v4026, %v4470
    %v4472 = vpop.f32.mrf.mxu0
    %v4473 = vadd.f32 %v4031, %v4472
    %4474 = vmatmul.bf16.gmra.mxu0 %v4185
    %v4475 = vpop.f32.mrf.mxu0
    %v4476 = vadd.f32 %v4036, %v4475
    %v4477 = vpop.f32.mrf.mxu0
    %v4478 = vadd.f32 %v4041, %v4477
    %4479 = vmatmul.bf16.gmra.mxu0 %v4187
    %v4480 = vpop.f32.mrf.mxu0
    %v4481 = vadd.f32 %v4046, %v4480
    %v4482 = vpop.f32.mrf.mxu0
    %v4483 = vadd.f32 %v4051, %v4482
    %4484 = vmatmul.bf16.gmra.mxu0 %v4189
    %v4485 = vpop.f32.mrf.mxu0
    %v4486 = vadd.f32 %v4056, %v4485
    %v4487 = vpop.f32.mrf.mxu0
    %v4488 = vadd.f32 %v4061, %v4487
    %4489 = vdwg.mxu0
    %4490 = vmatpush.bf16.msra.mxu0 %v3864
    %4491 = vmatpush.bf16.msra.mxu0 %v3856
    %4492 = vmatpush.bf16.msra.mxu0 %v3848
    %4493 = vmatpush.bf16.msra.mxu0 %v3840
    %4494 = vmatpush.bf16.msra.mxu0 %v3832
    %4495 = vmatpush.bf16.msra.mxu0 %v3824
    %4496 = vmatpush.bf16.msra.mxu0 %v3816
    %4497 = vmatpush.bf16.msra.mxu0 %v3808
    %4498 = vmatmul.bf16.gmra.mxu0 %v4160
    %v4499 = vpop.f32.mrf.mxu0
    %v4500 = vadd.f32 %v4411, %v4499
    %v4501 = vpop.f32.mrf.mxu0
    %v4502 = vadd.f32 %v4413, %v4501
    %4503 = vmatmul.bf16.gmra.mxu0 %v4162
    %v4504 = vpop.f32.mrf.mxu0
    %v4505 = vadd.f32 %v4416, %v4504
    %v4506 = vpop.f32.mrf.mxu0
    %v4507 = vadd.f32 %v4418, %v4506
    %4508 = vmatmul.bf16.gmra.mxu0 %v4164
    %v4509 = vpop.f32.mrf.mxu0
    %v4510 = vadd.f32 %v4421, %v4509
    %v4511 = vpop.f32.mrf.mxu0
    %v4512 = vadd.f32 %v4423, %v4511
    %4513 = vmatmul.bf16.gmra.mxu0 %v4166
    %v4514 = vpop.f32.mrf.mxu0
    %v4515 = vadd.f32 %v4426, %v4514
    %v4516 = vpop.f32.mrf.mxu0
    %v4517 = vadd.f32 %v4428, %v4516
    %4518 = vmatmul.bf16.gmra.mxu0 %v4168
    %v4519 = vpop.f32.mrf.mxu0
    %v4520 = vadd.f32 %v4431, %v4519
    %v4521 = vpop.f32.mrf.mxu0
    %v4522 = vadd.f32 %v4433, %v4521
    %4523 = vmatmul.bf16.gmra.mxu0 %v4170
    %v4524 = vpop.f32.mrf.mxu0
    %v4525 = vadd.f32 %v4436, %v4524
    %v4526 = vpop.f32.mrf.mxu0
    %v4527 = vadd.f32 %v4438, %v4526
    %4528 = vmatmul.bf16.gmra.mxu0 %v4172
    %v4529 = vpop.f32.mrf.mxu0
    %v4530 = vadd.f32 %v4441, %v4529
    %v4531 = vpop.f32.mrf.mxu0
    %v4532 = vadd.f32 %v4443, %v4531
    %4533 = vmatmul.bf16.gmra.mxu0 %v4174
    %v4534 = vpop.f32.mrf.mxu0
    %v4535 = vadd.f32 %v4446, %v4534
    %v4536 = vpop.f32.mrf.mxu0
    %v4537 = vadd.f32 %v4448, %v4536
    %4538 = vmatmul.bf16.gmra.mxu0 %v4176
    %v4539 = vpop.f32.mrf.mxu0
    %v4540 = vadd.f32 %v4451, %v4539
    %v4541 = vpop.f32.mrf.mxu0
    %v4542 = vadd.f32 %v4453, %v4541
    %4543 = vmatmul.bf16.gmra.mxu0 %v4178
    %v4544 = vpop.f32.mrf.mxu0
    %v4545 = vadd.f32 %v4456, %v4544
    %v4546 = vpop.f32.mrf.mxu0
    %v4547 = vadd.f32 %v4458, %v4546
    %4548 = vmatmul.bf16.gmra.mxu0 %v4180
    %v4549 = vpop.f32.mrf.mxu0
    %v4550 = vadd.f32 %v4461, %v4549
    %v4551 = vpop.f32.mrf.mxu0
    %v4552 = vadd.f32 %v4463, %v4551
    %4553 = vmatmul.bf16.gmra.mxu0 %v4182
    %v4554 = vpop.f32.mrf.mxu0
    %v4555 = vadd.f32 %v4466, %v4554
    %v4556 = vpop.f32.mrf.mxu0
    %v4557 = vadd.f32 %v4468, %v4556
    %4558 = vmatmul.bf16.gmra.mxu0 %v4184
    %v4559 = vpop.f32.mrf.mxu0
    %v4560 = vadd.f32 %v4471, %v4559
    %v4561 = vpop.f32.mrf.mxu0
    %v4562 = vadd.f32 %v4473, %v4561
    %4563 = vmatmul.bf16.gmra.mxu0 %v4186
    %v4564 = vpop.f32.mrf.mxu0
    %v4565 = vadd.f32 %v4476, %v4564
    %v4566 = vpop.f32.mrf.mxu0
    %v4567 = vadd.f32 %v4478, %v4566
    %4568 = vmatmul.bf16.gmra.mxu0 %v4188
    %v4569 = vpop.f32.mrf.mxu0
    %v4570 = vadd.f32 %v4481, %v4569
    %v4571 = vpop.f32.mrf.mxu0
    %v4572 = vadd.f32 %v4483, %v4571
    %4573 = vmatmul.bf16.gmra.mxu0 %v4190
    %v4574 = vpop.f32.mrf.mxu0
    %v4575 = vadd.f32 %v4486, %v4574
    %v4576 = vpop.f32.mrf.mxu0
    %v4577 = vadd.f32 %v4488, %v4576
    %4578 = vdwg.mxu0
    %4579 = vmatpush.bf16.msra.mxu0 %v3801
    %4580 = vmatpush.bf16.msra.mxu0 %v3793
    %4581 = vmatpush.bf16.msra.mxu0 %v3785
    %4582 = vmatpush.bf16.msra.mxu0 %v3777
    %4583 = vmatpush.bf16.msra.mxu0 %v3769
    %4584 = vmatpush.bf16.msra.mxu0 %v3761
    %4585 = vmatpush.bf16.msra.mxu0 %v3753
    %4586 = vmatpush.bf16.msra.mxu0 %v3745
    %4587 = vmatmul.bf16.gmra.mxu0 %v4159
    %v4588 = vpop.f32.mrf.mxu0
    %v4589 = vadd.f32 %v3906, %v4588
    %v4590 = vpop.f32.mrf.mxu0
    %v4591 = vadd.f32 %v3911, %v4590
    %4592 = vmatmul.bf16.gmra.mxu0 %v4161
    %v4593 = vpop.f32.mrf.mxu0
    %v4594 = vadd.f32 %v3916, %v4593
    %v4595 = vpop.f32.mrf.mxu0
    %v4596 = vadd.f32 %v3921, %v4595
    %4597 = vmatmul.bf16.gmra.mxu0 %v4163
    %v4598 = vpop.f32.mrf.mxu0
    %v4599 = vadd.f32 %v3926, %v4598
    %v4600 = vpop.f32.mrf.mxu0
    %v4601 = vadd.f32 %v3931, %v4600
    %4602 = vmatmul.bf16.gmra.mxu0 %v4165
    %v4603 = vpop.f32.mrf.mxu0
    %v4604 = vadd.f32 %v3936, %v4603
    %v4605 = vpop.f32.mrf.mxu0
    %v4606 = vadd.f32 %v3941, %v4605
    %4607 = vmatmul.bf16.gmra.mxu0 %v4167
    %v4608 = vpop.f32.mrf.mxu0
    %v4609 = vadd.f32 %v3946, %v4608
    %v4610 = vpop.f32.mrf.mxu0
    %v4611 = vadd.f32 %v3951, %v4610
    %4612 = vmatmul.bf16.gmra.mxu0 %v4169
    %v4613 = vpop.f32.mrf.mxu0
    %v4614 = vadd.f32 %v3956, %v4613
    %v4615 = vpop.f32.mrf.mxu0
    %v4616 = vadd.f32 %v3961, %v4615
    %4617 = vmatmul.bf16.gmra.mxu0 %v4171
    %v4618 = vpop.f32.mrf.mxu0
    %v4619 = vadd.f32 %v3966, %v4618
    %v4620 = vpop.f32.mrf.mxu0
    %v4621 = vadd.f32 %v3971, %v4620
    %4622 = vmatmul.bf16.gmra.mxu0 %v4173
    %v4623 = vpop.f32.mrf.mxu0
    %v4624 = vadd.f32 %v3976, %v4623
    %v4625 = vpop.f32.mrf.mxu0
    %v4626 = vadd.f32 %v3981, %v4625
    %4627 = vmatmul.bf16.gmra.mxu0 %v4175
    %v4628 = vpop.f32.mrf.mxu0
    %v4629 = vadd.f32 %v3986, %v4628
    %v4630 = vpop.f32.mrf.mxu0
    %v4631 = vadd.f32 %v3991, %v4630
    %4632 = vmatmul.bf16.gmra.mxu0 %v4177
    %v4633 = vpop.f32.mrf.mxu0
    %v4634 = vadd.f32 %v3996, %v4633
    %v4635 = vpop.f32.mrf.mxu0
    %v4636 = vadd.f32 %v4001, %v4635
    %4637 = vmatmul.bf16.gmra.mxu0 %v4179
    %v4638 = vpop.f32.mrf.mxu0
    %v4639 = vadd.f32 %v4006, %v4638
    %v4640 = vpop.f32.mrf.mxu0
    %v4641 = vadd.f32 %v4011, %v4640
    %4642 = vmatmul.bf16.gmra.mxu0 %v4181
    %v4643 = vpop.f32.mrf.mxu0
    %v4644 = vadd.f32 %v4016, %v4643
    %v4645 = vpop.f32.mrf.mxu0
    %v4646 = vadd.f32 %v4021, %v4645
    %4647 = vmatmul.bf16.gmra.mxu0 %v4183
    %v4648 = vpop.f32.mrf.mxu0
    %v4649 = vadd.f32 %v4026, %v4648
    %v4650 = vpop.f32.mrf.mxu0
    %v4651 = vadd.f32 %v4031, %v4650
    %4652 = vmatmul.bf16.gmra.mxu0 %v4185
    %v4653 = vpop.f32.mrf.mxu0
    %v4654 = vadd.f32 %v4036, %v4653
    %v4655 = vpop.f32.mrf.mxu0
    %v4656 = vadd.f32 %v4041, %v4655
    %4657 = vmatmul.bf16.gmra.mxu0 %v4187
    %v4658 = vpop.f32.mrf.mxu0
    %v4659 = vadd.f32 %v4046, %v4658
    %v4660 = vpop.f32.mrf.mxu0
    %v4661 = vadd.f32 %v4051, %v4660
    %4662 = vmatmul.bf16.gmra.mxu0 %v4189
    %v4663 = vpop.f32.mrf.mxu0
    %v4664 = vadd.f32 %v4056, %v4663
    %v4665 = vpop.f32.mrf.mxu0
    %v4666 = vadd.f32 %v4061, %v4665
    %4667 = vdwg.mxu0
    %4668 = vmatpush.bf16.msra.mxu0 %v3865
    %4669 = vmatpush.bf16.msra.mxu0 %v3857
    %4670 = vmatpush.bf16.msra.mxu0 %v3849
    %4671 = vmatpush.bf16.msra.mxu0 %v3841
    %4672 = vmatpush.bf16.msra.mxu0 %v3833
    %4673 = vmatpush.bf16.msra.mxu0 %v3825
    %4674 = vmatpush.bf16.msra.mxu0 %v3817
    %4675 = vmatpush.bf16.msra.mxu0 %v3809
    %4676 = vmatmul.bf16.gmra.mxu0 %v4160
    %v4677 = vpop.f32.mrf.mxu0
    %v4678 = vadd.f32 %v4589, %v4677
    %v4679 = vpop.f32.mrf.mxu0
    %v4680 = vadd.f32 %v4591, %v4679
    %4681 = vmatmul.bf16.gmra.mxu0 %v4162
    %v4682 = vpop.f32.mrf.mxu0
    %v4683 = vadd.f32 %v4594, %v4682
    %v4684 = vpop.f32.mrf.mxu0
    %v4685 = vadd.f32 %v4596, %v4684
    %4686 = vmatmul.bf16.gmra.mxu0 %v4164
    %v4687 = vpop.f32.mrf.mxu0
    %v4688 = vadd.f32 %v4599, %v4687
    %v4689 = vpop.f32.mrf.mxu0
    %v4690 = vadd.f32 %v4601, %v4689
    %4691 = vmatmul.bf16.gmra.mxu0 %v4166
    %v4692 = vpop.f32.mrf.mxu0
    %v4693 = vadd.f32 %v4604, %v4692
    %v4694 = vpop.f32.mrf.mxu0
    %v4695 = vadd.f32 %v4606, %v4694
    %4696 = vmatmul.bf16.gmra.mxu0 %v4168
    %v4697 = vpop.f32.mrf.mxu0
    %v4698 = vadd.f32 %v4609, %v4697
    %v4699 = vpop.f32.mrf.mxu0
    %v4700 = vadd.f32 %v4611, %v4699
    %4701 = vmatmul.bf16.gmra.mxu0 %v4170
    %v4702 = vpop.f32.mrf.mxu0
    %v4703 = vadd.f32 %v4614, %v4702
    %v4704 = vpop.f32.mrf.mxu0
    %v4705 = vadd.f32 %v4616, %v4704
    %4706 = vmatmul.bf16.gmra.mxu0 %v4172
    %v4707 = vpop.f32.mrf.mxu0
    %v4708 = vadd.f32 %v4619, %v4707
    %v4709 = vpop.f32.mrf.mxu0
    %v4710 = vadd.f32 %v4621, %v4709
    %4711 = vmatmul.bf16.gmra.mxu0 %v4174
    %v4712 = vpop.f32.mrf.mxu0
    %v4713 = vadd.f32 %v4624, %v4712
    %v4714 = vpop.f32.mrf.mxu0
    %v4715 = vadd.f32 %v4626, %v4714
    %4716 = vmatmul.bf16.gmra.mxu0 %v4176
    %v4717 = vpop.f32.mrf.mxu0
    %v4718 = vadd.f32 %v4629, %v4717
    %v4719 = vpop.f32.mrf.mxu0
    %v4720 = vadd.f32 %v4631, %v4719
    %4721 = vmatmul.bf16.gmra.mxu0 %v4178
    %v4722 = vpop.f32.mrf.mxu0
    %v4723 = vadd.f32 %v4634, %v4722
    %v4724 = vpop.f32.mrf.mxu0
    %v4725 = vadd.f32 %v4636, %v4724
    %4726 = vmatmul.bf16.gmra.mxu0 %v4180
    %v4727 = vpop.f32.mrf.mxu0
    %v4728 = vadd.f32 %v4639, %v4727
    %v4729 = vpop.f32.mrf.mxu0
    %v4730 = vadd.f32 %v4641, %v4729
    %4731 = vmatmul.bf16.gmra.mxu0 %v4182
    %v4732 = vpop.f32.mrf.mxu0
    %v4733 = vadd.f32 %v4644, %v4732
    %v4734 = vpop.f32.mrf.mxu0
    %v4735 = vadd.f32 %v4646, %v4734
    %4736 = vmatmul.bf16.gmra.mxu0 %v4184
    %v4737 = vpop.f32.mrf.mxu0
    %v4738 = vadd.f32 %v4649, %v4737
    %v4739 = vpop.f32.mrf.mxu0
    %v4740 = vadd.f32 %v4651, %v4739
    %4741 = vmatmul.bf16.gmra.mxu0 %v4186
    %v4742 = vpop.f32.mrf.mxu0
    %v4743 = vadd.f32 %v4654, %v4742
    %v4744 = vpop.f32.mrf.mxu0
    %v4745 = vadd.f32 %v4656, %v4744
    %4746 = vmatmul.bf16.gmra.mxu0 %v4188
    %v4747 = vpop.f32.mrf.mxu0
    %v4748 = vadd.f32 %v4659, %v4747
    %v4749 = vpop.f32.mrf.mxu0
    %v4750 = vadd.f32 %v4661, %v4749
    %4751 = vmatmul.bf16.gmra.mxu0 %v4190
    %v4752 = vpop.f32.mrf.mxu0
    %v4753 = vadd.f32 %v4664, %v4752
    %v4754 = vpop.f32.mrf.mxu0
    %v4755 = vadd.f32 %v4666, %v4754
    %4756 = vdwg.mxu0
    %4757 = vmatpush.bf16.msra.mxu0 %v3802
    %4758 = vmatpush.bf16.msra.mxu0 %v3794
    %4759 = vmatpush.bf16.msra.mxu0 %v3786
    %4760 = vmatpush.bf16.msra.mxu0 %v3778
    %4761 = vmatpush.bf16.msra.mxu0 %v3770
    %4762 = vmatpush.bf16.msra.mxu0 %v3762
    %4763 = vmatpush.bf16.msra.mxu0 %v3754
    %4764 = vmatpush.bf16.msra.mxu0 %v3746
    %4765 = vmatmul.bf16.gmra.mxu0 %v4159
    %v4766 = vpop.f32.mrf.mxu0
    %v4767 = vadd.f32 %v3906, %v4766
    %v4768 = vpop.f32.mrf.mxu0
    %v4769 = vadd.f32 %v3911, %v4768
    %4770 = vmatmul.bf16.gmra.mxu0 %v4161
    %v4771 = vpop.f32.mrf.mxu0
    %v4772 = vadd.f32 %v3916, %v4771
    %v4773 = vpop.f32.mrf.mxu0
    %v4774 = vadd.f32 %v3921, %v4773
    %4775 = vmatmul.bf16.gmra.mxu0 %v4163
    %v4776 = vpop.f32.mrf.mxu0
    %v4777 = vadd.f32 %v3926, %v4776
    %v4778 = vpop.f32.mrf.mxu0
    %v4779 = vadd.f32 %v3931, %v4778
    %4780 = vmatmul.bf16.gmra.mxu0 %v4165
    %v4781 = vpop.f32.mrf.mxu0
    %v4782 = vadd.f32 %v3936, %v4781
    %v4783 = vpop.f32.mrf.mxu0
    %v4784 = vadd.f32 %v3941, %v4783
    %4785 = vmatmul.bf16.gmra.mxu0 %v4167
    %v4786 = vpop.f32.mrf.mxu0
    %v4787 = vadd.f32 %v3946, %v4786
    %v4788 = vpop.f32.mrf.mxu0
    %v4789 = vadd.f32 %v3951, %v4788
    %4790 = vmatmul.bf16.gmra.mxu0 %v4169
    %v4791 = vpop.f32.mrf.mxu0
    %v4792 = vadd.f32 %v3956, %v4791
    %v4793 = vpop.f32.mrf.mxu0
    %v4794 = vadd.f32 %v3961, %v4793
    %4795 = vmatmul.bf16.gmra.mxu0 %v4171
    %v4796 = vpop.f32.mrf.mxu0
    %v4797 = vadd.f32 %v3966, %v4796
    %v4798 = vpop.f32.mrf.mxu0
    %v4799 = vadd.f32 %v3971, %v4798
    %4800 = vmatmul.bf16.gmra.mxu0 %v4173
    %v4801 = vpop.f32.mrf.mxu0
    %v4802 = vadd.f32 %v3976, %v4801
    %v4803 = vpop.f32.mrf.mxu0
    %v4804 = vadd.f32 %v3981, %v4803
    %4805 = vmatmul.bf16.gmra.mxu0 %v4175
    %v4806 = vpop.f32.mrf.mxu0
    %v4807 = vadd.f32 %v3986, %v4806
    %v4808 = vpop.f32.mrf.mxu0
    %v4809 = vadd.f32 %v3991, %v4808
    %4810 = vmatmul.bf16.gmra.mxu0 %v4177
    %v4811 = vpop.f32.mrf.mxu0
    %v4812 = vadd.f32 %v3996, %v4811
    %v4813 = vpop.f32.mrf.mxu0
    %v4814 = vadd.f32 %v4001, %v4813
    %4815 = vmatmul.bf16.gmra.mxu0 %v4179
    %v4816 = vpop.f32.mrf.mxu0
    %v4817 = vadd.f32 %v4006, %v4816
    %v4818 = vpop.f32.mrf.mxu0
    %v4819 = vadd.f32 %v4011, %v4818
    %4820 = vmatmul.bf16.gmra.mxu0 %v4181
    %v4821 = vpop.f32.mrf.mxu0
    %v4822 = vadd.f32 %v4016, %v4821
    %v4823 = vpop.f32.mrf.mxu0
    %v4824 = vadd.f32 %v4021, %v4823
    %4825 = vmatmul.bf16.gmra.mxu0 %v4183
    %v4826 = vpop.f32.mrf.mxu0
    %v4827 = vadd.f32 %v4026, %v4826
    %v4828 = vpop.f32.mrf.mxu0
    %v4829 = vadd.f32 %v4031, %v4828
    %4830 = vmatmul.bf16.gmra.mxu0 %v4185
    %v4831 = vpop.f32.mrf.mxu0
    %v4832 = vadd.f32 %v4036, %v4831
    %v4833 = vpop.f32.mrf.mxu0
    %v4834 = vadd.f32 %v4041, %v4833
    %4835 = vmatmul.bf16.gmra.mxu0 %v4187
    %v4836 = vpop.f32.mrf.mxu0
    %v4837 = vadd.f32 %v4046, %v4836
    %v4838 = vpop.f32.mrf.mxu0
    %v4839 = vadd.f32 %v4051, %v4838
    %4840 = vmatmul.bf16.gmra.mxu0 %v4189
    %v4841 = vpop.f32.mrf.mxu0
    %v4842 = vadd.f32 %v4056, %v4841
    %v4843 = vpop.f32.mrf.mxu0
    %v4844 = vadd.f32 %v4061, %v4843
    %4845 = vdwg.mxu0
    %4846 = vmatpush.bf16.msra.mxu0 %v3866
    %4847 = vmatpush.bf16.msra.mxu0 %v3858
    %4848 = vmatpush.bf16.msra.mxu0 %v3850
    %4849 = vmatpush.bf16.msra.mxu0 %v3842
    %4850 = vmatpush.bf16.msra.mxu0 %v3834
    %4851 = vmatpush.bf16.msra.mxu0 %v3826
    %4852 = vmatpush.bf16.msra.mxu0 %v3818
    %4853 = vmatpush.bf16.msra.mxu0 %v3810
    %4854 = vmatmul.bf16.gmra.mxu0 %v4160
    %v4855 = vpop.f32.mrf.mxu0
    %v4856 = vadd.f32 %v4767, %v4855
    %v4857 = vpop.f32.mrf.mxu0
    %v4858 = vadd.f32 %v4769, %v4857
    %4859 = vmatmul.bf16.gmra.mxu0 %v4162
    %v4860 = vpop.f32.mrf.mxu0
    %v4861 = vadd.f32 %v4772, %v4860
    %v4862 = vpop.f32.mrf.mxu0
    %v4863 = vadd.f32 %v4774, %v4862
    %4864 = vmatmul.bf16.gmra.mxu0 %v4164
    %v4865 = vpop.f32.mrf.mxu0
    %v4866 = vadd.f32 %v4777, %v4865
    %v4867 = vpop.f32.mrf.mxu0
    %v4868 = vadd.f32 %v4779, %v4867
    %4869 = vmatmul.bf16.gmra.mxu0 %v4166
    %v4870 = vpop.f32.mrf.mxu0
    %v4871 = vadd.f32 %v4782, %v4870
    %v4872 = vpop.f32.mrf.mxu0
    %v4873 = vadd.f32 %v4784, %v4872
    %4874 = vmatmul.bf16.gmra.mxu0 %v4168
    %v4875 = vpop.f32.mrf.mxu0
    %v4876 = vadd.f32 %v4787, %v4875
    %v4877 = vpop.f32.mrf.mxu0
    %v4878 = vadd.f32 %v4789, %v4877
    %4879 = vmatmul.bf16.gmra.mxu0 %v4170
    %v4880 = vpop.f32.mrf.mxu0
    %v4881 = vadd.f32 %v4792, %v4880
    %v4882 = vpop.f32.mrf.mxu0
    %v4883 = vadd.f32 %v4794, %v4882
    %4884 = vmatmul.bf16.gmra.mxu0 %v4172
    %v4885 = vpop.f32.mrf.mxu0
    %v4886 = vadd.f32 %v4797, %v4885
    %v4887 = vpop.f32.mrf.mxu0
    %v4888 = vadd.f32 %v4799, %v4887
    %4889 = vmatmul.bf16.gmra.mxu0 %v4174
    %v4890 = vpop.f32.mrf.mxu0
    %v4891 = vadd.f32 %v4802, %v4890
    %v4892 = vpop.f32.mrf.mxu0
    %v4893 = vadd.f32 %v4804, %v4892
    %4894 = vmatmul.bf16.gmra.mxu0 %v4176
    %v4895 = vpop.f32.mrf.mxu0
    %v4896 = vadd.f32 %v4807, %v4895
    %v4897 = vpop.f32.mrf.mxu0
    %v4898 = vadd.f32 %v4809, %v4897
    %4899 = vmatmul.bf16.gmra.mxu0 %v4178
    %v4900 = vpop.f32.mrf.mxu0
    %v4901 = vadd.f32 %v4812, %v4900
    %v4902 = vpop.f32.mrf.mxu0
    %v4903 = vadd.f32 %v4814, %v4902
    %4904 = vmatmul.bf16.gmra.mxu0 %v4180
    %v4905 = vpop.f32.mrf.mxu0
    %v4906 = vadd.f32 %v4817, %v4905
    %v4907 = vpop.f32.mrf.mxu0
    %v4908 = vadd.f32 %v4819, %v4907
    %4909 = vmatmul.bf16.gmra.mxu0 %v4182
    %v4910 = vpop.f32.mrf.mxu0
    %v4911 = vadd.f32 %v4822, %v4910
    %v4912 = vpop.f32.mrf.mxu0
    %v4913 = vadd.f32 %v4824, %v4912
    %4914 = vmatmul.bf16.gmra.mxu0 %v4184
    %v4915 = vpop.f32.mrf.mxu0
    %v4916 = vadd.f32 %v4827, %v4915
    %v4917 = vpop.f32.mrf.mxu0
    %v4918 = vadd.f32 %v4829, %v4917
    %4919 = vmatmul.bf16.gmra.mxu0 %v4186
    %v4920 = vpop.f32.mrf.mxu0
    %v4921 = vadd.f32 %v4832, %v4920
    %v4922 = vpop.f32.mrf.mxu0
    %v4923 = vadd.f32 %v4834, %v4922
    %4924 = vmatmul.bf16.gmra.mxu0 %v4188
    %v4925 = vpop.f32.mrf.mxu0
    %v4926 = vadd.f32 %v4837, %v4925
    %v4927 = vpop.f32.mrf.mxu0
    %v4928 = vadd.f32 %v4839, %v4927
    %4929 = vmatmul.bf16.gmra.mxu0 %v4190
    %v4930 = vpop.f32.mrf.mxu0
    %v4931 = vadd.f32 %v4842, %v4930
    %v4932 = vpop.f32.mrf.mxu0
    %v4933 = vadd.f32 %v4844, %v4932
    %4934 = vdwg.mxu0
    %4935 = vmatpush.bf16.msra.mxu0 %v3803
    %4936 = vmatpush.bf16.msra.mxu0 %v3795
    %4937 = vmatpush.bf16.msra.mxu0 %v3787
    %4938 = vmatpush.bf16.msra.mxu0 %v3779
    %4939 = vmatpush.bf16.msra.mxu0 %v3771
    %4940 = vmatpush.bf16.msra.mxu0 %v3763
    %4941 = vmatpush.bf16.msra.mxu0 %v3755
    %4942 = vmatpush.bf16.msra.mxu0 %v3747
    %4943 = vmatmul.bf16.gmra.mxu0 %v4159
    %v4944 = vpop.f32.mrf.mxu0
    %v4945 = vadd.f32 %v3906, %v4944
    %v4946 = vpop.f32.mrf.mxu0
    %v4947 = vadd.f32 %v3911, %v4946
    %4948 = vmatmul.bf16.gmra.mxu0 %v4161
    %v4949 = vpop.f32.mrf.mxu0
    %v4950 = vadd.f32 %v3916, %v4949
    %v4951 = vpop.f32.mrf.mxu0
    %v4952 = vadd.f32 %v3921, %v4951
    %4953 = vmatmul.bf16.gmra.mxu0 %v4163
    %v4954 = vpop.f32.mrf.mxu0
    %v4955 = vadd.f32 %v3926, %v4954
    %v4956 = vpop.f32.mrf.mxu0
    %v4957 = vadd.f32 %v3931, %v4956
    %4958 = vmatmul.bf16.gmra.mxu0 %v4165
    %v4959 = vpop.f32.mrf.mxu0
    %v4960 = vadd.f32 %v3936, %v4959
    %v4961 = vpop.f32.mrf.mxu0
    %v4962 = vadd.f32 %v3941, %v4961
    %4963 = vmatmul.bf16.gmra.mxu0 %v4167
    %v4964 = vpop.f32.mrf.mxu0
    %v4965 = vadd.f32 %v3946, %v4964
    %v4966 = vpop.f32.mrf.mxu0
    %v4967 = vadd.f32 %v3951, %v4966
    %4968 = vmatmul.bf16.gmra.mxu0 %v4169
    %v4969 = vpop.f32.mrf.mxu0
    %v4970 = vadd.f32 %v3956, %v4969
    %v4971 = vpop.f32.mrf.mxu0
    %v4972 = vadd.f32 %v3961, %v4971
    %4973 = vmatmul.bf16.gmra.mxu0 %v4171
    %v4974 = vpop.f32.mrf.mxu0
    %v4975 = vadd.f32 %v3966, %v4974
    %v4976 = vpop.f32.mrf.mxu0
    %v4977 = vadd.f32 %v3971, %v4976
    %4978 = vmatmul.bf16.gmra.mxu0 %v4173
    %v4979 = vpop.f32.mrf.mxu0
    %v4980 = vadd.f32 %v3976, %v4979
    %v4981 = vpop.f32.mrf.mxu0
    %v4982 = vadd.f32 %v3981, %v4981
    %4983 = vmatmul.bf16.gmra.mxu0 %v4175
    %v4984 = vpop.f32.mrf.mxu0
    %v4985 = vadd.f32 %v3986, %v4984
    %v4986 = vpop.f32.mrf.mxu0
    %v4987 = vadd.f32 %v3991, %v4986
    %4988 = vmatmul.bf16.gmra.mxu0 %v4177
    %v4989 = vpop.f32.mrf.mxu0
    %v4990 = vadd.f32 %v3996, %v4989
    %v4991 = vpop.f32.mrf.mxu0
    %v4992 = vadd.f32 %v4001, %v4991
    %4993 = vmatmul.bf16.gmra.mxu0 %v4179
    %v4994 = vpop.f32.mrf.mxu0
    %v4995 = vadd.f32 %v4006, %v4994
    %v4996 = vpop.f32.mrf.mxu0
    %v4997 = vadd.f32 %v4011, %v4996
    %4998 = vmatmul.bf16.gmra.mxu0 %v4181
    %v4999 = vpop.f32.mrf.mxu0
    %v5000 = vadd.f32 %v4016, %v4999
    %v5001 = vpop.f32.mrf.mxu0
    %v5002 = vadd.f32 %v4021, %v5001
    %5003 = vmatmul.bf16.gmra.mxu0 %v4183
    %v5004 = vpop.f32.mrf.mxu0
    %v5005 = vadd.f32 %v4026, %v5004
    %v5006 = vpop.f32.mrf.mxu0
    %v5007 = vadd.f32 %v4031, %v5006
    %5008 = vmatmul.bf16.gmra.mxu0 %v4185
    %v5009 = vpop.f32.mrf.mxu0
    %v5010 = vadd.f32 %v4036, %v5009
    %v5011 = vpop.f32.mrf.mxu0
    %v5012 = vadd.f32 %v4041, %v5011
    %5013 = vmatmul.bf16.gmra.mxu0 %v4187
    %v5014 = vpop.f32.mrf.mxu0
    %v5015 = vadd.f32 %v4046, %v5014
    %v5016 = vpop.f32.mrf.mxu0
    %v5017 = vadd.f32 %v4051, %v5016
    %5018 = vmatmul.bf16.gmra.mxu0 %v4189
    %v5019 = vpop.f32.mrf.mxu0
    %v5020 = vadd.f32 %v4056, %v5019
    %v5021 = vpop.f32.mrf.mxu0
    %v5022 = vadd.f32 %v4061, %v5021
    %5023 = vdwg.mxu0
    %5024 = vmatpush.bf16.msra.mxu0 %v3867
    %5025 = vmatpush.bf16.msra.mxu0 %v3859
    %5026 = vmatpush.bf16.msra.mxu0 %v3851
    %5027 = vmatpush.bf16.msra.mxu0 %v3843
    %5028 = vmatpush.bf16.msra.mxu0 %v3835
    %5029 = vmatpush.bf16.msra.mxu0 %v3827
    %5030 = vmatpush.bf16.msra.mxu0 %v3819
    %5031 = vmatpush.bf16.msra.mxu0 %v3811
    %5032 = vmatmul.bf16.gmra.mxu0 %v4160
    %v5033 = vpop.f32.mrf.mxu0
    %v5034 = vadd.f32 %v4945, %v5033
    %v5035 = vpop.f32.mrf.mxu0
    %v5036 = vadd.f32 %v4947, %v5035
    %5037 = vmatmul.bf16.gmra.mxu0 %v4162
    %v5038 = vpop.f32.mrf.mxu0
    %v5039 = vadd.f32 %v4950, %v5038
    %v5040 = vpop.f32.mrf.mxu0
    %v5041 = vadd.f32 %v4952, %v5040
    %5042 = vmatmul.bf16.gmra.mxu0 %v4164
    %v5043 = vpop.f32.mrf.mxu0
    %v5044 = vadd.f32 %v4955, %v5043
    %v5045 = vpop.f32.mrf.mxu0
    %v5046 = vadd.f32 %v4957, %v5045
    %5047 = vmatmul.bf16.gmra.mxu0 %v4166
    %v5048 = vpop.f32.mrf.mxu0
    %v5049 = vadd.f32 %v4960, %v5048
    %v5050 = vpop.f32.mrf.mxu0
    %v5051 = vadd.f32 %v4962, %v5050
    %5052 = vmatmul.bf16.gmra.mxu0 %v4168
    %v5053 = vpop.f32.mrf.mxu0
    %v5054 = vadd.f32 %v4965, %v5053
    %v5055 = vpop.f32.mrf.mxu0
    %v5056 = vadd.f32 %v4967, %v5055
    %5057 = vmatmul.bf16.gmra.mxu0 %v4170
    %v5058 = vpop.f32.mrf.mxu0
    %v5059 = vadd.f32 %v4970, %v5058
    %v5060 = vpop.f32.mrf.mxu0
    %v5061 = vadd.f32 %v4972, %v5060
    %5062 = vmatmul.bf16.gmra.mxu0 %v4172
    %v5063 = vpop.f32.mrf.mxu0
    %v5064 = vadd.f32 %v4975, %v5063
    %v5065 = vpop.f32.mrf.mxu0
    %v5066 = vadd.f32 %v4977, %v5065
    %5067 = vmatmul.bf16.gmra.mxu0 %v4174
    %v5068 = vpop.f32.mrf.mxu0
    %v5069 = vadd.f32 %v4980, %v5068
    %v5070 = vpop.f32.mrf.mxu0
    %v5071 = vadd.f32 %v4982, %v5070
    %5072 = vmatmul.bf16.gmra.mxu0 %v4176
    %v5073 = vpop.f32.mrf.mxu0
    %v5074 = vadd.f32 %v4985, %v5073
    %v5075 = vpop.f32.mrf.mxu0
    %v5076 = vadd.f32 %v4987, %v5075
    %5077 = vmatmul.bf16.gmra.mxu0 %v4178
    %v5078 = vpop.f32.mrf.mxu0
    %v5079 = vadd.f32 %v4990, %v5078
    %v5080 = vpop.f32.mrf.mxu0
    %v5081 = vadd.f32 %v4992, %v5080
    %5082 = vmatmul.bf16.gmra.mxu0 %v4180
    %v5083 = vpop.f32.mrf.mxu0
    %v5084 = vadd.f32 %v4995, %v5083
    %v5085 = vpop.f32.mrf.mxu0
    %v5086 = vadd.f32 %v4997, %v5085
    %5087 = vmatmul.bf16.gmra.mxu0 %v4182
    %v5088 = vpop.f32.mrf.mxu0
    %v5089 = vadd.f32 %v5000, %v5088
    %v5090 = vpop.f32.mrf.mxu0
    %v5091 = vadd.f32 %v5002, %v5090
    %5092 = vmatmul.bf16.gmra.mxu0 %v4184
    %v5093 = vpop.f32.mrf.mxu0
    %v5094 = vadd.f32 %v5005, %v5093
    %v5095 = vpop.f32.mrf.mxu0
    %v5096 = vadd.f32 %v5007, %v5095
    %5097 = vmatmul.bf16.gmra.mxu0 %v4186
    %v5098 = vpop.f32.mrf.mxu0
    %v5099 = vadd.f32 %v5010, %v5098
    %v5100 = vpop.f32.mrf.mxu0
    %v5101 = vadd.f32 %v5012, %v5100
    %5102 = vmatmul.bf16.gmra.mxu0 %v4188
    %v5103 = vpop.f32.mrf.mxu0
    %v5104 = vadd.f32 %v5015, %v5103
    %v5105 = vpop.f32.mrf.mxu0
    %v5106 = vadd.f32 %v5017, %v5105
    %5107 = vmatmul.bf16.gmra.mxu0 %v4190
    %v5108 = vpop.f32.mrf.mxu0
    %v5109 = vadd.f32 %v5020, %v5108
    %v5110 = vpop.f32.mrf.mxu0
    %v5111 = vadd.f32 %v5022, %v5110
    %5112 = vdwg.mxu0
    %5113 = vmatpush.bf16.msra.mxu0 %v3804
    %5114 = vmatpush.bf16.msra.mxu0 %v3796
    %5115 = vmatpush.bf16.msra.mxu0 %v3788
    %5116 = vmatpush.bf16.msra.mxu0 %v3780
    %5117 = vmatpush.bf16.msra.mxu0 %v3772
    %5118 = vmatpush.bf16.msra.mxu0 %v3764
    %5119 = vmatpush.bf16.msra.mxu0 %v3756
    %5120 = vmatpush.bf16.msra.mxu0 %v3748
    %5121 = vmatmul.bf16.gmra.mxu0 %v4159
    %v5122 = vpop.f32.mrf.mxu0
    %v5123 = vadd.f32 %v3906, %v5122
    %v5124 = vpop.f32.mrf.mxu0
    %v5125 = vadd.f32 %v3911, %v5124
    %5126 = vmatmul.bf16.gmra.mxu0 %v4161
    %v5127 = vpop.f32.mrf.mxu0
    %v5128 = vadd.f32 %v3916, %v5127
    %v5129 = vpop.f32.mrf.mxu0
    %v5130 = vadd.f32 %v3921, %v5129
    %5131 = vmatmul.bf16.gmra.mxu0 %v4163
    %v5132 = vpop.f32.mrf.mxu0
    %v5133 = vadd.f32 %v3926, %v5132
    %v5134 = vpop.f32.mrf.mxu0
    %v5135 = vadd.f32 %v3931, %v5134
    %5136 = vmatmul.bf16.gmra.mxu0 %v4165
    %v5137 = vpop.f32.mrf.mxu0
    %v5138 = vadd.f32 %v3936, %v5137
    %v5139 = vpop.f32.mrf.mxu0
    %v5140 = vadd.f32 %v3941, %v5139
    %5141 = vmatmul.bf16.gmra.mxu0 %v4167
    %v5142 = vpop.f32.mrf.mxu0
    %v5143 = vadd.f32 %v3946, %v5142
    %v5144 = vpop.f32.mrf.mxu0
    %v5145 = vadd.f32 %v3951, %v5144
    %5146 = vmatmul.bf16.gmra.mxu0 %v4169
    %v5147 = vpop.f32.mrf.mxu0
    %v5148 = vadd.f32 %v3956, %v5147
    %v5149 = vpop.f32.mrf.mxu0
    %v5150 = vadd.f32 %v3961, %v5149
    %5151 = vmatmul.bf16.gmra.mxu0 %v4171
    %v5152 = vpop.f32.mrf.mxu0
    %v5153 = vadd.f32 %v3966, %v5152
    %v5154 = vpop.f32.mrf.mxu0
    %v5155 = vadd.f32 %v3971, %v5154
    %5156 = vmatmul.bf16.gmra.mxu0 %v4173
    %v5157 = vpop.f32.mrf.mxu0
    %v5158 = vadd.f32 %v3976, %v5157
    %v5159 = vpop.f32.mrf.mxu0
    %v5160 = vadd.f32 %v3981, %v5159
    %5161 = vmatmul.bf16.gmra.mxu0 %v4175
    %v5162 = vpop.f32.mrf.mxu0
    %v5163 = vadd.f32 %v3986, %v5162
    %v5164 = vpop.f32.mrf.mxu0
    %v5165 = vadd.f32 %v3991, %v5164
    %5166 = vmatmul.bf16.gmra.mxu0 %v4177
    %v5167 = vpop.f32.mrf.mxu0
    %v5168 = vadd.f32 %v3996, %v5167
    %v5169 = vpop.f32.mrf.mxu0
    %v5170 = vadd.f32 %v4001, %v5169
    %5171 = vmatmul.bf16.gmra.mxu0 %v4179
    %v5172 = vpop.f32.mrf.mxu0
    %v5173 = vadd.f32 %v4006, %v5172
    %v5174 = vpop.f32.mrf.mxu0
    %v5175 = vadd.f32 %v4011, %v5174
    %5176 = vmatmul.bf16.gmra.mxu0 %v4181
    %v5177 = vpop.f32.mrf.mxu0
    %v5178 = vadd.f32 %v4016, %v5177
    %v5179 = vpop.f32.mrf.mxu0
    %v5180 = vadd.f32 %v4021, %v5179
    %5181 = vmatmul.bf16.gmra.mxu0 %v4183
    %v5182 = vpop.f32.mrf.mxu0
    %v5183 = vadd.f32 %v4026, %v5182
    %v5184 = vpop.f32.mrf.mxu0
    %v5185 = vadd.f32 %v4031, %v5184
    %5186 = vmatmul.bf16.gmra.mxu0 %v4185
    %v5187 = vpop.f32.mrf.mxu0
    %v5188 = vadd.f32 %v4036, %v5187
    %v5189 = vpop.f32.mrf.mxu0
    %v5190 = vadd.f32 %v4041, %v5189
    %5191 = vmatmul.bf16.gmra.mxu0 %v4187
    %v5192 = vpop.f32.mrf.mxu0
    %v5193 = vadd.f32 %v4046, %v5192
    %v5194 = vpop.f32.mrf.mxu0
    %v5195 = vadd.f32 %v4051, %v5194
    %5196 = vmatmul.bf16.gmra.mxu0 %v4189
    %v5197 = vpop.f32.mrf.mxu0
    %v5198 = vadd.f32 %v4056, %v5197
    %v5199 = vpop.f32.mrf.mxu0
    %v5200 = vadd.f32 %v4061, %v5199
    %5201 = vdwg.mxu0
    %5202 = vmatpush.bf16.msra.mxu0 %v3868
    %5203 = vmatpush.bf16.msra.mxu0 %v3860
    %5204 = vmatpush.bf16.msra.mxu0 %v3852
    %5205 = vmatpush.bf16.msra.mxu0 %v3844
    %5206 = vmatpush.bf16.msra.mxu0 %v3836
    %5207 = vmatpush.bf16.msra.mxu0 %v3828
    %5208 = vmatpush.bf16.msra.mxu0 %v3820
    %5209 = vmatpush.bf16.msra.mxu0 %v3812
    %5210 = vmatmul.bf16.gmra.mxu0 %v4160
    %v5211 = vpop.f32.mrf.mxu0
    %v5212 = vadd.f32 %v5123, %v5211
    %v5213 = vpop.f32.mrf.mxu0
    %v5214 = vadd.f32 %v5125, %v5213
    %5215 = vmatmul.bf16.gmra.mxu0 %v4162
    %v5216 = vpop.f32.mrf.mxu0
    %v5217 = vadd.f32 %v5128, %v5216
    %v5218 = vpop.f32.mrf.mxu0
    %v5219 = vadd.f32 %v5130, %v5218
    %5220 = vmatmul.bf16.gmra.mxu0 %v4164
    %v5221 = vpop.f32.mrf.mxu0
    %v5222 = vadd.f32 %v5133, %v5221
    %v5223 = vpop.f32.mrf.mxu0
    %v5224 = vadd.f32 %v5135, %v5223
    %5225 = vmatmul.bf16.gmra.mxu0 %v4166
    %v5226 = vpop.f32.mrf.mxu0
    %v5227 = vadd.f32 %v5138, %v5226
    %v5228 = vpop.f32.mrf.mxu0
    %v5229 = vadd.f32 %v5140, %v5228
    %5230 = vmatmul.bf16.gmra.mxu0 %v4168
    %v5231 = vpop.f32.mrf.mxu0
    %v5232 = vadd.f32 %v5143, %v5231
    %v5233 = vpop.f32.mrf.mxu0
    %v5234 = vadd.f32 %v5145, %v5233
    %5235 = vmatmul.bf16.gmra.mxu0 %v4170
    %v5236 = vpop.f32.mrf.mxu0
    %v5237 = vadd.f32 %v5148, %v5236
    %v5238 = vpop.f32.mrf.mxu0
    %v5239 = vadd.f32 %v5150, %v5238
    %5240 = vmatmul.bf16.gmra.mxu0 %v4172
    %v5241 = vpop.f32.mrf.mxu0
    %v5242 = vadd.f32 %v5153, %v5241
    %v5243 = vpop.f32.mrf.mxu0
    %v5244 = vadd.f32 %v5155, %v5243
    %5245 = vmatmul.bf16.gmra.mxu0 %v4174
    %v5246 = vpop.f32.mrf.mxu0
    %v5247 = vadd.f32 %v5158, %v5246
    %v5248 = vpop.f32.mrf.mxu0
    %v5249 = vadd.f32 %v5160, %v5248
    %5250 = vmatmul.bf16.gmra.mxu0 %v4176
    %v5251 = vpop.f32.mrf.mxu0
    %v5252 = vadd.f32 %v5163, %v5251
    %v5253 = vpop.f32.mrf.mxu0
    %v5254 = vadd.f32 %v5165, %v5253
    %5255 = vmatmul.bf16.gmra.mxu0 %v4178
    %v5256 = vpop.f32.mrf.mxu0
    %v5257 = vadd.f32 %v5168, %v5256
    %v5258 = vpop.f32.mrf.mxu0
    %v5259 = vadd.f32 %v5170, %v5258
    %5260 = vmatmul.bf16.gmra.mxu0 %v4180
    %v5261 = vpop.f32.mrf.mxu0
    %v5262 = vadd.f32 %v5173, %v5261
    %v5263 = vpop.f32.mrf.mxu0
    %v5264 = vadd.f32 %v5175, %v5263
    %5265 = vmatmul.bf16.gmra.mxu0 %v4182
    %v5266 = vpop.f32.mrf.mxu0
    %v5267 = vadd.f32 %v5178, %v5266
    %v5268 = vpop.f32.mrf.mxu0
    %v5269 = vadd.f32 %v5180, %v5268
    %5270 = vmatmul.bf16.gmra.mxu0 %v4184
    %v5271 = vpop.f32.mrf.mxu0
    %v5272 = vadd.f32 %v5183, %v5271
    %v5273 = vpop.f32.mrf.mxu0
    %v5274 = vadd.f32 %v5185, %v5273
    %5275 = vmatmul.bf16.gmra.mxu0 %v4186
    %v5276 = vpop.f32.mrf.mxu0
    %v5277 = vadd.f32 %v5188, %v5276
    %v5278 = vpop.f32.mrf.mxu0
    %v5279 = vadd.f32 %v5190, %v5278
    %5280 = vmatmul.bf16.gmra.mxu0 %v4188
    %v5281 = vpop.f32.mrf.mxu0
    %v5282 = vadd.f32 %v5193, %v5281
    %v5283 = vpop.f32.mrf.mxu0
    %v5284 = vadd.f32 %v5195, %v5283
    %5285 = vmatmul.bf16.gmra.mxu0 %v4190
    %v5286 = vpop.f32.mrf.mxu0
    %v5287 = vadd.f32 %v5198, %v5286
    %v5288 = vpop.f32.mrf.mxu0
    %v5289 = vadd.f32 %v5200, %v5288
    %5290 = vdwg.mxu0
    %5291 = vmatpush.bf16.msra.mxu0 %v3805
    %5292 = vmatpush.bf16.msra.mxu0 %v3797
    %5293 = vmatpush.bf16.msra.mxu0 %v3789
    %5294 = vmatpush.bf16.msra.mxu0 %v3781
    %5295 = vmatpush.bf16.msra.mxu0 %v3773
    %5296 = vmatpush.bf16.msra.mxu0 %v3765
    %5297 = vmatpush.bf16.msra.mxu0 %v3757
    %5298 = vmatpush.bf16.msra.mxu0 %v3749
    %5299 = vmatmul.bf16.gmra.mxu0 %v4159
    %v5300 = vpop.f32.mrf.mxu0
    %v5301 = vadd.f32 %v3906, %v5300
    %v5302 = vpop.f32.mrf.mxu0
    %v5303 = vadd.f32 %v3911, %v5302
    %5304 = vmatmul.bf16.gmra.mxu0 %v4161
    %v5305 = vpop.f32.mrf.mxu0
    %v5306 = vadd.f32 %v3916, %v5305
    %v5307 = vpop.f32.mrf.mxu0
    %v5308 = vadd.f32 %v3921, %v5307
    %5309 = vmatmul.bf16.gmra.mxu0 %v4163
    %v5310 = vpop.f32.mrf.mxu0
    %v5311 = vadd.f32 %v3926, %v5310
    %v5312 = vpop.f32.mrf.mxu0
    %v5313 = vadd.f32 %v3931, %v5312
    %5314 = vmatmul.bf16.gmra.mxu0 %v4165
    %v5315 = vpop.f32.mrf.mxu0
    %v5316 = vadd.f32 %v3936, %v5315
    %v5317 = vpop.f32.mrf.mxu0
    %v5318 = vadd.f32 %v3941, %v5317
    %5319 = vmatmul.bf16.gmra.mxu0 %v4167
    %v5320 = vpop.f32.mrf.mxu0
    %v5321 = vadd.f32 %v3946, %v5320
    %v5322 = vpop.f32.mrf.mxu0
    %v5323 = vadd.f32 %v3951, %v5322
    %5324 = vmatmul.bf16.gmra.mxu0 %v4169
    %v5325 = vpop.f32.mrf.mxu0
    %v5326 = vadd.f32 %v3956, %v5325
    %v5327 = vpop.f32.mrf.mxu0
    %v5328 = vadd.f32 %v3961, %v5327
    %5329 = vmatmul.bf16.gmra.mxu0 %v4171
    %v5330 = vpop.f32.mrf.mxu0
    %v5331 = vadd.f32 %v3966, %v5330
    %v5332 = vpop.f32.mrf.mxu0
    %v5333 = vadd.f32 %v3971, %v5332
    %5334 = vmatmul.bf16.gmra.mxu0 %v4173
    %v5335 = vpop.f32.mrf.mxu0
    %v5336 = vadd.f32 %v3976, %v5335
    %v5337 = vpop.f32.mrf.mxu0
    %v5338 = vadd.f32 %v3981, %v5337
    %5339 = vmatmul.bf16.gmra.mxu0 %v4175
    %v5340 = vpop.f32.mrf.mxu0
    %v5341 = vadd.f32 %v3986, %v5340
    %v5342 = vpop.f32.mrf.mxu0
    %v5343 = vadd.f32 %v3991, %v5342
    %5344 = vmatmul.bf16.gmra.mxu0 %v4177
    %v5345 = vpop.f32.mrf.mxu0
    %v5346 = vadd.f32 %v3996, %v5345
    %v5347 = vpop.f32.mrf.mxu0
    %v5348 = vadd.f32 %v4001, %v5347
    %5349 = vmatmul.bf16.gmra.mxu0 %v4179
    %v5350 = vpop.f32.mrf.mxu0
    %v5351 = vadd.f32 %v4006, %v5350
    %v5352 = vpop.f32.mrf.mxu0
    %v5353 = vadd.f32 %v4011, %v5352
    %5354 = vmatmul.bf16.gmra.mxu0 %v4181
    %v5355 = vpop.f32.mrf.mxu0
    %v5356 = vadd.f32 %v4016, %v5355
    %v5357 = vpop.f32.mrf.mxu0
    %v5358 = vadd.f32 %v4021, %v5357
    %5359 = vmatmul.bf16.gmra.mxu0 %v4183
    %v5360 = vpop.f32.mrf.mxu0
    %v5361 = vadd.f32 %v4026, %v5360
    %v5362 = vpop.f32.mrf.mxu0
    %v5363 = vadd.f32 %v4031, %v5362
    %5364 = vmatmul.bf16.gmra.mxu0 %v4185
    %v5365 = vpop.f32.mrf.mxu0
    %v5366 = vadd.f32 %v4036, %v5365
    %v5367 = vpop.f32.mrf.mxu0
    %v5368 = vadd.f32 %v4041, %v5367
    %5369 = vmatmul.bf16.gmra.mxu0 %v4187
    %v5370 = vpop.f32.mrf.mxu0
    %v5371 = vadd.f32 %v4046, %v5370
    %v5372 = vpop.f32.mrf.mxu0
    %v5373 = vadd.f32 %v4051, %v5372
    %5374 = vmatmul.bf16.gmra.mxu0 %v4189
    %v5375 = vpop.f32.mrf.mxu0
    %v5376 = vadd.f32 %v4056, %v5375
    %v5377 = vpop.f32.mrf.mxu0
    %v5378 = vadd.f32 %v4061, %v5377
    %5379 = vdwg.mxu0
    %5380 = vmatpush.bf16.msra.mxu0 %v3869
    %5381 = vmatpush.bf16.msra.mxu0 %v3861
    %5382 = vmatpush.bf16.msra.mxu0 %v3853
    %5383 = vmatpush.bf16.msra.mxu0 %v3845
    %5384 = vmatpush.bf16.msra.mxu0 %v3837
    %5385 = vmatpush.bf16.msra.mxu0 %v3829
    %5386 = vmatpush.bf16.msra.mxu0 %v3821
    %5387 = vmatpush.bf16.msra.mxu0 %v3813
    %5388 = vmatmul.bf16.gmra.mxu0 %v4160
    %v5389 = vpop.f32.mrf.mxu0
    %v5390 = vadd.f32 %v5301, %v5389
    %v5391 = vpop.f32.mrf.mxu0
    %v5392 = vadd.f32 %v5303, %v5391
    %5393 = vmatmul.bf16.gmra.mxu0 %v4162
    %v5394 = vpop.f32.mrf.mxu0
    %v5395 = vadd.f32 %v5306, %v5394
    %v5396 = vpop.f32.mrf.mxu0
    %v5397 = vadd.f32 %v5308, %v5396
    %5398 = vmatmul.bf16.gmra.mxu0 %v4164
    %v5399 = vpop.f32.mrf.mxu0
    %v5400 = vadd.f32 %v5311, %v5399
    %v5401 = vpop.f32.mrf.mxu0
    %v5402 = vadd.f32 %v5313, %v5401
    %5403 = vmatmul.bf16.gmra.mxu0 %v4166
    %v5404 = vpop.f32.mrf.mxu0
    %v5405 = vadd.f32 %v5316, %v5404
    %v5406 = vpop.f32.mrf.mxu0
    %v5407 = vadd.f32 %v5318, %v5406
    %5408 = vmatmul.bf16.gmra.mxu0 %v4168
    %v5409 = vpop.f32.mrf.mxu0
    %v5410 = vadd.f32 %v5321, %v5409
    %v5411 = vpop.f32.mrf.mxu0
    %v5412 = vadd.f32 %v5323, %v5411
    %5413 = vmatmul.bf16.gmra.mxu0 %v4170
    %v5414 = vpop.f32.mrf.mxu0
    %v5415 = vadd.f32 %v5326, %v5414
    %v5416 = vpop.f32.mrf.mxu0
    %v5417 = vadd.f32 %v5328, %v5416
    %5418 = vmatmul.bf16.gmra.mxu0 %v4172
    %v5419 = vpop.f32.mrf.mxu0
    %v5420 = vadd.f32 %v5331, %v5419
    %v5421 = vpop.f32.mrf.mxu0
    %v5422 = vadd.f32 %v5333, %v5421
    %5423 = vmatmul.bf16.gmra.mxu0 %v4174
    %v5424 = vpop.f32.mrf.mxu0
    %v5425 = vadd.f32 %v5336, %v5424
    %v5426 = vpop.f32.mrf.mxu0
    %v5427 = vadd.f32 %v5338, %v5426
    %5428 = vmatmul.bf16.gmra.mxu0 %v4176
    %v5429 = vpop.f32.mrf.mxu0
    %v5430 = vadd.f32 %v5341, %v5429
    %v5431 = vpop.f32.mrf.mxu0
    %v5432 = vadd.f32 %v5343, %v5431
    %5433 = vmatmul.bf16.gmra.mxu0 %v4178
    %v5434 = vpop.f32.mrf.mxu0
    %v5435 = vadd.f32 %v5346, %v5434
    %v5436 = vpop.f32.mrf.mxu0
    %v5437 = vadd.f32 %v5348, %v5436
    %5438 = vmatmul.bf16.gmra.mxu0 %v4180
    %v5439 = vpop.f32.mrf.mxu0
    %v5440 = vadd.f32 %v5351, %v5439
    %v5441 = vpop.f32.mrf.mxu0
    %v5442 = vadd.f32 %v5353, %v5441
    %5443 = vmatmul.bf16.gmra.mxu0 %v4182
    %v5444 = vpop.f32.mrf.mxu0
    %v5445 = vadd.f32 %v5356, %v5444
    %v5446 = vpop.f32.mrf.mxu0
    %v5447 = vadd.f32 %v5358, %v5446
    %5448 = vmatmul.bf16.gmra.mxu0 %v4184
    %v5449 = vpop.f32.mrf.mxu0
    %v5450 = vadd.f32 %v5361, %v5449
    %v5451 = vpop.f32.mrf.mxu0
    %v5452 = vadd.f32 %v5363, %v5451
    %5453 = vmatmul.bf16.gmra.mxu0 %v4186
    %v5454 = vpop.f32.mrf.mxu0
    %v5455 = vadd.f32 %v5366, %v5454
    %v5456 = vpop.f32.mrf.mxu0
    %v5457 = vadd.f32 %v5368, %v5456
    %5458 = vmatmul.bf16.gmra.mxu0 %v4188
    %v5459 = vpop.f32.mrf.mxu0
    %v5460 = vadd.f32 %v5371, %v5459
    %v5461 = vpop.f32.mrf.mxu0
    %v5462 = vadd.f32 %v5373, %v5461
    %5463 = vmatmul.bf16.gmra.mxu0 %v4190
    %v5464 = vpop.f32.mrf.mxu0
    %v5465 = vadd.f32 %v5376, %v5464
    %v5466 = vpop.f32.mrf.mxu0
    %v5467 = vadd.f32 %v5378, %v5466
    %5468 = vdwg.mxu0
    %5469 = vmatpush.bf16.msra.mxu0 %v3806
    %5470 = vmatpush.bf16.msra.mxu0 %v3798
    %5471 = vmatpush.bf16.msra.mxu0 %v3790
    %5472 = vmatpush.bf16.msra.mxu0 %v3782
    %5473 = vmatpush.bf16.msra.mxu0 %v3774
    %5474 = vmatpush.bf16.msra.mxu0 %v3766
    %5475 = vmatpush.bf16.msra.mxu0 %v3758
    %5476 = vmatpush.bf16.msra.mxu0 %v3750
    %5477 = vmatmul.bf16.gmra.mxu0 %v4159
    %v5478 = vpop.f32.mrf.mxu0
    %v5479 = vadd.f32 %v3906, %v5478
    %v5480 = vpop.f32.mrf.mxu0
    %v5481 = vadd.f32 %v3911, %v5480
    %5482 = vmatmul.bf16.gmra.mxu0 %v4161
    %v5483 = vpop.f32.mrf.mxu0
    %v5484 = vadd.f32 %v3916, %v5483
    %v5485 = vpop.f32.mrf.mxu0
    %v5486 = vadd.f32 %v3921, %v5485
    %5487 = vmatmul.bf16.gmra.mxu0 %v4163
    %v5488 = vpop.f32.mrf.mxu0
    %v5489 = vadd.f32 %v3926, %v5488
    %v5490 = vpop.f32.mrf.mxu0
    %v5491 = vadd.f32 %v3931, %v5490
    %5492 = vmatmul.bf16.gmra.mxu0 %v4165
    %v5493 = vpop.f32.mrf.mxu0
    %v5494 = vadd.f32 %v3936, %v5493
    %v5495 = vpop.f32.mrf.mxu0
    %v5496 = vadd.f32 %v3941, %v5495
    %5497 = vmatmul.bf16.gmra.mxu0 %v4167
    %v5498 = vpop.f32.mrf.mxu0
    %v5499 = vadd.f32 %v3946, %v5498
    %v5500 = vpop.f32.mrf.mxu0
    %v5501 = vadd.f32 %v3951, %v5500
    %5502 = vmatmul.bf16.gmra.mxu0 %v4169
    %v5503 = vpop.f32.mrf.mxu0
    %v5504 = vadd.f32 %v3956, %v5503
    %v5505 = vpop.f32.mrf.mxu0
    %v5506 = vadd.f32 %v3961, %v5505
    %5507 = vmatmul.bf16.gmra.mxu0 %v4171
    %v5508 = vpop.f32.mrf.mxu0
    %v5509 = vadd.f32 %v3966, %v5508
    %v5510 = vpop.f32.mrf.mxu0
    %v5511 = vadd.f32 %v3971, %v5510
    %5512 = vmatmul.bf16.gmra.mxu0 %v4173
    %v5513 = vpop.f32.mrf.mxu0
    %v5514 = vadd.f32 %v3976, %v5513
    %v5515 = vpop.f32.mrf.mxu0
    %v5516 = vadd.f32 %v3981, %v5515
    %5517 = vmatmul.bf16.gmra.mxu0 %v4175
    %v5518 = vpop.f32.mrf.mxu0
    %v5519 = vadd.f32 %v3986, %v5518
    %v5520 = vpop.f32.mrf.mxu0
    %v5521 = vadd.f32 %v3991, %v5520
    %5522 = vmatmul.bf16.gmra.mxu0 %v4177
    %v5523 = vpop.f32.mrf.mxu0
    %v5524 = vadd.f32 %v3996, %v5523
    %v5525 = vpop.f32.mrf.mxu0
    %v5526 = vadd.f32 %v4001, %v5525
    %5527 = vmatmul.bf16.gmra.mxu0 %v4179
    %v5528 = vpop.f32.mrf.mxu0
    %v5529 = vadd.f32 %v4006, %v5528
    %v5530 = vpop.f32.mrf.mxu0
    %v5531 = vadd.f32 %v4011, %v5530
    %5532 = vmatmul.bf16.gmra.mxu0 %v4181
    %v5533 = vpop.f32.mrf.mxu0
    %v5534 = vadd.f32 %v4016, %v5533
    %v5535 = vpop.f32.mrf.mxu0
    %v5536 = vadd.f32 %v4021, %v5535
    %5537 = vmatmul.bf16.gmra.mxu0 %v4183
    %v5538 = vpop.f32.mrf.mxu0
    %v5539 = vadd.f32 %v4026, %v5538
    %v5540 = vpop.f32.mrf.mxu0
    %v5541 = vadd.f32 %v4031, %v5540
    %5542 = vmatmul.bf16.gmra.mxu0 %v4185
    %v5543 = vpop.f32.mrf.mxu0
    %v5544 = vadd.f32 %v4036, %v5543
    %v5545 = vpop.f32.mrf.mxu0
    %v5546 = vadd.f32 %v4041, %v5545
    %5547 = vmatmul.bf16.gmra.mxu0 %v4187
    %v5548 = vpop.f32.mrf.mxu0
    %v5549 = vadd.f32 %v4046, %v5548
    %v5550 = vpop.f32.mrf.mxu0
    %v5551 = vadd.f32 %v4051, %v5550
    %5552 = vmatmul.bf16.gmra.mxu0 %v4189
    %v5553 = vpop.f32.mrf.mxu0
    %v5554 = vadd.f32 %v4056, %v5553
    %v5555 = vpop.f32.mrf.mxu0
    %v5556 = vadd.f32 %v4061, %v5555
    %5557 = vdwg.mxu0
    %5558 = vmatpush.bf16.msra.mxu0 %v3870
    %5559 = vmatpush.bf16.msra.mxu0 %v3862
    %5560 = vmatpush.bf16.msra.mxu0 %v3854
    %5561 = vmatpush.bf16.msra.mxu0 %v3846
    %5562 = vmatpush.bf16.msra.mxu0 %v3838
    %5563 = vmatpush.bf16.msra.mxu0 %v3830
    %5564 = vmatpush.bf16.msra.mxu0 %v3822
    %5565 = vmatpush.bf16.msra.mxu0 %v3814
    %5566 = vmatmul.bf16.gmra.mxu0 %v4160
    %v5567 = vpop.f32.mrf.mxu0
    %v5568 = vadd.f32 %v5479, %v5567
    %v5569 = vpop.f32.mrf.mxu0
    %v5570 = vadd.f32 %v5481, %v5569
    %5571 = vmatmul.bf16.gmra.mxu0 %v4162
    %v5572 = vpop.f32.mrf.mxu0
    %v5573 = vadd.f32 %v5484, %v5572
    %v5574 = vpop.f32.mrf.mxu0
    %v5575 = vadd.f32 %v5486, %v5574
    %5576 = vmatmul.bf16.gmra.mxu0 %v4164
    %v5577 = vpop.f32.mrf.mxu0
    %v5578 = vadd.f32 %v5489, %v5577
    %v5579 = vpop.f32.mrf.mxu0
    %v5580 = vadd.f32 %v5491, %v5579
    %5581 = vmatmul.bf16.gmra.mxu0 %v4166
    %v5582 = vpop.f32.mrf.mxu0
    %v5583 = vadd.f32 %v5494, %v5582
    %v5584 = vpop.f32.mrf.mxu0
    %v5585 = vadd.f32 %v5496, %v5584
    %5586 = vmatmul.bf16.gmra.mxu0 %v4168
    %v5587 = vpop.f32.mrf.mxu0
    %v5588 = vadd.f32 %v5499, %v5587
    %v5589 = vpop.f32.mrf.mxu0
    %v5590 = vadd.f32 %v5501, %v5589
    %5591 = vmatmul.bf16.gmra.mxu0 %v4170
    %v5592 = vpop.f32.mrf.mxu0
    %v5593 = vadd.f32 %v5504, %v5592
    %v5594 = vpop.f32.mrf.mxu0
    %v5595 = vadd.f32 %v5506, %v5594
    %5596 = vmatmul.bf16.gmra.mxu0 %v4172
    %v5597 = vpop.f32.mrf.mxu0
    %v5598 = vadd.f32 %v5509, %v5597
    %v5599 = vpop.f32.mrf.mxu0
    %v5600 = vadd.f32 %v5511, %v5599
    %5601 = vmatmul.bf16.gmra.mxu0 %v4174
    %v5602 = vpop.f32.mrf.mxu0
    %v5603 = vadd.f32 %v5514, %v5602
    %v5604 = vpop.f32.mrf.mxu0
    %v5605 = vadd.f32 %v5516, %v5604
    %5606 = vmatmul.bf16.gmra.mxu0 %v4176
    %v5607 = vpop.f32.mrf.mxu0
    %v5608 = vadd.f32 %v5519, %v5607
    %v5609 = vpop.f32.mrf.mxu0
    %v5610 = vadd.f32 %v5521, %v5609
    %5611 = vmatmul.bf16.gmra.mxu0 %v4178
    %v5612 = vpop.f32.mrf.mxu0
    %v5613 = vadd.f32 %v5524, %v5612
    %v5614 = vpop.f32.mrf.mxu0
    %v5615 = vadd.f32 %v5526, %v5614
    %5616 = vmatmul.bf16.gmra.mxu0 %v4180
    %v5617 = vpop.f32.mrf.mxu0
    %v5618 = vadd.f32 %v5529, %v5617
    %v5619 = vpop.f32.mrf.mxu0
    %v5620 = vadd.f32 %v5531, %v5619
    %5621 = vmatmul.bf16.gmra.mxu0 %v4182
    %v5622 = vpop.f32.mrf.mxu0
    %v5623 = vadd.f32 %v5534, %v5622
    %v5624 = vpop.f32.mrf.mxu0
    %v5625 = vadd.f32 %v5536, %v5624
    %5626 = vmatmul.bf16.gmra.mxu0 %v4184
    %v5627 = vpop.f32.mrf.mxu0
    %v5628 = vadd.f32 %v5539, %v5627
    %v5629 = vpop.f32.mrf.mxu0
    %v5630 = vadd.f32 %v5541, %v5629
    %5631 = vmatmul.bf16.gmra.mxu0 %v4186
    %v5632 = vpop.f32.mrf.mxu0
    %v5633 = vadd.f32 %v5544, %v5632
    %v5634 = vpop.f32.mrf.mxu0
    %v5635 = vadd.f32 %v5546, %v5634
    %5636 = vmatmul.bf16.gmra.mxu0 %v4188
    %v5637 = vpop.f32.mrf.mxu0
    %v5638 = vadd.f32 %v5549, %v5637
    %v5639 = vpop.f32.mrf.mxu0
    %v5640 = vadd.f32 %v5551, %v5639
    %5641 = vmatmul.bf16.gmra.mxu0 %v4190
    %v5642 = vpop.f32.mrf.mxu0
    %v5643 = vadd.f32 %v5554, %v5642
    %v5644 = vpop.f32.mrf.mxu0
    %v5645 = vadd.f32 %v5556, %v5644
    %5646 = vdwg.mxu0
    %v5647 = vmax.f32 %v4322, 0.0
    %v5648 = vmax.f32 %v4500, 0.0
    %v5649 = vmax.f32 %v4678, 0.0
    %v5650 = vmax.f32 %v4856, 0.0
    %v5651 = vmax.f32 %v5034, 0.0
    %v5652 = vmax.f32 %v5212, 0.0
    %v5653 = vmax.f32 %v5390, 0.0
    %v5654 = vmax.f32 %v5568, 0.0
    %v5655 = vmax.f32 %v4324, 0.0
    %v5656 = vmax.f32 %v4502, 0.0
    %v5657 = vmax.f32 %v4680, 0.0
    %v5658 = vmax.f32 %v4858, 0.0
    %v5659 = vmax.f32 %v5036, 0.0
    %v5660 = vmax.f32 %v5214, 0.0
    %v5661 = vmax.f32 %v5392, 0.0
    %v5662 = vmax.f32 %v5570, 0.0
    %v5663 = vmax.f32 %v4327, 0.0
    %v5664 = vmax.f32 %v4505, 0.0
    %v5665 = vmax.f32 %v4683, 0.0
    %v5666 = vmax.f32 %v4861, 0.0
    %v5667 = vmax.f32 %v5039, 0.0
    %v5668 = vmax.f32 %v5217, 0.0
    %v5669 = vmax.f32 %v5395, 0.0
    %v5670 = vmax.f32 %v5573, 0.0
    %v5671 = vmax.f32 %v4329, 0.0
    %v5672 = vmax.f32 %v4507, 0.0
    %v5673 = vmax.f32 %v4685, 0.0
    %v5674 = vmax.f32 %v4863, 0.0
    %v5675 = vmax.f32 %v5041, 0.0
    %v5676 = vmax.f32 %v5219, 0.0
    %v5677 = vmax.f32 %v5397, 0.0
    %v5678 = vmax.f32 %v5575, 0.0
    %v5679 = vmax.f32 %v4332, 0.0
    %v5680 = vmax.f32 %v4510, 0.0
    %v5681 = vmax.f32 %v4688, 0.0
    %v5682 = vmax.f32 %v4866, 0.0
    %v5683 = vmax.f32 %v5044, 0.0
    %v5684 = vmax.f32 %v5222, 0.0
    %v5685 = vmax.f32 %v5400, 0.0
    %v5686 = vmax.f32 %v5578, 0.0
    %v5687 = vmax.f32 %v4334, 0.0
    %v5688 = vmax.f32 %v4512, 0.0
    %v5689 = vmax.f32 %v4690, 0.0
    %v5690 = vmax.f32 %v4868, 0.0
    %v5691 = vmax.f32 %v5046, 0.0
    %v5692 = vmax.f32 %v5224, 0.0
    %v5693 = vmax.f32 %v5402, 0.0
    %v5694 = vmax.f32 %v5580, 0.0
    %v5695 = vmax.f32 %v4337, 0.0
    %v5696 = vmax.f32 %v4515, 0.0
    %v5697 = vmax.f32 %v4693, 0.0
    %v5698 = vmax.f32 %v4871, 0.0
    %v5699 = vmax.f32 %v5049, 0.0
    %v5700 = vmax.f32 %v5227, 0.0
    %v5701 = vmax.f32 %v5405, 0.0
    %v5702 = vmax.f32 %v5583, 0.0
    %v5703 = vmax.f32 %v4339, 0.0
    %v5704 = vmax.f32 %v4517, 0.0
    %v5705 = vmax.f32 %v4695, 0.0
    %v5706 = vmax.f32 %v4873, 0.0
    %v5707 = vmax.f32 %v5051, 0.0
    %v5708 = vmax.f32 %v5229, 0.0
    %v5709 = vmax.f32 %v5407, 0.0
    %v5710 = vmax.f32 %v5585, 0.0
    %v5711 = vmax.f32 %v4342, 0.0
    %v5712 = vmax.f32 %v4520, 0.0
    %v5713 = vmax.f32 %v4698, 0.0
    %v5714 = vmax.f32 %v4876, 0.0
    %v5715 = vmax.f32 %v5054, 0.0
    %v5716 = vmax.f32 %v5232, 0.0
    %v5717 = vmax.f32 %v5410, 0.0
    %v5718 = vmax.f32 %v5588, 0.0
    %v5719 = vmax.f32 %v4344, 0.0
    %v5720 = vmax.f32 %v4522, 0.0
    %v5721 = vmax.f32 %v4700, 0.0
    %v5722 = vmax.f32 %v4878, 0.0
    %v5723 = vmax.f32 %v5056, 0.0
    %v5724 = vmax.f32 %v5234, 0.0
    %v5725 = vmax.f32 %v5412, 0.0
    %v5726 = vmax.f32 %v5590, 0.0
    %v5727 = vmax.f32 %v4347, 0.0
    %v5728 = vmax.f32 %v4525, 0.0
    %v5729 = vmax.f32 %v4703, 0.0
    %v5730 = vmax.f32 %v4881, 0.0
    %v5731 = vmax.f32 %v5059, 0.0
    %v5732 = vmax.f32 %v5237, 0.0
    %v5733 = vmax.f32 %v5415, 0.0
    %v5734 = vmax.f32 %v5593, 0.0
    %v5735 = vmax.f32 %v4349, 0.0
    %v5736 = vmax.f32 %v4527, 0.0
    %v5737 = vmax.f32 %v4705, 0.0
    %v5738 = vmax.f32 %v4883, 0.0
    %v5739 = vmax.f32 %v5061, 0.0
    %v5740 = vmax.f32 %v5239, 0.0
    %v5741 = vmax.f32 %v5417, 0.0
    %v5742 = vmax.f32 %v5595, 0.0
    %v5743 = vmax.f32 %v4352, 0.0
    %v5744 = vmax.f32 %v4530, 0.0
    %v5745 = vmax.f32 %v4708, 0.0
    %v5746 = vmax.f32 %v4886, 0.0
    %v5747 = vmax.f32 %v5064, 0.0
    %v5748 = vmax.f32 %v5242, 0.0
    %v5749 = vmax.f32 %v5420, 0.0
    %v5750 = vmax.f32 %v5598, 0.0
    %v5751 = vmax.f32 %v4354, 0.0
    %v5752 = vmax.f32 %v4532, 0.0
    %v5753 = vmax.f32 %v4710, 0.0
    %v5754 = vmax.f32 %v4888, 0.0
    %v5755 = vmax.f32 %v5066, 0.0
    %v5756 = vmax.f32 %v5244, 0.0
    %v5757 = vmax.f32 %v5422, 0.0
    %v5758 = vmax.f32 %v5600, 0.0
    %v5759 = vmax.f32 %v4357, 0.0
    %v5760 = vmax.f32 %v4535, 0.0
    %v5761 = vmax.f32 %v4713, 0.0
    %v5762 = vmax.f32 %v4891, 0.0
    %v5763 = vmax.f32 %v5069, 0.0
    %v5764 = vmax.f32 %v5247, 0.0
    %v5765 = vmax.f32 %v5425, 0.0
    %v5766 = vmax.f32 %v5603, 0.0
    %v5767 = vmax.f32 %v4359, 0.0
    %v5768 = vmax.f32 %v4537, 0.0
    %v5769 = vmax.f32 %v4715, 0.0
    %v5770 = vmax.f32 %v4893, 0.0
    %v5771 = vmax.f32 %v5071, 0.0
    %v5772 = vmax.f32 %v5249, 0.0
    %v5773 = vmax.f32 %v5427, 0.0
    %v5774 = vmax.f32 %v5605, 0.0
    %v5775 = vmax.f32 %v4362, 0.0
    %v5776 = vmax.f32 %v4540, 0.0
    %v5777 = vmax.f32 %v4718, 0.0
    %v5778 = vmax.f32 %v4896, 0.0
    %v5779 = vmax.f32 %v5074, 0.0
    %v5780 = vmax.f32 %v5252, 0.0
    %v5781 = vmax.f32 %v5430, 0.0
    %v5782 = vmax.f32 %v5608, 0.0
    %v5783 = vmax.f32 %v4364, 0.0
    %v5784 = vmax.f32 %v4542, 0.0
    %v5785 = vmax.f32 %v4720, 0.0
    %v5786 = vmax.f32 %v4898, 0.0
    %v5787 = vmax.f32 %v5076, 0.0
    %v5788 = vmax.f32 %v5254, 0.0
    %v5789 = vmax.f32 %v5432, 0.0
    %v5790 = vmax.f32 %v5610, 0.0
    %v5791 = vmax.f32 %v4367, 0.0
    %v5792 = vmax.f32 %v4545, 0.0
    %v5793 = vmax.f32 %v4723, 0.0
    %v5794 = vmax.f32 %v4901, 0.0
    %v5795 = vmax.f32 %v5079, 0.0
    %v5796 = vmax.f32 %v5257, 0.0
    %v5797 = vmax.f32 %v5435, 0.0
    %v5798 = vmax.f32 %v5613, 0.0
    %v5799 = vmax.f32 %v4369, 0.0
    %v5800 = vmax.f32 %v4547, 0.0
    %v5801 = vmax.f32 %v4725, 0.0
    %v5802 = vmax.f32 %v4903, 0.0
    %v5803 = vmax.f32 %v5081, 0.0
    %v5804 = vmax.f32 %v5259, 0.0
    %v5805 = vmax.f32 %v5437, 0.0
    %v5806 = vmax.f32 %v5615, 0.0
    %v5807 = vmax.f32 %v4372, 0.0
    %v5808 = vmax.f32 %v4550, 0.0
    %v5809 = vmax.f32 %v4728, 0.0
    %v5810 = vmax.f32 %v4906, 0.0
    %v5811 = vmax.f32 %v5084, 0.0
    %v5812 = vmax.f32 %v5262, 0.0
    %v5813 = vmax.f32 %v5440, 0.0
    %v5814 = vmax.f32 %v5618, 0.0
    %v5815 = vmax.f32 %v4374, 0.0
    %v5816 = vmax.f32 %v4552, 0.0
    %v5817 = vmax.f32 %v4730, 0.0
    %v5818 = vmax.f32 %v4908, 0.0
    %v5819 = vmax.f32 %v5086, 0.0
    %v5820 = vmax.f32 %v5264, 0.0
    %v5821 = vmax.f32 %v5442, 0.0
    %v5822 = vmax.f32 %v5620, 0.0
    %v5823 = vmax.f32 %v4377, 0.0
    %v5824 = vmax.f32 %v4555, 0.0
    %v5825 = vmax.f32 %v4733, 0.0
    %v5826 = vmax.f32 %v4911, 0.0
    %v5827 = vmax.f32 %v5089, 0.0
    %v5828 = vmax.f32 %v5267, 0.0
    %v5829 = vmax.f32 %v5445, 0.0
    %v5830 = vmax.f32 %v5623, 0.0
    %v5831 = vmax.f32 %v4379, 0.0
    %v5832 = vmax.f32 %v4557, 0.0
    %v5833 = vmax.f32 %v4735, 0.0
    %v5834 = vmax.f32 %v4913, 0.0
    %v5835 = vmax.f32 %v5091, 0.0
    %v5836 = vmax.f32 %v5269, 0.0
    %v5837 = vmax.f32 %v5447, 0.0
    %v5838 = vmax.f32 %v5625, 0.0
    %v5839 = vmax.f32 %v4382, 0.0
    %v5840 = vmax.f32 %v4560, 0.0
    %v5841 = vmax.f32 %v4738, 0.0
    %v5842 = vmax.f32 %v4916, 0.0
    %v5843 = vmax.f32 %v5094, 0.0
    %v5844 = vmax.f32 %v5272, 0.0
    %v5845 = vmax.f32 %v5450, 0.0
    %v5846 = vmax.f32 %v5628, 0.0
    %v5847 = vmax.f32 %v4384, 0.0
    %v5848 = vmax.f32 %v4562, 0.0
    %v5849 = vmax.f32 %v4740, 0.0
    %v5850 = vmax.f32 %v4918, 0.0
    %v5851 = vmax.f32 %v5096, 0.0
    %v5852 = vmax.f32 %v5274, 0.0
    %v5853 = vmax.f32 %v5452, 0.0
    %v5854 = vmax.f32 %v5630, 0.0
    %v5855 = vmax.f32 %v4387, 0.0
    %v5856 = vmax.f32 %v4565, 0.0
    %v5857 = vmax.f32 %v4743, 0.0
    %v5858 = vmax.f32 %v4921, 0.0
    %v5859 = vmax.f32 %v5099, 0.0
    %v5860 = vmax.f32 %v5277, 0.0
    %v5861 = vmax.f32 %v5455, 0.0
    %v5862 = vmax.f32 %v5633, 0.0
    %v5863 = vmax.f32 %v4389, 0.0
    %v5864 = vmax.f32 %v4567, 0.0
    %v5865 = vmax.f32 %v4745, 0.0
    %v5866 = vmax.f32 %v4923, 0.0
    %v5867 = vmax.f32 %v5101, 0.0
    %v5868 = vmax.f32 %v5279, 0.0
    %v5869 = vmax.f32 %v5457, 0.0
    %v5870 = vmax.f32 %v5635, 0.0
    %v5871 = vmax.f32 %v4392, 0.0
    %v5872 = vmax.f32 %v4570, 0.0
    %v5873 = vmax.f32 %v4748, 0.0
    %v5874 = vmax.f32 %v4926, 0.0
    %v5875 = vmax.f32 %v5104, 0.0
    %v5876 = vmax.f32 %v5282, 0.0
    %v5877 = vmax.f32 %v5460, 0.0
    %v5878 = vmax.f32 %v5638, 0.0
    %v5879 = vmax.f32 %v4394, 0.0
    %v5880 = vmax.f32 %v4572, 0.0
    %v5881 = vmax.f32 %v4750, 0.0
    %v5882 = vmax.f32 %v4928, 0.0
    %v5883 = vmax.f32 %v5106, 0.0
    %v5884 = vmax.f32 %v5284, 0.0
    %v5885 = vmax.f32 %v5462, 0.0
    %v5886 = vmax.f32 %v5640, 0.0
    %v5887 = vmax.f32 %v4397, 0.0
    %v5888 = vmax.f32 %v4575, 0.0
    %v5889 = vmax.f32 %v4753, 0.0
    %v5890 = vmax.f32 %v4931, 0.0
    %v5891 = vmax.f32 %v5109, 0.0
    %v5892 = vmax.f32 %v5287, 0.0
    %v5893 = vmax.f32 %v5465, 0.0
    %v5894 = vmax.f32 %v5643, 0.0
    %v5895 = vmax.f32 %v4399, 0.0
    %v5896 = vmax.f32 %v4577, 0.0
    %v5897 = vmax.f32 %v4755, 0.0
    %v5898 = vmax.f32 %v4933, 0.0
    %v5899 = vmax.f32 %v5111, 0.0
    %v5900 = vmax.f32 %v5289, 0.0
    %v5901 = vmax.f32 %v5467, 0.0
    %v5902 = vmax.f32 %v5645, 0.0
    %v5903 = vld [vmem:[%s7] sm:$0xff]
    %v5904 = vld [vmem:[%s7 + $0x8] sm:$0xff]
    %v5905 = vld [vmem:[%s7 + $0x10] sm:$0xff]
    %v5906 = vld [vmem:[%s7 + $0x18] sm:$0xff]
    %v5907 = vld [vmem:[%s7 + $0x20] sm:$0xff]
    %v5908 = vld [vmem:[%s7 + $0x28] sm:$0xff]
    %v5909 = vld [vmem:[%s7 + $0x30] sm:$0xff]
    %v5910 = vld [vmem:[%s7 + $0x38] sm:$0xff]
    %v5911 = vld [vmem:[%s7 + $0x40] sm:$0xff]
    %v5912 = vld [vmem:[%s7 + $0x48] sm:$0xff]
    %v5913 = vld [vmem:[%s7 + $0x50] sm:$0xff]
    %v5914 = vld [vmem:[%s7 + $0x58] sm:$0xff]
    %v5915 = vld [vmem:[%s7 + $0x60] sm:$0xff]
    %v5916 = vld [vmem:[%s7 + $0x68] sm:$0xff]
    %v5917 = vld [vmem:[%s7 + $0x70] sm:$0xff]
    %v5918 = vld [vmem:[%s7 + $0x78] sm:$0xff]
    %v5919 = vld [vmem:[%s7 + $0x80] sm:$0xff]
    %v5920 = vld [vmem:[%s7 + $0x88] sm:$0xff]
    %v5921 = vld [vmem:[%s7 + $0x90] sm:$0xff]
    %v5922 = vld [vmem:[%s7 + $0x98] sm:$0xff]
    %v5923 = vld [vmem:[%s7 + $0xa0] sm:$0xff]
    %v5924 = vld [vmem:[%s7 + $0xa8] sm:$0xff]
    %v5925 = vld [vmem:[%s7 + $0xb0] sm:$0xff]
    %v5926 = vld [vmem:[%s7 + $0xb8] sm:$0xff]
    %v5927 = vld [vmem:[%s7 + $0xc0] sm:$0xff]
    %v5928 = vld [vmem:[%s7 + $0xc8] sm:$0xff]
    %v5929 = vld [vmem:[%s7 + $0xd0] sm:$0xff]
    %v5930 = vld [vmem:[%s7 + $0xd8] sm:$0xff]
    %v5931 = vld [vmem:[%s7 + $0xe0] sm:$0xff]
    %v5932 = vld [vmem:[%s7 + $0xe8] sm:$0xff]
    %v5933 = vld [vmem:[%s7 + $0xf0] sm:$0xff]
    %v5934 = vld [vmem:[%s7 + $0xf8] sm:$0xff]
    %5936 = vset.pattern.permute.xlu0 0
    %5937 = vperm.xlu0 %5936, %v5903
    %v5938 = vpop.permute.xlu0 %5937
    %5941 = vset.pattern.permute.xlu0 0
    %5942 = vperm.xlu0 %5941, %v5904
    %v5943 = vpop.permute.xlu0 %5942
    %5946 = vset.pattern.permute.xlu0 0
    %5947 = vperm.xlu0 %5946, %v5905
    %v5948 = vpop.permute.xlu0 %5947
    %5951 = vset.pattern.permute.xlu0 0
    %5952 = vperm.xlu0 %5951, %v5906
    %v5953 = vpop.permute.xlu0 %5952
    %5956 = vset.pattern.permute.xlu0 0
    %5957 = vperm.xlu0 %5956, %v5907
    %v5958 = vpop.permute.xlu0 %5957
    %5961 = vset.pattern.permute.xlu0 0
    %5962 = vperm.xlu0 %5961, %v5908
    %v5963 = vpop.permute.xlu0 %5962
    %5966 = vset.pattern.permute.xlu0 0
    %5967 = vperm.xlu0 %5966, %v5909
    %v5968 = vpop.permute.xlu0 %5967
    %5971 = vset.pattern.permute.xlu0 0
    %5972 = vperm.xlu0 %5971, %v5910
    %v5973 = vpop.permute.xlu0 %5972
    %5976 = vset.pattern.permute.xlu0 0
    %5977 = vperm.xlu0 %5976, %v5911
    %v5978 = vpop.permute.xlu0 %5977
    %5981 = vset.pattern.permute.xlu0 0
    %5982 = vperm.xlu0 %5981, %v5912
    %v5983 = vpop.permute.xlu0 %5982
    %5986 = vset.pattern.permute.xlu0 0
    %5987 = vperm.xlu0 %5986, %v5913
    %v5988 = vpop.permute.xlu0 %5987
    %5991 = vset.pattern.permute.xlu0 0
    %5992 = vperm.xlu0 %5991, %v5914
    %v5993 = vpop.permute.xlu0 %5992
    %5996 = vset.pattern.permute.xlu0 0
    %5997 = vperm.xlu0 %5996, %v5915
    %v5998 = vpop.permute.xlu0 %5997
    %6001 = vset.pattern.permute.xlu0 0
    %6002 = vperm.xlu0 %6001, %v5916
    %v6003 = vpop.permute.xlu0 %6002
    %6006 = vset.pattern.permute.xlu0 0
    %6007 = vperm.xlu0 %6006, %v5917
    %v6008 = vpop.permute.xlu0 %6007
    %6011 = vset.pattern.permute.xlu0 0
    %6012 = vperm.xlu0 %6011, %v5918
    %v6013 = vpop.permute.xlu0 %6012
    %6016 = vset.pattern.permute.xlu0 0
    %6017 = vperm.xlu0 %6016, %v5919
    %v6018 = vpop.permute.xlu0 %6017
    %6021 = vset.pattern.permute.xlu0 0
    %6022 = vperm.xlu0 %6021, %v5920
    %v6023 = vpop.permute.xlu0 %6022
    %6026 = vset.pattern.permute.xlu0 0
    %6027 = vperm.xlu0 %6026, %v5921
    %v6028 = vpop.permute.xlu0 %6027
    %6031 = vset.pattern.permute.xlu0 0
    %6032 = vperm.xlu0 %6031, %v5922
    %v6033 = vpop.permute.xlu0 %6032
    %6036 = vset.pattern.permute.xlu0 0
    %6037 = vperm.xlu0 %6036, %v5923
    %v6038 = vpop.permute.xlu0 %6037
    %6041 = vset.pattern.permute.xlu0 0
    %6042 = vperm.xlu0 %6041, %v5924
    %v6043 = vpop.permute.xlu0 %6042
    %6046 = vset.pattern.permute.xlu0 0
    %6047 = vperm.xlu0 %6046, %v5925
    %v6048 = vpop.permute.xlu0 %6047
    %6051 = vset.pattern.permute.xlu0 0
    %6052 = vperm.xlu0 %6051, %v5926
    %v6053 = vpop.permute.xlu0 %6052
    %6056 = vset.pattern.permute.xlu0 0
    %6057 = vperm.xlu0 %6056, %v5927
    %v6058 = vpop.permute.xlu0 %6057
    %6061 = vset.pattern.permute.xlu0 0
    %6062 = vperm.xlu0 %6061, %v5928
    %v6063 = vpop.permute.xlu0 %6062
    %6066 = vset.pattern.permute.xlu0 0
    %6067 = vperm.xlu0 %6066, %v5929
    %v6068 = vpop.permute.xlu0 %6067
    %6071 = vset.pattern.permute.xlu0 0
    %6072 = vperm.xlu0 %6071, %v5930
    %v6073 = vpop.permute.xlu0 %6072
    %6076 = vset.pattern.permute.xlu0 0
    %6077 = vperm.xlu0 %6076, %v5931
    %v6078 = vpop.permute.xlu0 %6077
    %6081 = vset.pattern.permute.xlu0 0
    %6082 = vperm.xlu0 %6081, %v5932
    %v6083 = vpop.permute.xlu0 %6082
    %6086 = vset.pattern.permute.xlu0 0
    %6087 = vperm.xlu0 %6086, %v5933
    %v6088 = vpop.permute.xlu0 %6087
    %6091 = vset.pattern.permute.xlu0 0
    %6092 = vperm.xlu0 %6091, %v5934
    %v6093 = vpop.permute.xlu0 %6092
    %v6095 = vmul.f32 %v5647, %v5938
    %v6096 = vmul.f32 %v5648, %v5938
    %v6097 = vmul.f32 %v5649, %v5938
    %v6098 = vmul.f32 %v5650, %v5938
    %v6099 = vmul.f32 %v5651, %v5938
    %v6100 = vmul.f32 %v5652, %v5938
    %v6101 = vmul.f32 %v5653, %v5938
    %v6102 = vmul.f32 %v5654, %v5938
    %v6103 = vmul.f32 %v5655, %v5943
    %v6104 = vmul.f32 %v5656, %v5943
    %v6105 = vmul.f32 %v5657, %v5943
    %v6106 = vmul.f32 %v5658, %v5943
    %v6107 = vmul.f32 %v5659, %v5943
    %v6108 = vmul.f32 %v5660, %v5943
    %v6109 = vmul.f32 %v5661, %v5943
    %v6110 = vmul.f32 %v5662, %v5943
    %v6111 = vmul.f32 %v5663, %v5948
    %v6112 = vmul.f32 %v5664, %v5948
    %v6113 = vmul.f32 %v5665, %v5948
    %v6114 = vmul.f32 %v5666, %v5948
    %v6115 = vmul.f32 %v5667, %v5948
    %v6116 = vmul.f32 %v5668, %v5948
    %v6117 = vmul.f32 %v5669, %v5948
    %v6118 = vmul.f32 %v5670, %v5948
    %v6119 = vmul.f32 %v5671, %v5953
    %v6120 = vmul.f32 %v5672, %v5953
    %v6121 = vmul.f32 %v5673, %v5953
    %v6122 = vmul.f32 %v5674, %v5953
    %v6123 = vmul.f32 %v5675, %v5953
    %v6124 = vmul.f32 %v5676, %v5953
    %v6125 = vmul.f32 %v5677, %v5953
    %v6126 = vmul.f32 %v5678, %v5953
    %v6127 = vmul.f32 %v5679, %v5958
    %v6128 = vmul.f32 %v5680, %v5958
    %v6129 = vmul.f32 %v5681, %v5958
    %v6130 = vmul.f32 %v5682, %v5958
    %v6131 = vmul.f32 %v5683, %v5958
    %v6132 = vmul.f32 %v5684, %v5958
    %v6133 = vmul.f32 %v5685, %v5958
    %v6134 = vmul.f32 %v5686, %v5958
    %v6135 = vmul.f32 %v5687, %v5963
    %v6136 = vmul.f32 %v5688, %v5963
    %v6137 = vmul.f32 %v5689, %v5963
    %v6138 = vmul.f32 %v5690, %v5963
    %v6139 = vmul.f32 %v5691, %v5963
    %v6140 = vmul.f32 %v5692, %v5963
    %v6141 = vmul.f32 %v5693, %v5963
    %v6142 = vmul.f32 %v5694, %v5963
    %v6143 = vmul.f32 %v5695, %v5968
    %v6144 = vmul.f32 %v5696, %v5968
    %v6145 = vmul.f32 %v5697, %v5968
    %v6146 = vmul.f32 %v5698, %v5968
    %v6147 = vmul.f32 %v5699, %v5968
    %v6148 = vmul.f32 %v5700, %v5968
    %v6149 = vmul.f32 %v5701, %v5968
    %v6150 = vmul.f32 %v5702, %v5968
    %v6151 = vmul.f32 %v5703, %v5973
    %v6152 = vmul.f32 %v5704, %v5973
    %v6153 = vmul.f32 %v5705, %v5973
    %v6154 = vmul.f32 %v5706, %v5973
    %v6155 = vmul.f32 %v5707, %v5973
    %v6156 = vmul.f32 %v5708, %v5973
    %v6157 = vmul.f32 %v5709, %v5973
    %v6158 = vmul.f32 %v5710, %v5973
    %v6159 = vmul.f32 %v5711, %v5978
    %v6160 = vmul.f32 %v5712, %v5978
    %v6161 = vmul.f32 %v5713, %v5978
    %v6162 = vmul.f32 %v5714, %v5978
    %v6163 = vmul.f32 %v5715, %v5978
    %v6164 = vmul.f32 %v5716, %v5978
    %v6165 = vmul.f32 %v5717, %v5978
    %v6166 = vmul.f32 %v5718, %v5978
    %v6167 = vmul.f32 %v5719, %v5983
    %v6168 = vmul.f32 %v5720, %v5983
    %v6169 = vmul.f32 %v5721, %v5983
    %v6170 = vmul.f32 %v5722, %v5983
    %v6171 = vmul.f32 %v5723, %v5983
    %v6172 = vmul.f32 %v5724, %v5983
    %v6173 = vmul.f32 %v5725, %v5983
    %v6174 = vmul.f32 %v5726, %v5983
    %v6175 = vmul.f32 %v5727, %v5988
    %v6176 = vmul.f32 %v5728, %v5988
    %v6177 = vmul.f32 %v5729, %v5988
    %v6178 = vmul.f32 %v5730, %v5988
    %v6179 = vmul.f32 %v5731, %v5988
    %v6180 = vmul.f32 %v5732, %v5988
    %v6181 = vmul.f32 %v5733, %v5988
    %v6182 = vmul.f32 %v5734, %v5988
    %v6183 = vmul.f32 %v5735, %v5993
    %v6184 = vmul.f32 %v5736, %v5993
    %v6185 = vmul.f32 %v5737, %v5993
    %v6186 = vmul.f32 %v5738, %v5993
    %v6187 = vmul.f32 %v5739, %v5993
    %v6188 = vmul.f32 %v5740, %v5993
    %v6189 = vmul.f32 %v5741, %v5993
    %v6190 = vmul.f32 %v5742, %v5993
    %v6191 = vmul.f32 %v5743, %v5998
    %v6192 = vmul.f32 %v5744, %v5998
    %v6193 = vmul.f32 %v5745, %v5998
    %v6194 = vmul.f32 %v5746, %v5998
    %v6195 = vmul.f32 %v5747, %v5998
    %v6196 = vmul.f32 %v5748, %v5998
    %v6197 = vmul.f32 %v5749, %v5998
    %v6198 = vmul.f32 %v5750, %v5998
    %v6199 = vmul.f32 %v5751, %v6003
    %v6200 = vmul.f32 %v5752, %v6003
    %v6201 = vmul.f32 %v5753, %v6003
    %v6202 = vmul.f32 %v5754, %v6003
    %v6203 = vmul.f32 %v5755, %v6003
    %v6204 = vmul.f32 %v5756, %v6003
    %v6205 = vmul.f32 %v5757, %v6003
    %v6206 = vmul.f32 %v5758, %v6003
    %v6207 = vmul.f32 %v5759, %v6008
    %v6208 = vmul.f32 %v5760, %v6008
    %v6209 = vmul.f32 %v5761, %v6008
    %v6210 = vmul.f32 %v5762, %v6008
    %v6211 = vmul.f32 %v5763, %v6008
    %v6212 = vmul.f32 %v5764, %v6008
    %v6213 = vmul.f32 %v5765, %v6008
    %v6214 = vmul.f32 %v5766, %v6008
    %v6215 = vmul.f32 %v5767, %v6013
    %v6216 = vmul.f32 %v5768, %v6013
    %v6217 = vmul.f32 %v5769, %v6013
    %v6218 = vmul.f32 %v5770, %v6013
    %v6219 = vmul.f32 %v5771, %v6013
    %v6220 = vmul.f32 %v5772, %v6013
    %v6221 = vmul.f32 %v5773, %v6013
    %v6222 = vmul.f32 %v5774, %v6013
    %v6223 = vmul.f32 %v5775, %v6018
    %v6224 = vmul.f32 %v5776, %v6018
    %v6225 = vmul.f32 %v5777, %v6018
    %v6226 = vmul.f32 %v5778, %v6018
    %v6227 = vmul.f32 %v5779, %v6018
    %v6228 = vmul.f32 %v5780, %v6018
    %v6229 = vmul.f32 %v5781, %v6018
    %v6230 = vmul.f32 %v5782, %v6018
    %v6231 = vmul.f32 %v5783, %v6023
    %v6232 = vmul.f32 %v5784, %v6023
    %v6233 = vmul.f32 %v5785, %v6023
    %v6234 = vmul.f32 %v5786, %v6023
    %v6235 = vmul.f32 %v5787, %v6023
    %v6236 = vmul.f32 %v5788, %v6023
    %v6237 = vmul.f32 %v5789, %v6023
    %v6238 = vmul.f32 %v5790, %v6023
    %v6239 = vmul.f32 %v5791, %v6028
    %v6240 = vmul.f32 %v5792, %v6028
    %v6241 = vmul.f32 %v5793, %v6028
    %v6242 = vmul.f32 %v5794, %v6028
    %v6243 = vmul.f32 %v5795, %v6028
    %v6244 = vmul.f32 %v5796, %v6028
    %v6245 = vmul.f32 %v5797, %v6028
    %v6246 = vmul.f32 %v5798, %v6028
    %v6247 = vmul.f32 %v5799, %v6033
    %v6248 = vmul.f32 %v5800, %v6033
    %v6249 = vmul.f32 %v5801, %v6033
    %v6250 = vmul.f32 %v5802, %v6033
    %v6251 = vmul.f32 %v5803, %v6033
    %v6252 = vmul.f32 %v5804, %v6033
    %v6253 = vmul.f32 %v5805, %v6033
    %v6254 = vmul.f32 %v5806, %v6033
    %v6255 = vmul.f32 %v5807, %v6038
    %v6256 = vmul.f32 %v5808, %v6038
    %v6257 = vmul.f32 %v5809, %v6038
    %v6258 = vmul.f32 %v5810, %v6038
    %v6259 = vmul.f32 %v5811, %v6038
    %v6260 = vmul.f32 %v5812, %v6038
    %v6261 = vmul.f32 %v5813, %v6038
    %v6262 = vmul.f32 %v5814, %v6038
    %v6263 = vmul.f32 %v5815, %v6043
    %v6264 = vmul.f32 %v5816, %v6043
    %v6265 = vmul.f32 %v5817, %v6043
    %v6266 = vmul.f32 %v5818, %v6043
    %v6267 = vmul.f32 %v5819, %v6043
    %v6268 = vmul.f32 %v5820, %v6043
    %v6269 = vmul.f32 %v5821, %v6043
    %v6270 = vmul.f32 %v5822, %v6043
    %v6271 = vmul.f32 %v5823, %v6048
    %v6272 = vmul.f32 %v5824, %v6048
    %v6273 = vmul.f32 %v5825, %v6048
    %v6274 = vmul.f32 %v5826, %v6048
    %v6275 = vmul.f32 %v5827, %v6048
    %v6276 = vmul.f32 %v5828, %v6048
    %v6277 = vmul.f32 %v5829, %v6048
    %v6278 = vmul.f32 %v5830, %v6048
    %v6279 = vmul.f32 %v5831, %v6053
    %v6280 = vmul.f32 %v5832, %v6053
    %v6281 = vmul.f32 %v5833, %v6053
    %v6282 = vmul.f32 %v5834, %v6053
    %v6283 = vmul.f32 %v5835, %v6053
    %v6284 = vmul.f32 %v5836, %v6053
    %v6285 = vmul.f32 %v5837, %v6053
    %v6286 = vmul.f32 %v5838, %v6053
    %v6287 = vmul.f32 %v5839, %v6058
    %v6288 = vmul.f32 %v5840, %v6058
    %v6289 = vmul.f32 %v5841, %v6058
    %v6290 = vmul.f32 %v5842, %v6058
    %v6291 = vmul.f32 %v5843, %v6058
    %v6292 = vmul.f32 %v5844, %v6058
    %v6293 = vmul.f32 %v5845, %v6058
    %v6294 = vmul.f32 %v5846, %v6058
    %v6295 = vmul.f32 %v5847, %v6063
    %v6296 = vmul.f32 %v5848, %v6063
    %v6297 = vmul.f32 %v5849, %v6063
    %v6298 = vmul.f32 %v5850, %v6063
    %v6299 = vmul.f32 %v5851, %v6063
    %v6300 = vmul.f32 %v5852, %v6063
    %v6301 = vmul.f32 %v5853, %v6063
    %v6302 = vmul.f32 %v5854, %v6063
    %v6303 = vmul.f32 %v5855, %v6068
    %v6304 = vmul.f32 %v5856, %v6068
    %v6305 = vmul.f32 %v5857, %v6068
    %v6306 = vmul.f32 %v5858, %v6068
    %v6307 = vmul.f32 %v5859, %v6068
    %v6308 = vmul.f32 %v5860, %v6068
    %v6309 = vmul.f32 %v5861, %v6068
    %v6310 = vmul.f32 %v5862, %v6068
    %v6311 = vmul.f32 %v5863, %v6073
    %v6312 = vmul.f32 %v5864, %v6073
    %v6313 = vmul.f32 %v5865, %v6073
    %v6314 = vmul.f32 %v5866, %v6073
    %v6315 = vmul.f32 %v5867, %v6073
    %v6316 = vmul.f32 %v5868, %v6073
    %v6317 = vmul.f32 %v5869, %v6073
    %v6318 = vmul.f32 %v5870, %v6073
    %v6319 = vmul.f32 %v5871, %v6078
    %v6320 = vmul.f32 %v5872, %v6078
    %v6321 = vmul.f32 %v5873, %v6078
    %v6322 = vmul.f32 %v5874, %v6078
    %v6323 = vmul.f32 %v5875, %v6078
    %v6324 = vmul.f32 %v5876, %v6078
    %v6325 = vmul.f32 %v5877, %v6078
    %v6326 = vmul.f32 %v5878, %v6078
    %v6327 = vmul.f32 %v5879, %v6083
    %v6328 = vmul.f32 %v5880, %v6083
    %v6329 = vmul.f32 %v5881, %v6083
    %v6330 = vmul.f32 %v5882, %v6083
    %v6331 = vmul.f32 %v5883, %v6083
    %v6332 = vmul.f32 %v5884, %v6083
    %v6333 = vmul.f32 %v5885, %v6083
    %v6334 = vmul.f32 %v5886, %v6083
    %v6335 = vmul.f32 %v5887, %v6088
    %v6336 = vmul.f32 %v5888, %v6088
    %v6337 = vmul.f32 %v5889, %v6088
    %v6338 = vmul.f32 %v5890, %v6088
    %v6339 = vmul.f32 %v5891, %v6088
    %v6340 = vmul.f32 %v5892, %v6088
    %v6341 = vmul.f32 %v5893, %v6088
    %v6342 = vmul.f32 %v5894, %v6088
    %v6343 = vmul.f32 %v5895, %v6093
    %v6344 = vmul.f32 %v5896, %v6093
    %v6345 = vmul.f32 %v5897, %v6093
    %v6346 = vmul.f32 %v5898, %v6093
    %v6347 = vmul.f32 %v5899, %v6093
    %v6348 = vmul.f32 %v5900, %v6093
    %v6349 = vmul.f32 %v5901, %v6093
    %v6350 = vmul.f32 %v5902, %v6093
    %v6351 = vadd.f32 %v6095, %v6103
    %v6352 = vadd.f32 %v6351, %v6111
    %v6353 = vadd.f32 %v6352, %v6119
    %v6354 = vadd.f32 %v6353, %v6127
    %v6355 = vadd.f32 %v6354, %v6135
    %v6356 = vadd.f32 %v6355, %v6143
    %v6357 = vadd.f32 %v6356, %v6151
    %v6358 = vadd.f32 %v6357, %v6159
    %v6359 = vadd.f32 %v6358, %v6167
    %v6360 = vadd.f32 %v6359, %v6175
    %v6361 = vadd.f32 %v6360, %v6183
    %v6362 = vadd.f32 %v6361, %v6191
    %v6363 = vadd.f32 %v6362, %v6199
    %v6364 = vadd.f32 %v6363, %v6207
    %v6365 = vadd.f32 %v6364, %v6215
    %v6366 = vadd.f32 %v6365, %v6223
    %v6367 = vadd.f32 %v6366, %v6231
    %v6368 = vadd.f32 %v6367, %v6239
    %v6369 = vadd.f32 %v6368, %v6247
    %v6370 = vadd.f32 %v6369, %v6255
    %v6371 = vadd.f32 %v6370, %v6263
    %v6372 = vadd.f32 %v6371, %v6271
    %v6373 = vadd.f32 %v6372, %v6279
    %v6374 = vadd.f32 %v6373, %v6287
    %v6375 = vadd.f32 %v6374, %v6295
    %v6376 = vadd.f32 %v6375, %v6303
    %v6377 = vadd.f32 %v6376, %v6311
    %v6378 = vadd.f32 %v6377, %v6319
    %v6379 = vadd.f32 %v6378, %v6327
    %v6380 = vadd.f32 %v6379, %v6335
    %v6381 = vadd.f32 %v6380, %v6343
    %v6382 = vrot.slane %v6381, 4
    %v6383 = vadd.f32 %v6381, %v6382
    %v6384 = vrot.slane %v6383, 2
    %v6385 = vadd.f32 %v6383, %v6384
    %v6386 = vrot.slane %v6385, 1
    %v6387 = vadd.f32 %v6385, %v6386
    %v6388 = vadd.f32 %v6096, %v6104
    %v6389 = vadd.f32 %v6388, %v6112
    %v6390 = vadd.f32 %v6389, %v6120
    %v6391 = vadd.f32 %v6390, %v6128
    %v6392 = vadd.f32 %v6391, %v6136
    %v6393 = vadd.f32 %v6392, %v6144
    %v6394 = vadd.f32 %v6393, %v6152
    %v6395 = vadd.f32 %v6394, %v6160
    %v6396 = vadd.f32 %v6395, %v6168
    %v6397 = vadd.f32 %v6396, %v6176
    %v6398 = vadd.f32 %v6397, %v6184
    %v6399 = vadd.f32 %v6398, %v6192
    %v6400 = vadd.f32 %v6399, %v6200
    %v6401 = vadd.f32 %v6400, %v6208
    %v6402 = vadd.f32 %v6401, %v6216
    %v6403 = vadd.f32 %v6402, %v6224
    %v6404 = vadd.f32 %v6403, %v6232
    %v6405 = vadd.f32 %v6404, %v6240
    %v6406 = vadd.f32 %v6405, %v6248
    %v6407 = vadd.f32 %v6406, %v6256
    %v6408 = vadd.f32 %v6407, %v6264
    %v6409 = vadd.f32 %v6408, %v6272
    %v6410 = vadd.f32 %v6409, %v6280
    %v6411 = vadd.f32 %v6410, %v6288
    %v6412 = vadd.f32 %v6411, %v6296
    %v6413 = vadd.f32 %v6412, %v6304
    %v6414 = vadd.f32 %v6413, %v6312
    %v6415 = vadd.f32 %v6414, %v6320
    %v6416 = vadd.f32 %v6415, %v6328
    %v6417 = vadd.f32 %v6416, %v6336
    %v6418 = vadd.f32 %v6417, %v6344
    %v6419 = vrot.slane %v6418, 4
    %v6420 = vadd.f32 %v6418, %v6419
    %v6421 = vrot.slane %v6420, 2
    %v6422 = vadd.f32 %v6420, %v6421
    %v6423 = vrot.slane %v6422, 1
    %v6424 = vadd.f32 %v6422, %v6423
    %v6425 = vadd.f32 %v6097, %v6105
    %v6426 = vadd.f32 %v6425, %v6113
    %v6427 = vadd.f32 %v6426, %v6121
    %v6428 = vadd.f32 %v6427, %v6129
    %v6429 = vadd.f32 %v6428, %v6137
    %v6430 = vadd.f32 %v6429, %v6145
    %v6431 = vadd.f32 %v6430, %v6153
    %v6432 = vadd.f32 %v6431, %v6161
    %v6433 = vadd.f32 %v6432, %v6169
    %v6434 = vadd.f32 %v6433, %v6177
    %v6435 = vadd.f32 %v6434, %v6185
    %v6436 = vadd.f32 %v6435, %v6193
    %v6437 = vadd.f32 %v6436, %v6201
    %v6438 = vadd.f32 %v6437, %v6209
    %v6439 = vadd.f32 %v6438, %v6217
    %v6440 = vadd.f32 %v6439, %v6225
    %v6441 = vadd.f32 %v6440, %v6233
    %v6442 = vadd.f32 %v6441, %v6241
    %v6443 = vadd.f32 %v6442, %v6249
    %v6444 = vadd.f32 %v6443, %v6257
    %v6445 = vadd.f32 %v6444, %v6265
    %v6446 = vadd.f32 %v6445, %v6273
    %v6447 = vadd.f32 %v6446, %v6281
    %v6448 = vadd.f32 %v6447, %v6289
    %v6449 = vadd.f32 %v6448, %v6297
    %v6450 = vadd.f32 %v6449, %v6305
    %v6451 = vadd.f32 %v6450, %v6313
    %v6452 = vadd.f32 %v6451, %v6321
    %v6453 = vadd.f32 %v6452, %v6329
    %v6454 = vadd.f32 %v6453, %v6337
    %v6455 = vadd.f32 %v6454, %v6345
    %v6456 = vrot.slane %v6455, 4
    %v6457 = vadd.f32 %v6455, %v6456
    %v6458 = vrot.slane %v6457, 2
    %v6459 = vadd.f32 %v6457, %v6458
    %v6460 = vrot.slane %v6459, 1
    %v6461 = vadd.f32 %v6459, %v6460
    %v6462 = vadd.f32 %v6098, %v6106
    %v6463 = vadd.f32 %v6462, %v6114
    %v6464 = vadd.f32 %v6463, %v6122
    %v6465 = vadd.f32 %v6464, %v6130
    %v6466 = vadd.f32 %v6465, %v6138
    %v6467 = vadd.f32 %v6466, %v6146
    %v6468 = vadd.f32 %v6467, %v6154
    %v6469 = vadd.f32 %v6468, %v6162
    %v6470 = vadd.f32 %v6469, %v6170
    %v6471 = vadd.f32 %v6470, %v6178
    %v6472 = vadd.f32 %v6471, %v6186
    %v6473 = vadd.f32 %v6472, %v6194
    %v6474 = vadd.f32 %v6473, %v6202
    %v6475 = vadd.f32 %v6474, %v6210
    %v6476 = vadd.f32 %v6475, %v6218
    %v6477 = vadd.f32 %v6476, %v6226
    %v6478 = vadd.f32 %v6477, %v6234
    %v6479 = vadd.f32 %v6478, %v6242
    %v6480 = vadd.f32 %v6479, %v6250
    %v6481 = vadd.f32 %v6480, %v6258
    %v6482 = vadd.f32 %v6481, %v6266
    %v6483 = vadd.f32 %v6482, %v6274
    %v6484 = vadd.f32 %v6483, %v6282
    %v6485 = vadd.f32 %v6484, %v6290
    %v6486 = vadd.f32 %v6485, %v6298
    %v6487 = vadd.f32 %v6486, %v6306
    %v6488 = vadd.f32 %v6487, %v6314
    %v6489 = vadd.f32 %v6488, %v6322
    %v6490 = vadd.f32 %v6489, %v6330
    %v6491 = vadd.f32 %v6490, %v6338
    %v6492 = vadd.f32 %v6491, %v6346
    %v6493 = vrot.slane %v6492, 4
    %v6494 = vadd.f32 %v6492, %v6493
    %v6495 = vrot.slane %v6494, 2
    %v6496 = vadd.f32 %v6494, %v6495
    %v6497 = vrot.slane %v6496, 1
    %v6498 = vadd.f32 %v6496, %v6497
    %v6499 = vadd.f32 %v6099, %v6107
    %v6500 = vadd.f32 %v6499, %v6115
    %v6501 = vadd.f32 %v6500, %v6123
    %v6502 = vadd.f32 %v6501, %v6131
    %v6503 = vadd.f32 %v6502, %v6139
    %v6504 = vadd.f32 %v6503, %v6147
    %v6505 = vadd.f32 %v6504, %v6155
    %v6506 = vadd.f32 %v6505, %v6163
    %v6507 = vadd.f32 %v6506, %v6171
    %v6508 = vadd.f32 %v6507, %v6179
    %v6509 = vadd.f32 %v6508, %v6187
    %v6510 = vadd.f32 %v6509, %v6195
    %v6511 = vadd.f32 %v6510, %v6203
    %v6512 = vadd.f32 %v6511, %v6211
    %v6513 = vadd.f32 %v6512, %v6219
    %v6514 = vadd.f32 %v6513, %v6227
    %v6515 = vadd.f32 %v6514, %v6235
    %v6516 = vadd.f32 %v6515, %v6243
    %v6517 = vadd.f32 %v6516, %v6251
    %v6518 = vadd.f32 %v6517, %v6259
    %v6519 = vadd.f32 %v6518, %v6267
    %v6520 = vadd.f32 %v6519, %v6275
    %v6521 = vadd.f32 %v6520, %v6283
    %v6522 = vadd.f32 %v6521, %v6291
    %v6523 = vadd.f32 %v6522, %v6299
    %v6524 = vadd.f32 %v6523, %v6307
    %v6525 = vadd.f32 %v6524, %v6315
    %v6526 = vadd.f32 %v6525, %v6323
    %v6527 = vadd.f32 %v6526, %v6331
    %v6528 = vadd.f32 %v6527, %v6339
    %v6529 = vadd.f32 %v6528, %v6347
    %v6530 = vrot.slane %v6529, 4
    %v6531 = vadd.f32 %v6529, %v6530
    %v6532 = vrot.slane %v6531, 2
    %v6533 = vadd.f32 %v6531, %v6532
    %v6534 = vrot.slane %v6533, 1
    %v6535 = vadd.f32 %v6533, %v6534
    %v6536 = vadd.f32 %v6100, %v6108
    %v6537 = vadd.f32 %v6536, %v6116
    %v6538 = vadd.f32 %v6537, %v6124
    %v6539 = vadd.f32 %v6538, %v6132
    %v6540 = vadd.f32 %v6539, %v6140
    %v6541 = vadd.f32 %v6540, %v6148
    %v6542 = vadd.f32 %v6541, %v6156
    %v6543 = vadd.f32 %v6542, %v6164
    %v6544 = vadd.f32 %v6543, %v6172
    %v6545 = vadd.f32 %v6544, %v6180
    %v6546 = vadd.f32 %v6545, %v6188
    %v6547 = vadd.f32 %v6546, %v6196
    %v6548 = vadd.f32 %v6547, %v6204
    %v6549 = vadd.f32 %v6548, %v6212
    %v6550 = vadd.f32 %v6549, %v6220
    %v6551 = vadd.f32 %v6550, %v6228
    %v6552 = vadd.f32 %v6551, %v6236
    %v6553 = vadd.f32 %v6552, %v6244
    %v6554 = vadd.f32 %v6553, %v6252
    %v6555 = vadd.f32 %v6554, %v6260
    %v6556 = vadd.f32 %v6555, %v6268
    %v6557 = vadd.f32 %v6556, %v6276
    %v6558 = vadd.f32 %v6557, %v6284
    %v6559 = vadd.f32 %v6558, %v6292
    %v6560 = vadd.f32 %v6559, %v6300
    %v6561 = vadd.f32 %v6560, %v6308
    %v6562 = vadd.f32 %v6561, %v6316
    %v6563 = vadd.f32 %v6562, %v6324
    %v6564 = vadd.f32 %v6563, %v6332
    %v6565 = vadd.f32 %v6564, %v6340
    %v6566 = vadd.f32 %v6565, %v6348
    %v6567 = vrot.slane %v6566, 4
    %v6568 = vadd.f32 %v6566, %v6567
    %v6569 = vrot.slane %v6568, 2
    %v6570 = vadd.f32 %v6568, %v6569
    %v6571 = vrot.slane %v6570, 1
    %v6572 = vadd.f32 %v6570, %v6571
    %v6573 = vadd.f32 %v6101, %v6109
    %v6574 = vadd.f32 %v6573, %v6117
    %v6575 = vadd.f32 %v6574, %v6125
    %v6576 = vadd.f32 %v6575, %v6133
    %v6577 = vadd.f32 %v6576, %v6141
    %v6578 = vadd.f32 %v6577, %v6149
    %v6579 = vadd.f32 %v6578, %v6157
    %v6580 = vadd.f32 %v6579, %v6165
    %v6581 = vadd.f32 %v6580, %v6173
    %v6582 = vadd.f32 %v6581, %v6181
    %v6583 = vadd.f32 %v6582, %v6189
    %v6584 = vadd.f32 %v6583, %v6197
    %v6585 = vadd.f32 %v6584, %v6205
    %v6586 = vadd.f32 %v6585, %v6213
    %v6587 = vadd.f32 %v6586, %v6221
    %v6588 = vadd.f32 %v6587, %v6229
    %v6589 = vadd.f32 %v6588, %v6237
    %v6590 = vadd.f32 %v6589, %v6245
    %v6591 = vadd.f32 %v6590, %v6253
    %v6592 = vadd.f32 %v6591, %v6261
    %v6593 = vadd.f32 %v6592, %v6269
    %v6594 = vadd.f32 %v6593, %v6277
    %v6595 = vadd.f32 %v6594, %v6285
    %v6596 = vadd.f32 %v6595, %v6293
    %v6597 = vadd.f32 %v6596, %v6301
    %v6598 = vadd.f32 %v6597, %v6309
    %v6599 = vadd.f32 %v6598, %v6317
    %v6600 = vadd.f32 %v6599, %v6325
    %v6601 = vadd.f32 %v6600, %v6333
    %v6602 = vadd.f32 %v6601, %v6341
    %v6603 = vadd.f32 %v6602, %v6349
    %v6604 = vrot.slane %v6603, 4
    %v6605 = vadd.f32 %v6603, %v6604
    %v6606 = vrot.slane %v6605, 2
    %v6607 = vadd.f32 %v6605, %v6606
    %v6608 = vrot.slane %v6607, 1
    %v6609 = vadd.f32 %v6607, %v6608
    %v6610 = vadd.f32 %v6102, %v6110
    %v6611 = vadd.f32 %v6610, %v6118
    %v6612 = vadd.f32 %v6611, %v6126
    %v6613 = vadd.f32 %v6612, %v6134
    %v6614 = vadd.f32 %v6613, %v6142
    %v6615 = vadd.f32 %v6614, %v6150
    %v6616 = vadd.f32 %v6615, %v6158
    %v6617 = vadd.f32 %v6616, %v6166
    %v6618 = vadd.f32 %v6617, %v6174
    %v6619 = vadd.f32 %v6618, %v6182
    %v6620 = vadd.f32 %v6619, %v6190
    %v6621 = vadd.f32 %v6620, %v6198
    %v6622 = vadd.f32 %v6621, %v6206
    %v6623 = vadd.f32 %v6622, %v6214
    %v6624 = vadd.f32 %v6623, %v6222
    %v6625 = vadd.f32 %v6624, %v6230
    %v6626 = vadd.f32 %v6625, %v6238
    %v6627 = vadd.f32 %v6626, %v6246
    %v6628 = vadd.f32 %v6627, %v6254
    %v6629 = vadd.f32 %v6628, %v6262
    %v6630 = vadd.f32 %v6629, %v6270
    %v6631 = vadd.f32 %v6630, %v6278
    %v6632 = vadd.f32 %v6631, %v6286
    %v6633 = vadd.f32 %v6632, %v6294
    %v6634 = vadd.f32 %v6633, %v6302
    %v6635 = vadd.f32 %v6634, %v6310
    %v6636 = vadd.f32 %v6635, %v6318
    %v6637 = vadd.f32 %v6636, %v6326
    %v6638 = vadd.f32 %v6637, %v6334
    %v6639 = vadd.f32 %v6638, %v6342
    %v6640 = vadd.f32 %v6639, %v6350
    %v6641 = vrot.slane %v6640, 4
    %v6642 = vadd.f32 %v6640, %v6641
    %v6643 = vrot.slane %v6642, 2
    %v6644 = vadd.f32 %v6642, %v6643
    %v6645 = vrot.slane %v6644, 1
    %v6646 = vadd.f32 %v6644, %v6645
    %v6655 = vrot.slane %v6424, 7
    %v6656 = vrot.slane %v6461, 6
    %v6657 = vrot.slane %v6498, 5
    %v6658 = vrot.slane %v6535, 4
    %v6659 = vrot.slane %v6572, 3
    %v6660 = vrot.slane %v6609, 2
    %v6661 = vrot.slane %v6646, 1
    %vm6662 = vcmask 1040384
    %v6663 = vsel %vm6662, %v6387, %v6655
    %vm6664 = vcmask 1042434
    %v6665 = vsel %vm6664, %v6656, %v6657
    %vm6666 = vcmask 1041408
    %v6667 = vsel %vm6666, %v6663, %v6665
    %vm6668 = vcmask 1044484
    %v6669 = vsel %vm6668, %v6658, %v6659
    %vm6670 = vcmask 1046534
    %v6671 = vsel %vm6670, %v6660, %v6661
    %vm6672 = vcmask 1045508
    %v6673 = vsel %vm6672, %v6669, %v6671
    %vm6674 = vcmask 1043456
    %v6675 = vsel %vm6674, %v6667, %v6673
    %6677 = vst [vmem:[#allocation2] sm:$0xff] %v6675
    // Predicated region
    $region34: #{tpu_custom_call.1} parent=1 // pred_check
      _
    $region35: #{tpu_custom_call.1} parent=1 // pred_check_branch
      %6679 = sbr.rel (0) target = $region37
    $region36: #{tpu_custom_call.1} parent=1 // pred_region
      %6681 = vsyncadd [#allocation3], 0
      %s6683 = sshll.u32 [#allocation2], 4
      %s6684 = int_to_ptr.vmem [resolvable:$true] %s6683
      %s6685 = sshll.u32 %s8, 4
      %s6686 = int_to_ptr.hbm [resolvable:$true] %s6685
      %6688 = dma.vmem_to_hbm [thread:$0]  %s6684, 128, %s6686, [#allocation3]
    $region37: #{tpu_custom_call.1} parent=1 // pred_fallthru
      _
    // Predicated region
    $region38: #{tpu_custom_call.1} parent=1 // pred_check
      _
    $region39: #{tpu_custom_call.1} parent=1 // pred_check_branch
      %6690 = sbr.rel (0) target = $region41
    $region40: #{tpu_custom_call.1} parent=1 // pred_region
      %6692 = dma.done [#allocation3], 128
    $region41: #{tpu_custom_call.1} parent=1 // pred_fallthru
      _
    %6693 = vsyncpa [#allocation3], 1

</llo_original>
